<compile_context>
chip_gen: v7x
topology: tpu7x:2x2x1
jax: 0.10.0
libtpu: 0.0.40
codegen_flags: <defaults>
</compile_context>

<pallas_src>
import functools
import math

import jax
import jax.numpy as jnp
from jax.experimental import pallas as pl
from jax.experimental.pallas import tpu as pltpu


# ---------------------------------------------------------------------------
# helpers
# ---------------------------------------------------------------------------
def _rup(x, m):
    return (x + m - 1) // m * m


def _pad2(a, rows, cols):
    a = a.astype(jnp.float32)
    return jnp.pad(a, ((0, rows - a.shape[0]), (0, cols - a.shape[1])))


def _gelu_tanh(x):
    # TODO(synk): PyTorch nn.GELU() uses the exact erf form; we use the tanh
    # approximation (max abs deviation ~1e-3) because erf lowering inside the
    # Mosaic kernel is not guaranteed.
    c = 0.7978845608028654  # sqrt(2/pi)
    return 0.5 * x * (1.0 + jnp.tanh(c * (x + 0.044715 * x * x * x)))


# ---------------------------------------------------------------------------
# Fused [LN] + N x (matmul [+bias] [+residual]) kernel, optional LN emit
# ---------------------------------------------------------------------------
def _fused_linear_kernel(*refs, k_true, eps, fuse_ln, emit_ln, head_flags):
    n_out = len(head_flags) + (1 if emit_ln else 0)
    in_refs = refs[:-n_out]
    out_refs = refs[-n_out:]
    it = iter(in_refs)
    x = next(it)[...]
    if fuse_ln:
        g = next(it)[...]
        bt = next(it)[...]
        inv_k = 1.0 / k_true
        mean = jnp.sum(x, axis=-1, keepdims=True) * inv_k
        var = jnp.sum(x * x, axis=-1, keepdims=True) * inv_k - mean * mean
        x = (x - mean) * jax.lax.rsqrt(var + eps) * g + bt
    oi = 0
    if emit_ln:
        out_refs[0][...] = x.astype(out_refs[0].dtype)
        oi = 1
    for has_bias, has_res in head_flags:
        w = next(it)[...]
        y = jnp.dot(x, w, preferred_element_type=jnp.float32)
        if has_bias:
            y = y + next(it)[...]
        if has_res:
            y = y + next(it)[...]
        out_refs[oi][...] = y.astype(out_refs[oi].dtype)
        oi += 1


def fused_linear_op(x, heads, *, ln=None, emit_ln=False, eps=1e-5, tm_max=512):
    """Compute (optionally) xn = LN(x) and, for each (w, bias, residual) in
    `heads`, xn @ w [+ bias] [+ residual] -- all in one Pallas kernel.

    Returns a list: [xn (if emit_ln)] + one output per head (unpadded)."""
    M, K = x.shape
    Kp = _rup(K, 128)
    tm = min(tm_max, _rup(M, 8))
    Mp = _rup(M, tm)

    ins = [_pad2(x, Mp, Kp)]
    in_specs = [pl.BlockSpec((tm, Kp), lambda i: (i, 0))]
    fuse_ln = ln is not None
    assert fuse_ln or not emit_ln
    if fuse_ln:
        g, bt = ln
        ins += [_pad2(g.reshape(1, K), 1, Kp), _pad2(bt.reshape(1, K), 1, Kp)]
        in_specs += [pl.BlockSpec((1, Kp), lambda i: (0, 0)),
                     pl.BlockSpec((1, Kp), lambda i: (0, 0))]

    head_flags, out_shapes, out_specs, out_true = [], [], [], []
    if emit_ln:
        out_shapes.append(jax.ShapeDtypeStruct((Mp, Kp), jnp.float32))
        out_specs.append(pl.BlockSpec((tm, Kp), lambda i: (i, 0)))
        out_true.append(K)
    for w, bias, residual in heads:
        F = w.shape[1]
        Fp = _rup(F, 128)
        ins.append(_pad2(w, Kp, Fp))
        in_specs.append(pl.BlockSpec((Kp, Fp), lambda i: (0, 0)))
        has_bias = bias is not None
        if has_bias:
            ins.append(_pad2(bias.reshape(1, F), 1, Fp))
            in_specs.append(pl.BlockSpec((1, Fp), lambda i: (0, 0)))
        has_res = residual is not None
        if has_res:
            ins.append(_pad2(residual, Mp, Fp))
            in_specs.append(pl.BlockSpec((tm, Fp), lambda i: (i, 0)))
        head_flags.append((has_bias, has_res))
        out_shapes.append(jax.ShapeDtypeStruct((Mp, Fp), jnp.float32))
        out_specs.append(pl.BlockSpec((tm, Fp), lambda i: (i, 0)))
        out_true.append(F)

    kern = functools.partial(
        _fused_linear_kernel, k_true=float(K), eps=eps, fuse_ln=fuse_ln,
        emit_ln=emit_ln, head_flags=tuple(head_flags))

    outs = pl.pallas_call(
        kern,
        out_shape=tuple(out_shapes),
        grid_spec=pltpu.PrefetchScalarGridSpec(
            num_scalar_prefetch=0,
            grid=(Mp // tm,),
            in_specs=in_specs,
            out_specs=out_specs,
        ),
        compiler_params=pltpu.CompilerParams(dimension_semantics=("parallel",)),
    )(*ins)
    return [o[:M, :f] for o, f in zip(outs, out_true)]


def linear_op(x, w, *, bias=None, ln=None, residual=None, eps=1e-5, tm_max=512):
    """out = [LN(x)] @ w [+ bias] [+ residual].   x: (M, K), w: (K, F)."""
    return fused_linear_op(x, [(w, bias, residual)], ln=ln, eps=eps,
                           tm_max=tm_max)[0]


# ---------------------------------------------------------------------------
# Fused sr-conv (patch matmul) + sr_norm + key_value projection kernel
# ---------------------------------------------------------------------------
def _sr_kv_kernel(x_ref, w1_ref, b1_ref, g_ref, bt_ref, w2_ref, o_ref,
                  *, c_true, eps):
    t = jnp.dot(x_ref[...], w1_ref[...],
                preferred_element_type=jnp.float32) + b1_ref[...]
    inv_c = 1.0 / c_true
    mean = jnp.sum(t, axis=-1, keepdims=True) * inv_c
    var = jnp.sum(t * t, axis=-1, keepdims=True) * inv_c - mean * mean
    tn = (t - mean) * jax.lax.rsqrt(var + eps) * g_ref[...] + bt_ref[...]
    o_ref[...] = jnp.dot(tn, w2_ref[...],
                         preferred_element_type=jnp.float32).astype(o_ref.dtype)


def sr_kv_op(patches, sr_w, sr_b, srn_g, srn_b, wkv, *, eps=1e-5, tm_max=512):
    """kv = LN_C(patches @ sr_w + sr_b) @ wkv.   patches: (M, C*sr^3)."""
    M, K = patches.shape
    C = sr_w.shape[1]
    F = wkv.shape[1]
    Kp, Cp, Fp = _rup(K, 128), _rup(C, 128), _rup(F, 128)
    tm = min(tm_max, _rup(M, 8))
    Mp = _rup(M, tm)
    out = pl.pallas_call(
        functools.partial(_sr_kv_kernel, c_true=float(C), eps=eps),
        out_shape=jax.ShapeDtypeStruct((Mp, Fp), jnp.float32),
        grid_spec=pltpu.PrefetchScalarGridSpec(
            num_scalar_prefetch=0,
            grid=(Mp // tm,),
            in_specs=[
                pl.BlockSpec((tm, Kp), lambda i: (i, 0)),
                pl.BlockSpec((Kp, Cp), lambda i: (0, 0)),
                pl.BlockSpec((1, Cp), lambda i: (0, 0)),
                pl.BlockSpec((1, Cp), lambda i: (0, 0)),
                pl.BlockSpec((1, Cp), lambda i: (0, 0)),
                pl.BlockSpec((Cp, Fp), lambda i: (0, 0)),
            ],
            out_specs=pl.BlockSpec((tm, Fp), lambda i: (i, 0)),
        ),
        compiler_params=pltpu.CompilerParams(dimension_semantics=("parallel",)),
    )(_pad2(patches, Mp, Kp), _pad2(sr_w, Kp, Cp),
      _pad2(sr_b.reshape(1, C), 1, Cp),
      _pad2(srn_g.reshape(1, C), 1, Cp), _pad2(srn_b.reshape(1, C), 1, Cp),
      _pad2(wkv, Cp, Fp))
    return out[:M, :F]


# ---------------------------------------------------------------------------
# Attention kernel: grid over batch, all heads batched inside (masked softmax)
# ---------------------------------------------------------------------------
def _attn_kernel(q_ref, k_ref, v_ref, o_ref, *, scale, kv_true):
    q = q_ref[0]                           # (H, Nqp, dhp)
    k = k_ref[0]                           # (H, Nkp, dhp)
    v = v_ref[0]                           # (H, Nkp, dhp)
    s = jnp.einsum('hqd,hkd->hqk', q, k,
                   preferred_element_type=jnp.float32) * scale
    mask = jax.lax.broadcasted_iota(jnp.int32, s.shape, 2) < kv_true
    s = jnp.where(mask, s, -1e30)
    m = jnp.max(s, axis=-1, keepdims=True)
    p = jnp.exp(s - m)
    l = jnp.sum(p, axis=-1, keepdims=True)
    o = jnp.einsum('hqk,hkd->hqd', p, v, preferred_element_type=jnp.float32)
    o_ref[0] = (o * pl.reciprocal(l, approx=True)).astype(o_ref.dtype)


def attention_op(q, k, v, *, scale):
    """q: (B, H, Nq, dh), k/v: (B, H, Nk, dh) -> (B, H, Nq, dh)."""
    B, H, Nq, dh = q.shape
    Nk = k.shape[2]
    dhp = _rup(dh, 128)
    Nkp = _rup(Nk, 128)
    Nqp = _rup(Nq, 8)
    qp = jnp.pad(q.astype(jnp.float32),
                 ((0, 0), (0, 0), (0, Nqp - Nq), (0, dhp - dh)))
    kp = jnp.pad(k.astype(jnp.float32),
                 ((0, 0), (0, 0), (0, Nkp - Nk), (0, dhp - dh)))
    vp = jnp.pad(v.astype(jnp.float32),
                 ((0, 0), (0, 0), (0, Nkp - Nk), (0, dhp - dh)))
    out = pl.pallas_call(
        functools.partial(_attn_kernel, scale=scale, kv_true=Nk),
        out_shape=jax.ShapeDtypeStruct((B, H, Nqp, dhp), jnp.float32),
        grid_spec=pltpu.PrefetchScalarGridSpec(
            num_scalar_prefetch=0,
            grid=(B,),
            in_specs=[
                pl.BlockSpec((1, H, Nqp, dhp), lambda b: (b, 0, 0, 0)),
                pl.BlockSpec((1, H, Nkp, dhp), lambda b: (b, 0, 0, 0)),
                pl.BlockSpec((1, H, Nkp, dhp), lambda b: (b, 0, 0, 0)),
            ],
            out_specs=pl.BlockSpec((1, H, Nqp, dhp), lambda b: (b, 0, 0, 0)),
        ),
        compiler_params=pltpu.CompilerParams(dimension_semantics=("parallel",)),
    )(qp, kp, vp)
    return out[:, :, :Nq, :dh]


# ---------------------------------------------------------------------------
# Depthwise 3x3x3 conv + folded BatchNorm (eval) + GELU kernel (channel-last)
# ---------------------------------------------------------------------------
def _dwconv_kernel(x_ref, w_ref, scale_ref, shift_ref, o_ref, *, n):
    x = x_ref[0]                           # (n+2, n+2, n+2, Cp)
    acc = jnp.zeros((n, n, n, x.shape[-1]), jnp.float32)
    idx = 0
    for kd in range(3):
        for kh in range(3):
            for kw in range(3):
                acc = acc + x[kd:kd + n, kh:kh + n, kw:kw + n, :] * w_ref[idx]
                idx += 1
    y = acc * scale_ref[0] + shift_ref[0]   # conv-bias + BN folded into scale/shift
    o_ref[0] = _gelu_tanh(y).astype(o_ref.dtype)


def dwconv_bn_gelu_op(x, dw_w, dw_b, bn_g, bn_b, bn_rm, bn_rv, *, bn_eps=1e-5):
    """x: (B, n, n, n, C) channel-last.  Depthwise 3^3 conv(pad=1) + BN + GELU."""
    B, n, _, _, C = x.shape
    Cp = _rup(C, 128)
    xp = jnp.pad(x.astype(jnp.float32),
                 ((0, 0), (1, 1), (1, 1), (1, 1), (0, Cp - C)))
    # (C, 1, 3, 3, 3) -> (27, C) in (kd, kh, kw) order, pad channels, broadcast-ready
    w = dw_w.reshape(C, 27).T.astype(jnp.float32)
    w = jnp.pad(w, ((0, 0), (0, Cp - C))).reshape(27, 1, 1, Cp)
    scale = (bn_g / jnp.sqrt(bn_rv + bn_eps)).astype(jnp.float32)
    shift = ((dw_b - bn_rm) * scale + bn_b).astype(jnp.float32)
    scale = jnp.pad(scale, (0, Cp - C)).reshape(1, 1, 1, Cp)
    shift = jnp.pad(shift, (0, Cp - C)).reshape(1, 1, 1, Cp)

    out = pl.pallas_call(
        functools.partial(_dwconv_kernel, n=n),
        out_shape=jax.ShapeDtypeStruct((B, n, n, n, Cp), jnp.float32),
        grid_spec=pltpu.PrefetchScalarGridSpec(
            num_scalar_prefetch=0,
            grid=(B,),
            in_specs=[
                pl.BlockSpec((1, n + 2, n + 2, n + 2, Cp),
                             lambda b: (b, 0, 0, 0, 0)),
                pl.BlockSpec((27, 1, 1, Cp), lambda b: (0, 0, 0, 0)),
                pl.BlockSpec((1, 1, 1, Cp), lambda b: (0, 0, 0, 0)),
                pl.BlockSpec((1, 1, 1, Cp), lambda b: (0, 0, 0, 0)),
            ],
            out_specs=pl.BlockSpec((1, n, n, n, Cp), lambda b: (b, 0, 0, 0, 0)),
        ),
        compiler_params=pltpu.CompilerParams(dimension_semantics=("parallel",)),
    )(xp, w, scale, shift)
    return out[..., :C]


# ---------------------------------------------------------------------------
# TransformerBlock forward
# ---------------------------------------------------------------------------
def transformer_block(x, p, *, num_heads=8, sr_ratio=2, eps=1e-5, bn_eps=1e-5):
    """x: (B, N, C) with N a perfect cube.  Returns (B, N, C)."""
    B, N, C = x.shape
    n = round(N ** (1.0 / 3.0))
    assert n ** 3 == N, "sequence length must be a perfect cube"
    H = num_heads
    dh = C // H
    M = B * N
    x2d = x.reshape(M, C).astype(jnp.float32)

    # ---- attention branch: x + Attn(LN1(x)) ----
    if sr_ratio > 1:
        # one kernel: LN1(x) (emitted) and q = LN1(x) @ wq
        xn1, q = fused_linear_op(x2d, [(p["wq"].T, None, None)],
                                 ln=(p["ln1_g"], p["ln1_b"]),
                                 emit_ln=True, eps=eps)
        sr = sr_ratio
        n2 = n // sr
        # sr Conv3d (kernel == stride): non-overlapping patch regroup + matmul,
        # fused with sr_norm and the key_value projection in one kernel.
        xt = xn1.reshape(B, n2, sr, n2, sr, n2, sr, C)
        xt = xt.transpose(0, 1, 3, 5, 7, 2, 4, 6)        # (B,d2,h2,w2,C,kd,kh,kw)
        patches = xt.reshape(B * n2 ** 3, C * sr ** 3)
        sr_wmat = p["sr_w"].reshape(C, -1).T              # (C*sr^3, C)
        kv = sr_kv_op(patches, sr_wmat, p["sr_b"],
                      p["srn_g"], p["srn_b"], p["wkv"].T, eps=eps)   # (B*Nkv, 2C)
        Nkv = n2 ** 3
    else:
        # one kernel: LN1(x), then q and kv projections off the same tile
        q, kv = fused_linear_op(x2d,
                                [(p["wq"].T, None, None),
                                 (p["wkv"].T, None, None)],
                                ln=(p["ln1_g"], p["ln1_b"]), eps=eps)
        Nkv = N

    qh = q.reshape(B, N, H, dh).transpose(0, 2, 1, 3)                 # (B,H,N,dh)
    kvh = kv.reshape(B, Nkv, 2, H, dh).transpose(2, 0, 3, 1, 4)       # (2,B,H,Nkv,dh)

    # NOTE: the reference module scales by 1/sqrt(num_heads) (not head_dim).
    attn = attention_op(qh, kvh[0], kvh[1], scale=1.0 / math.sqrt(H))  # (B,H,N,dh)
    attn2d = attn.transpose(0, 2, 1, 3).reshape(M, C)

    y1 = linear_op(attn2d, p["wp"].T, bias=p["bp"], residual=x2d)      # (M, C)

    # ---- MLP branch: y1 + fc2(GELU(BN(DWConv(fc1(LN2(y1)))))) ----
    h = linear_op(y1, p["w1"].T, bias=p["b1"],
                  ln=(p["ln2_g"], p["ln2_b"]), eps=eps)                # (M, C2)
    C2 = h.shape[1]
    g = dwconv_bn_gelu_op(h.reshape(B, n, n, n, C2),
                          p["dw_w"], p["dw_b"],
                          p["bn_g"], p["bn_b"], p["bn_rm"], p["bn_rv"],
                          bn_eps=bn_eps)                               # (B,n,n,n,C2)
    y2 = linear_op(g.reshape(M, C2), p["w2"].T, bias=p["b2"], residual=y1)
    return y2.reshape(B, N, C)


# ---------------------------------------------------------------------------
# Pure-JAX reference (mirrors the PyTorch module, BN in eval mode, tanh GELU)
# ---------------------------------------------------------------------------
def _reference(x, p, *, num_heads, sr_ratio, eps=1e-5, bn_eps=1e-5):
    B, N, C = x.shape
    H, dh = num_heads, C // num_heads
    n = round(N ** (1.0 / 3.0))

    def ln(v, g, b):
        m = v.mean(-1, keepdims=True)
        var = ((v - m) ** 2).mean(-1, keepdims=True)
        return (v - m) / jnp.sqrt(var + eps) * g + b

    xn1 = ln(x, p["ln1_g"], p["ln1_b"])
    q = (xn1 @ p["wq"].T).reshape(B, N, H, dh).transpose(0, 2, 1, 3)
    if sr_ratio > 1:
        x_ = xn1.transpose(0, 2, 1).reshape(B, C, n, n, n)
        x_ = jax.lax.conv_general_dilated(
            x_, p["sr_w"], window_strides=(sr_ratio,) * 3, padding="VALID",
            dimension_numbers=("NCDHW", "OIDHW", "NCDHW"))
        x_ = x_ + p["sr_b"][None, :, None, None, None]
        x_ = x_.reshape(B, C, -1).transpose(0, 2, 1)
        x_ = ln(x_, p["srn_g"], p["srn_b"])
    else:
        x_ = xn1
    kv = x_ @ p["wkv"].T
    Nkv = kv.shape[1]
    kv = kv.reshape(B, Nkv, 2, H, dh).transpose(2, 0, 3, 1, 4)
    k, v = kv[0], kv[1]
    s = q @ k.transpose(0, 1, 3, 2) / math.sqrt(H)
    a = jax.nn.softmax(s, axis=-1)
    out = (a @ v).transpose(0, 2, 1, 3).reshape(B, N, C)
    y1 = x + out @ p["wp"].T + p["bp"]

    xn2 = ln(y1, p["ln2_g"], p["ln2_b"])
    h = xn2 @ p["w1"].T + p["b1"]
    C2 = h.shape[-1]
    hv = h.transpose(0, 2, 1).reshape(B, C2, n, n, n)
    dw = jax.lax.conv_general_dilated(
        hv, p["dw_w"], window_strides=(1, 1, 1), padding=[(1, 1)] * 3,
        dimension_numbers=("NCDHW", "OIDHW", "NCDHW"), feature_group_count=C2)
    dw = dw + p["dw_b"][None, :, None, None, None]
    bn = (dw - p["bn_rm"][None, :, None, None, None]) \
        / jnp.sqrt(p["bn_rv"][None, :, None, None, None] + bn_eps) \
        * p["bn_g"][None, :, None, None, None] + p["bn_b"][None, :, None, None, None]
    g = _gelu_tanh(bn.reshape(B, C2, -1).transpose(0, 2, 1))
    y2 = y1 + g @ p["w2"].T + p["b2"]
    return y2


# ---------------------------------------------------------------------------
if __name__ == "__main__":
    B, C, n = 2, 32, 2          # batch=2, embed_dim=32, seq N = n^3 = 8
    N = n ** 3
    H, SR, MR = 8, 2, 2         # num_heads, sr_ratio, mlp_ratio
    C2 = MR * C

    key = jax.random.PRNGKey(0)
    ks = jax.random.split(key, 24)

    def rn(k, shape, s=0.1):
        return s * jax.random.normal(k, shape, dtype=jnp.float32)

    p = dict(
        ln1_g=1.0 + rn(ks[0], (C,)), ln1_b=rn(ks[1], (C,)),
        wq=rn(ks[2], (C, C)),
        wkv=rn(ks[3], (2 * C, C)),
        sr_w=rn(ks[4], (C, C, SR, SR, SR)), sr_b=rn(ks[5], (C,)),
        srn_g=1.0 + rn(ks[6], (C,)), srn_b=rn(ks[7], (C,)),
        wp=rn(ks[8], (C, C)), bp=rn(ks[9], (C,)),
        ln2_g=1.0 + rn(ks[10], (C,)), ln2_b=rn(ks[11], (C,)),
        w1=rn(ks[12], (C2, C)), b1=rn(ks[13], (C2,)),
        dw_w=rn(ks[14], (C2, 1, 3, 3, 3)), dw_b=rn(ks[15], (C2,)),
        bn_g=1.0 + rn(ks[16], (C2,)), bn_b=rn(ks[17], (C2,)),
        bn_rm=rn(ks[18], (C2,)), bn_rv=0.5 + jnp.abs(rn(ks[19], (C2,))),
        w2=rn(ks[20], (C, C2)), b2=rn(ks[21], (C,)),
    )
    x = jax.random.normal(ks[22], (B, N, C), dtype=jnp.float32)

    fwd = jax.jit(functools.partial(transformer_block, num_heads=H, sr_ratio=SR))
    out = jax.block_until_ready(fwd(x, p))

    ref = _reference(x, p, num_heads=H, sr_ratio=SR)
    assert out.shape == ref.shape == (B, N, C), (out.shape, ref.shape)
    err = float(jnp.max(jnp.abs(out - ref)))
    assert err < 2e-3, f"max abs error {err}"

    print("KERNEL_OK")
</pallas_src>

<mosaic_0001>
module attributes {stable_mosaic.version = 11 : i64} {
  func.func @_fused_linear_kernel(%arg0: i32, %arg1: memref<16x128xf32, #tpu.memory_space<vmem>>, %arg2: memref<1x128xf32, #tpu.memory_space<vmem>>, %arg3: memref<1x128xf32, #tpu.memory_space<vmem>>, %arg4: memref<128x128xf32, #tpu.memory_space<vmem>>, %arg5: memref<16x128xf32, #tpu.memory_space<vmem>>, %arg6: memref<16x128xf32, #tpu.memory_space<vmem>>) attributes {dimension_semantics = [#tpu.dimension_semantics<parallel>], iteration_bounds = array<i64: 1>, scalar_prefetch = 0 : i64, scratch_operands = 0 : i64, tpu.core_type = #tpu.core_type<tc>, window_params = [{transform_indices = @transform_0, window_bounds = array<i64: 16, 128>}, {pipeline_mode = #tpu.pipeline_mode<synchronous>, transform_indices = @transform_1, window_bounds = array<i64: 1, 128>}, {pipeline_mode = #tpu.pipeline_mode<synchronous>, transform_indices = @transform_2, window_bounds = array<i64: 1, 128>}, {pipeline_mode = #tpu.pipeline_mode<synchronous>, transform_indices = @transform_3, window_bounds = array<i64: 128, 128>}, {transform_indices = @transform_4, window_bounds = array<i64: 16, 128>}, {transform_indices = @transform_5, window_bounds = array<i64: 16, 128>}]} {
    %c0 = arith.constant 0 : index
    %c0_0 = arith.constant 0 : index
    %0 = vector.load %arg1[%c0, %c0_0] : memref<16x128xf32, #tpu.memory_space<vmem>>, vector<16x128xf32>
    %c0_1 = arith.constant 0 : index
    %c0_2 = arith.constant 0 : index
    %1 = vector.load %arg2[%c0_1, %c0_2] : memref<1x128xf32, #tpu.memory_space<vmem>>, vector<1x128xf32>
    %c0_3 = arith.constant 0 : index
    %c0_4 = arith.constant 0 : index
    %2 = vector.load %arg3[%c0_3, %c0_4] : memref<1x128xf32, #tpu.memory_space<vmem>>, vector<1x128xf32>
    %cst = arith.constant dense<0.000000e+00> : vector<16xf32>
    %3 = vector.multi_reduction <add>, %0, %cst [1] : vector<16x128xf32> to vector<16xf32>
    %4 = vector.shape_cast %3 : vector<16xf32> to vector<16x1xf32>
    %cst_5 = arith.constant 3.125000e-02 : f32
    %5 = vector.broadcast %cst_5 : f32 to vector<16x1xf32>
    %6 = arith.mulf %4, %5 : vector<16x1xf32>
    %7 = arith.mulf %0, %0 : vector<16x128xf32>
    %cst_6 = arith.constant dense<0.000000e+00> : vector<16xf32>
    %8 = vector.multi_reduction <add>, %7, %cst_6 [1] : vector<16x128xf32> to vector<16xf32>
    %9 = vector.shape_cast %8 : vector<16xf32> to vector<16x1xf32>
    %cst_7 = arith.constant 3.125000e-02 : f32
    %10 = vector.broadcast %cst_7 : f32 to vector<16x1xf32>
    %11 = arith.mulf %9, %10 : vector<16x1xf32>
    %12 = arith.mulf %6, %6 : vector<16x1xf32>
    %13 = arith.subf %11, %12 : vector<16x1xf32>
    %14 = vector.broadcast %6 : vector<16x1xf32> to vector<16x128xf32>
    %15 = arith.subf %0, %14 : vector<16x128xf32>
    %cst_8 = arith.constant 9.99999974E-6 : f32
    %16 = vector.broadcast %cst_8 : f32 to vector<16x1xf32>
    %17 = arith.addf %13, %16 : vector<16x1xf32>
    %18 = math.rsqrt %17 : vector<16x1xf32>
    %19 = vector.broadcast %18 : vector<16x1xf32> to vector<16x128xf32>
    %20 = arith.mulf %15, %19 : vector<16x128xf32>
    %21 = vector.broadcast %1 : vector<1x128xf32> to vector<16x128xf32>
    %22 = arith.mulf %20, %21 : vector<16x128xf32>
    %23 = vector.broadcast %2 : vector<1x128xf32> to vector<16x128xf32>
    %24 = arith.addf %22, %23 : vector<16x128xf32>
    %c0_9 = arith.constant 0 : index
    %c0_10 = arith.constant 0 : index
    %25 = vector.load %arg5[%c0_9, %c0_10] : memref<16x128xf32, #tpu.memory_space<vmem>>, vector<16x128xf32>
    tpu.vector_store %arg5[%c0_9, %c0_10], %24 {strides = array<i32>} : memref<16x128xf32, #tpu.memory_space<vmem>>, vector<16x128xf32>,
    %c0_11 = arith.constant 0 : index
    %c0_12 = arith.constant 0 : index
    %26 = vector.load %arg4[%c0_11, %c0_12] : memref<128x128xf32, #tpu.memory_space<vmem>>, vector<128x128xf32>
    %cst_13 = arith.constant dense<0.000000e+00> : vector<16x128xf32>
    %27 = tpu.matmul %24, %26, %cst_13 {dimension_numbers = #tpu.dot_dimension_numbers<[1], [0], [0], [1], [0, 0, 1, 1], [], []>} : vector<16x128xf32>, vector<128x128xf32>, vector<16x128xf32> -> vector<16x128xf32>
    %c0_14 = arith.constant 0 : index
    %c0_15 = arith.constant 0 : index
    %28 = vector.load %arg6[%c0_14, %c0_15] : memref<16x128xf32, #tpu.memory_space<vmem>>, vector<16x128xf32>
    tpu.vector_store %arg6[%c0_14, %c0_15], %27 {strides = array<i32>} : memref<16x128xf32, #tpu.memory_space<vmem>>, vector<16x128xf32>,
    return
  }
  func.func @transform_0(%arg0: i32) -> (i32, i32) {
    %c0_i32 = arith.constant 0 : i32
    %c0_i32_0 = arith.constant 0 : i32
    return %arg0, %c0_i32 : i32, i32
  }
  func.func @transform_1(%arg0: i32) -> (i32, i32) {
    %c0_i32 = arith.constant 0 : i32
    %c0_i32_0 = arith.constant 0 : i32
    %c0_i32_1 = arith.constant 0 : i32
    return %c0_i32, %c0_i32_0 : i32, i32
  }
  func.func @transform_2(%arg0: i32) -> (i32, i32) {
    %c0_i32 = arith.constant 0 : i32
    %c0_i32_0 = arith.constant 0 : i32
    %c0_i32_1 = arith.constant 0 : i32
    return %c0_i32, %c0_i32_0 : i32, i32
  }
  func.func @transform_3(%arg0: i32) -> (i32, i32) {
    %c0_i32 = arith.constant 0 : i32
    %c0_i32_0 = arith.constant 0 : i32
    %c0_i32_1 = arith.constant 0 : i32
    return %c0_i32, %c0_i32_0 : i32, i32
  }
  func.func @transform_4(%arg0: i32) -> (i32, i32) {
    %c0_i32 = arith.constant 0 : i32
    %c0_i32_0 = arith.constant 0 : i32
    return %arg0, %c0_i32 : i32, i32
  }
  func.func @transform_5(%arg0: i32) -> (i32, i32) {
    %c0_i32 = arith.constant 0 : i32
    %c0_i32_0 = arith.constant 0 : i32
    return %arg0, %c0_i32 : i32, i32
  }
}

module attributes {stable_mosaic.version = 11 : i64} {
  func.func @_sr_kv_kernel(%arg0: i32, %arg1: memref<8x256xf32, #tpu.memory_space<vmem>>, %arg2: memref<256x128xf32, #tpu.memory_space<vmem>>, %arg3: memref<1x128xf32, #tpu.memory_space<vmem>>, %arg4: memref<1x128xf32, #tpu.memory_space<vmem>>, %arg5: memref<1x128xf32, #tpu.memory_space<vmem>>, %arg6: memref<128x128xf32, #tpu.memory_space<vmem>>, %arg7: memref<8x128xf32, #tpu.memory_space<vmem>>) attributes {dimension_semantics = [#tpu.dimension_semantics<parallel>], iteration_bounds = array<i64: 1>, scalar_prefetch = 0 : i64, scratch_operands = 0 : i64, tpu.core_type = #tpu.core_type<tc>, window_params = [{transform_indices = @transform_0, window_bounds = array<i64: 8, 256>}, {pipeline_mode = #tpu.pipeline_mode<synchronous>, transform_indices = @transform_1, window_bounds = array<i64: 256, 128>}, {pipeline_mode = #tpu.pipeline_mode<synchronous>, transform_indices = @transform_2, window_bounds = array<i64: 1, 128>}, {pipeline_mode = #tpu.pipeline_mode<synchronous>, transform_indices = @transform_3, window_bounds = array<i64: 1, 128>}, {pipeline_mode = #tpu.pipeline_mode<synchronous>, transform_indices = @transform_4, window_bounds = array<i64: 1, 128>}, {pipeline_mode = #tpu.pipeline_mode<synchronous>, transform_indices = @transform_5, window_bounds = array<i64: 128, 128>}, {transform_indices = @transform_6, window_bounds = array<i64: 8, 128>}]} {
    %c0 = arith.constant 0 : index
    %c0_0 = arith.constant 0 : index
    %0 = vector.load %arg1[%c0, %c0_0] : memref<8x256xf32, #tpu.memory_space<vmem>>, vector<8x256xf32>
    %c0_1 = arith.constant 0 : index
    %c0_2 = arith.constant 0 : index
    %1 = vector.load %arg2[%c0_1, %c0_2] : memref<256x128xf32, #tpu.memory_space<vmem>>, vector<256x128xf32>
    %cst = arith.constant dense<0.000000e+00> : vector<8x128xf32>
    %2 = tpu.matmul %0, %1, %cst {dimension_numbers = #tpu.dot_dimension_numbers<[1], [0], [0], [1], [0, 0, 1, 1], [], []>} : vector<8x256xf32>, vector<256x128xf32>, vector<8x128xf32> -> vector<8x128xf32>
    %c0_3 = arith.constant 0 : index
    %c0_4 = arith.constant 0 : index
    %3 = vector.load %arg3[%c0_3, %c0_4] : memref<1x128xf32, #tpu.memory_space<vmem>>, vector<1x128xf32>
    %4 = vector.broadcast %3 : vector<1x128xf32> to vector<8x128xf32>
    %5 = arith.addf %2, %4 : vector<8x128xf32>
    %cst_5 = arith.constant dense<0.000000e+00> : vector<8xf32>
    %6 = vector.multi_reduction <add>, %5, %cst_5 [1] : vector<8x128xf32> to vector<8xf32>
    %7 = vector.shape_cast %6 : vector<8xf32> to vector<8x1xf32>
    %cst_6 = arith.constant 3.125000e-02 : f32
    %8 = vector.broadcast %cst_6 : f32 to vector<8x1xf32>
    %9 = arith.mulf %7, %8 : vector<8x1xf32>
    %10 = arith.mulf %5, %5 : vector<8x128xf32>
    %cst_7 = arith.constant dense<0.000000e+00> : vector<8xf32>
    %11 = vector.multi_reduction <add>, %10, %cst_7 [1] : vector<8x128xf32> to vector<8xf32>
    %12 = vector.shape_cast %11 : vector<8xf32> to vector<8x1xf32>
    %cst_8 = arith.constant 3.125000e-02 : f32
    %13 = vector.broadcast %cst_8 : f32 to vector<8x1xf32>
    %14 = arith.mulf %12, %13 : vector<8x1xf32>
    %15 = arith.mulf %9, %9 : vector<8x1xf32>
    %16 = arith.subf %14, %15 : vector<8x1xf32>
    %17 = vector.broadcast %9 : vector<8x1xf32> to vector<8x128xf32>
    %18 = arith.subf %5, %17 : vector<8x128xf32>
    %cst_9 = arith.constant 9.99999974E-6 : f32
    %19 = vector.broadcast %cst_9 : f32 to vector<8x1xf32>
    %20 = arith.addf %16, %19 : vector<8x1xf32>
    %21 = math.rsqrt %20 : vector<8x1xf32>
    %22 = vector.broadcast %21 : vector<8x1xf32> to vector<8x128xf32>
    %23 = arith.mulf %18, %22 : vector<8x128xf32>
    %c0_10 = arith.constant 0 : index
    %c0_11 = arith.constant 0 : index
    %24 = vector.load %arg4[%c0_10, %c0_11] : memref<1x128xf32, #tpu.memory_space<vmem>>, vector<1x128xf32>
    %25 = vector.broadcast %24 : vector<1x128xf32> to vector<8x128xf32>
    %26 = arith.mulf %23, %25 : vector<8x128xf32>
    %c0_12 = arith.constant 0 : index
    %c0_13 = arith.constant 0 : index
    %27 = vector.load %arg5[%c0_12, %c0_13] : memref<1x128xf32, #tpu.memory_space<vmem>>, vector<1x128xf32>
    %28 = vector.broadcast %27 : vector<1x128xf32> to vector<8x128xf32>
    %29 = arith.addf %26, %28 : vector<8x128xf32>
    %c0_14 = arith.constant 0 : index
    %c0_15 = arith.constant 0 : index
    %30 = vector.load %arg6[%c0_14, %c0_15] : memref<128x128xf32, #tpu.memory_space<vmem>>, vector<128x128xf32>
    %cst_16 = arith.constant dense<0.000000e+00> : vector<8x128xf32>
    %31 = tpu.matmul %29, %30, %cst_16 {dimension_numbers = #tpu.dot_dimension_numbers<[1], [0], [0], [1], [0, 0, 1, 1], [], []>} : vector<8x128xf32>, vector<128x128xf32>, vector<8x128xf32> -> vector<8x128xf32>
    %c0_17 = arith.constant 0 : index
    %c0_18 = arith.constant 0 : index
    %32 = vector.load %arg7[%c0_17, %c0_18] : memref<8x128xf32, #tpu.memory_space<vmem>>, vector<8x128xf32>
    tpu.vector_store %arg7[%c0_17, %c0_18], %31 {strides = array<i32>} : memref<8x128xf32, #tpu.memory_space<vmem>>, vector<8x128xf32>,
    return
  }
  func.func @transform_0(%arg0: i32) -> (i32, i32) {
    %c0_i32 = arith.constant 0 : i32
    %c0_i32_0 = arith.constant 0 : i32
    return %arg0, %c0_i32 : i32, i32
  }
  func.func @transform_1(%arg0: i32) -> (i32, i32) {
    %c0_i32 = arith.constant 0 : i32
    %c0_i32_0 = arith.constant 0 : i32
    %c0_i32_1 = arith.constant 0 : i32
    return %c0_i32, %c0_i32_0 : i32, i32
  }
  func.func @transform_2(%arg0: i32) -> (i32, i32) {
    %c0_i32 = arith.constant 0 : i32
    %c0_i32_0 = arith.constant 0 : i32
    %c0_i32_1 = arith.constant 0 : i32
    return %c0_i32, %c0_i32_0 : i32, i32
  }
  func.func @transform_3(%arg0: i32) -> (i32, i32) {
    %c0_i32 = arith.constant 0 : i32
    %c0_i32_0 = arith.constant 0 : i32
    %c0_i32_1 = arith.constant 0 : i32
    return %c0_i32, %c0_i32_0 : i32, i32
  }
  func.func @transform_4(%arg0: i32) -> (i32, i32) {
    %c0_i32 = arith.constant 0 : i32
    %c0_i32_0 = arith.constant 0 : i32
    %c0_i32_1 = arith.constant 0 : i32
    return %c0_i32, %c0_i32_0 : i32, i32
  }
  func.func @transform_5(%arg0: i32) -> (i32, i32) {
    %c0_i32 = arith.constant 0 : i32
    %c0_i32_0 = arith.constant 0 : i32
    %c0_i32_1 = arith.constant 0 : i32
    return %c0_i32, %c0_i32_0 : i32, i32
  }
  func.func @transform_6(%arg0: i32) -> (i32, i32) {
    %c0_i32 = arith.constant 0 : i32
    %c0_i32_0 = arith.constant 0 : i32
    return %arg0, %c0_i32 : i32, i32
  }
}

module attributes {stable_mosaic.version = 11 : i64} {
  func.func @_attn_kernel(%arg0: i32, %arg1: memref<1x8x8x128xf32, #tpu.memory_space<vmem>>, %arg2: memref<1x8x128x128xf32, #tpu.memory_space<vmem>>, %arg3: memref<1x8x128x128xf32, #tpu.memory_space<vmem>>, %arg4: memref<1x8x8x128xf32, #tpu.memory_space<vmem>>) attributes {dimension_semantics = [#tpu.dimension_semantics<parallel>], iteration_bounds = array<i64: 2>, scalar_prefetch = 0 : i64, scratch_operands = 0 : i64, tpu.core_type = #tpu.core_type<tc>, window_params = [{transform_indices = @transform_0, window_bounds = array<i64: 1, 8, 8, 128>}, {transform_indices = @transform_1, window_bounds = array<i64: 1, 8, 128, 128>}, {transform_indices = @transform_2, window_bounds = array<i64: 1, 8, 128, 128>}, {transform_indices = @transform_3, window_bounds = array<i64: 1, 8, 8, 128>}]} {
    %c0 = arith.constant 0 : index
    %c0_0 = arith.constant 0 : index
    %c0_1 = arith.constant 0 : index
    %c0_2 = arith.constant 0 : index
    %0 = vector.load %arg1[%c0, %c0_0, %c0_1, %c0_2] : memref<1x8x8x128xf32, #tpu.memory_space<vmem>>, vector<1x8x8x128xf32>
    %1 = vector.shape_cast %0 : vector<1x8x8x128xf32> to vector<8x8x128xf32>
    %c0_3 = arith.constant 0 : index
    %c0_4 = arith.constant 0 : index
    %c0_5 = arith.constant 0 : index
    %c0_6 = arith.constant 0 : index
    %2 = vector.load %arg2[%c0_3, %c0_4, %c0_5, %c0_6] : memref<1x8x128x128xf32, #tpu.memory_space<vmem>>, vector<1x8x128x128xf32>
    %3 = vector.shape_cast %2 : vector<1x8x128x128xf32> to vector<8x128x128xf32>
    %c0_7 = arith.constant 0 : index
    %c0_8 = arith.constant 0 : index
    %c0_9 = arith.constant 0 : index
    %c0_10 = arith.constant 0 : index
    %4 = vector.load %arg3[%c0_7, %c0_8, %c0_9, %c0_10] : memref<1x8x128x128xf32, #tpu.memory_space<vmem>>, vector<1x8x128x128xf32>
    %5 = vector.shape_cast %4 : vector<1x8x128x128xf32> to vector<8x128x128xf32>
    "tpu.trace_start"() <{level = 10 : i32, message = "hqd,hkd->hqk"}> : () -> ()
    %cst = arith.constant dense<0.000000e+00> : vector<8x8x128xf32>
    %6 = tpu.matmul %1, %3, %cst {dimension_numbers = #tpu.dot_dimension_numbers<[2], [2], [1], [1], [0, 0, 0, 1, 1, 1], [0], [0]>} : vector<8x8x128xf32>, vector<8x128x128xf32>, vector<8x8x128xf32> -> vector<8x8x128xf32>
    "tpu.trace_stop"() : () -> ()
    %cst_11 = arith.constant 0.353553385 : f32
    %7 = vector.broadcast %cst_11 : f32 to vector<8x8x128xf32>
    %8 = arith.mulf %6, %7 : vector<8x8x128xf32>
    %9 = tpu.iota {dimensions = array<i32: 2>} : vector<8x8x128xi32>
    %c1_i32 = arith.constant 1 : i32
    %10 = vector.broadcast %c1_i32 : i32 to vector<8x8x128xi32>
    %11 = arith.cmpi slt, %9, %10 : vector<8x8x128xi32>
    %cst_12 = arith.constant -1.000000e+30 : f32
    %12 = vector.broadcast %cst_12 : f32 to vector<8x8x128xf32>
    %13 = arith.select %11, %8, %12 : vector<8x8x128xi1>, vector<8x8x128xf32>
    %cst_13 = arith.constant dense<0xFF800000> : vector<8x8xf32>
    %14 = vector.multi_reduction <maximumf>, %13, %cst_13 [2] : vector<8x8x128xf32> to vector<8x8xf32>
    %15 = vector.shape_cast %14 : vector<8x8xf32> to vector<8x8x1xf32>
    %16 = vector.broadcast %15 : vector<8x8x1xf32> to vector<8x8x128xf32>
    %17 = arith.subf %13, %16 : vector<8x8x128xf32>
    %18 = math.exp %17 : vector<8x8x128xf32>
    %cst_14 = arith.constant dense<0.000000e+00> : vector<8x8xf32>
    %19 = vector.multi_reduction <add>, %18, %cst_14 [2] : vector<8x8x128xf32> to vector<8x8xf32>
    %20 = vector.shape_cast %19 : vector<8x8xf32> to vector<8x8x1xf32>
    "tpu.trace_start"() <{level = 10 : i32, message = "hqk,hkd->hqd"}> : () -> ()
    %cst_15 = arith.constant dense<0.000000e+00> : vector<8x8x128xf32>
    %21 = tpu.matmul %18, %5, %cst_15 {dimension_numbers = #tpu.dot_dimension_numbers<[2], [1], [1], [2], [0, 0, 0, 1, 1, 2], [0], [0]>} : vector<8x8x128xf32>, vector<8x128x128xf32>, vector<8x8x128xf32> -> vector<8x8x128xf32>
    "tpu.trace_stop"() : () -> ()
    %22 = tpu.reciprocal %20 {approx = true} : vector<8x8x1xf32> -> vector<8x8x1xf32>
    %23 = vector.broadcast %22 : vector<8x8x1xf32> to vector<8x8x128xf32>
    %24 = arith.mulf %21, %23 : vector<8x8x128xf32>
    %c0_16 = arith.constant 0 : index
    %c0_17 = arith.constant 0 : index
    %c0_18 = arith.constant 0 : index
    %c0_19 = arith.constant 0 : index
    %25 = vector.load %arg4[%c0_16, %c0_17, %c0_18, %c0_19] : memref<1x8x8x128xf32, #tpu.memory_space<vmem>>, vector<1x8x8x128xf32>
    %26 = vector.shape_cast %25 : vector<1x8x8x128xf32> to vector<8x8x128xf32>
    %27 = vector.shape_cast %24 : vector<8x8x128xf32> to vector<1x8x8x128xf32>
    tpu.vector_store %arg4[%c0_16, %c0_17, %c0_18, %c0_19], %27 {strides = array<i32>} : memref<1x8x8x128xf32, #tpu.memory_space<vmem>>, vector<1x8x8x128xf32>,
    return
  }
  func.func @transform_0(%arg0: i32) -> (i32, i32, i32, i32) {
    %c0_i32 = arith.constant 0 : i32
    %c0_i32_0 = arith.constant 0 : i32
    %c0_i32_1 = arith.constant 0 : i32
    %c0_i32_2 = arith.constant 0 : i32
    return %arg0, %c0_i32, %c0_i32_0, %c0_i32_1 : i32, i32, i32, i32
  }
  func.func @transform_1(%arg0: i32) -> (i32, i32, i32, i32) {
    %c0_i32 = arith.constant 0 : i32
    %c0_i32_0 = arith.constant 0 : i32
    %c0_i32_1 = arith.constant 0 : i32
    %c0_i32_2 = arith.constant 0 : i32
    return %arg0, %c0_i32, %c0_i32_0, %c0_i32_1 : i32, i32, i32, i32
  }
  func.func @transform_2(%arg0: i32) -> (i32, i32, i32, i32) {
    %c0_i32 = arith.constant 0 : i32
    %c0_i32_0 = arith.constant 0 : i32
    %c0_i32_1 = arith.constant 0 : i32
    %c0_i32_2 = arith.constant 0 : i32
    return %arg0, %c0_i32, %c0_i32_0, %c0_i32_1 : i32, i32, i32, i32
  }
  func.func @transform_3(%arg0: i32) -> (i32, i32, i32, i32) {
    %c0_i32 = arith.constant 0 : i32
    %c0_i32_0 = arith.constant 0 : i32
    %c0_i32_1 = arith.constant 0 : i32
    %c0_i32_2 = arith.constant 0 : i32
    return %arg0, %c0_i32, %c0_i32_0, %c0_i32_1 : i32, i32, i32, i32
  }
}

module attributes {stable_mosaic.version = 11 : i64} {
  func.func @_fused_linear_kernel(%arg0: i32, %arg1: memref<16x128xf32, #tpu.memory_space<vmem>>, %arg2: memref<128x128xf32, #tpu.memory_space<vmem>>, %arg3: memref<1x128xf32, #tpu.memory_space<vmem>>, %arg4: memref<16x128xf32, #tpu.memory_space<vmem>>, %arg5: memref<16x128xf32, #tpu.memory_space<vmem>>) attributes {dimension_semantics = [#tpu.dimension_semantics<parallel>], iteration_bounds = array<i64: 1>, scalar_prefetch = 0 : i64, scratch_operands = 0 : i64, tpu.core_type = #tpu.core_type<tc>, window_params = [{transform_indices = @transform_0, window_bounds = array<i64: 16, 128>}, {pipeline_mode = #tpu.pipeline_mode<synchronous>, transform_indices = @transform_1, window_bounds = array<i64: 128, 128>}, {pipeline_mode = #tpu.pipeline_mode<synchronous>, transform_indices = @transform_2, window_bounds = array<i64: 1, 128>}, {transform_indices = @transform_3, window_bounds = array<i64: 16, 128>}, {transform_indices = @transform_4, window_bounds = array<i64: 16, 128>}]} {
    %c0 = arith.constant 0 : index
    %c0_0 = arith.constant 0 : index
    %0 = vector.load %arg1[%c0, %c0_0] : memref<16x128xf32, #tpu.memory_space<vmem>>, vector<16x128xf32>
    %c0_1 = arith.constant 0 : index
    %c0_2 = arith.constant 0 : index
    %1 = vector.load %arg2[%c0_1, %c0_2] : memref<128x128xf32, #tpu.memory_space<vmem>>, vector<128x128xf32>
    %cst = arith.constant dense<0.000000e+00> : vector<16x128xf32>
    %2 = tpu.matmul %0, %1, %cst {dimension_numbers = #tpu.dot_dimension_numbers<[1], [0], [0], [1], [0, 0, 1, 1], [], []>} : vector<16x128xf32>, vector<128x128xf32>, vector<16x128xf32> -> vector<16x128xf32>
    %c0_3 = arith.constant 0 : index
    %c0_4 = arith.constant 0 : index
    %3 = vector.load %arg3[%c0_3, %c0_4] : memref<1x128xf32, #tpu.memory_space<vmem>>, vector<1x128xf32>
    %4 = vector.broadcast %3 : vector<1x128xf32> to vector<16x128xf32>
    %5 = arith.addf %2, %4 : vector<16x128xf32>
    %c0_5 = arith.constant 0 : index
    %c0_6 = arith.constant 0 : index
    %6 = vector.load %arg4[%c0_5, %c0_6] : memref<16x128xf32, #tpu.memory_space<vmem>>, vector<16x128xf32>
    %7 = arith.addf %5, %6 : vector<16x128xf32>
    %c0_7 = arith.constant 0 : index
    %c0_8 = arith.constant 0 : index
    %8 = vector.load %arg5[%c0_7, %c0_8] : memref<16x128xf32, #tpu.memory_space<vmem>>, vector<16x128xf32>
    tpu.vector_store %arg5[%c0_7, %c0_8], %7 {strides = array<i32>} : memref<16x128xf32, #tpu.memory_space<vmem>>, vector<16x128xf32>,
    return
  }
  func.func @transform_0(%arg0: i32) -> (i32, i32) {
    %c0_i32 = arith.constant 0 : i32
    %c0_i32_0 = arith.constant 0 : i32
    return %arg0, %c0_i32 : i32, i32
  }
  func.func @transform_1(%arg0: i32) -> (i32, i32) {
    %c0_i32 = arith.constant 0 : i32
    %c0_i32_0 = arith.constant 0 : i32
    %c0_i32_1 = arith.constant 0 : i32
    return %c0_i32, %c0_i32_0 : i32, i32
  }
  func.func @transform_2(%arg0: i32) -> (i32, i32) {
    %c0_i32 = arith.constant 0 : i32
    %c0_i32_0 = arith.constant 0 : i32
    %c0_i32_1 = arith.constant 0 : i32
    return %c0_i32, %c0_i32_0 : i32, i32
  }
  func.func @transform_3(%arg0: i32) -> (i32, i32) {
    %c0_i32 = arith.constant 0 : i32
    %c0_i32_0 = arith.constant 0 : i32
    return %arg0, %c0_i32 : i32, i32
  }
  func.func @transform_4(%arg0: i32) -> (i32, i32) {
    %c0_i32 = arith.constant 0 : i32
    %c0_i32_0 = arith.constant 0 : i32
    return %arg0, %c0_i32 : i32, i32
  }
}

module attributes {stable_mosaic.version = 11 : i64} {
  func.func @_fused_linear_kernel(%arg0: i32, %arg1: memref<16x128xf32, #tpu.memory_space<vmem>>, %arg2: memref<1x128xf32, #tpu.memory_space<vmem>>, %arg3: memref<1x128xf32, #tpu.memory_space<vmem>>, %arg4: memref<128x128xf32, #tpu.memory_space<vmem>>, %arg5: memref<1x128xf32, #tpu.memory_space<vmem>>, %arg6: memref<16x128xf32, #tpu.memory_space<vmem>>) attributes {dimension_semantics = [#tpu.dimension_semantics<parallel>], iteration_bounds = array<i64: 1>, scalar_prefetch = 0 : i64, scratch_operands = 0 : i64, tpu.core_type = #tpu.core_type<tc>, window_params = [{transform_indices = @transform_0, window_bounds = array<i64: 16, 128>}, {pipeline_mode = #tpu.pipeline_mode<synchronous>, transform_indices = @transform_1, window_bounds = array<i64: 1, 128>}, {pipeline_mode = #tpu.pipeline_mode<synchronous>, transform_indices = @transform_2, window_bounds = array<i64: 1, 128>}, {pipeline_mode = #tpu.pipeline_mode<synchronous>, transform_indices = @transform_3, window_bounds = array<i64: 128, 128>}, {pipeline_mode = #tpu.pipeline_mode<synchronous>, transform_indices = @transform_4, window_bounds = array<i64: 1, 128>}, {transform_indices = @transform_5, window_bounds = array<i64: 16, 128>}]} {
    %c0 = arith.constant 0 : index
    %c0_0 = arith.constant 0 : index
    %0 = vector.load %arg1[%c0, %c0_0] : memref<16x128xf32, #tpu.memory_space<vmem>>, vector<16x128xf32>
    %c0_1 = arith.constant 0 : index
    %c0_2 = arith.constant 0 : index
    %1 = vector.load %arg2[%c0_1, %c0_2] : memref<1x128xf32, #tpu.memory_space<vmem>>, vector<1x128xf32>
    %c0_3 = arith.constant 0 : index
    %c0_4 = arith.constant 0 : index
    %2 = vector.load %arg3[%c0_3, %c0_4] : memref<1x128xf32, #tpu.memory_space<vmem>>, vector<1x128xf32>
    %cst = arith.constant dense<0.000000e+00> : vector<16xf32>
    %3 = vector.multi_reduction <add>, %0, %cst [1] : vector<16x128xf32> to vector<16xf32>
    %4 = vector.shape_cast %3 : vector<16xf32> to vector<16x1xf32>
    %cst_5 = arith.constant 3.125000e-02 : f32
    %5 = vector.broadcast %cst_5 : f32 to vector<16x1xf32>
    %6 = arith.mulf %4, %5 : vector<16x1xf32>
    %7 = arith.mulf %0, %0 : vector<16x128xf32>
    %cst_6 = arith.constant dense<0.000000e+00> : vector<16xf32>
    %8 = vector.multi_reduction <add>, %7, %cst_6 [1] : vector<16x128xf32> to vector<16xf32>
    %9 = vector.shape_cast %8 : vector<16xf32> to vector<16x1xf32>
    %cst_7 = arith.constant 3.125000e-02 : f32
    %10 = vector.broadcast %cst_7 : f32 to vector<16x1xf32>
    %11 = arith.mulf %9, %10 : vector<16x1xf32>
    %12 = arith.mulf %6, %6 : vector<16x1xf32>
    %13 = arith.subf %11, %12 : vector<16x1xf32>
    %14 = vector.broadcast %6 : vector<16x1xf32> to vector<16x128xf32>
    %15 = arith.subf %0, %14 : vector<16x128xf32>
    %cst_8 = arith.constant 9.99999974E-6 : f32
    %16 = vector.broadcast %cst_8 : f32 to vector<16x1xf32>
    %17 = arith.addf %13, %16 : vector<16x1xf32>
    %18 = math.rsqrt %17 : vector<16x1xf32>
    %19 = vector.broadcast %18 : vector<16x1xf32> to vector<16x128xf32>
    %20 = arith.mulf %15, %19 : vector<16x128xf32>
    %21 = vector.broadcast %1 : vector<1x128xf32> to vector<16x128xf32>
    %22 = arith.mulf %20, %21 : vector<16x128xf32>
    %23 = vector.broadcast %2 : vector<1x128xf32> to vector<16x128xf32>
    %24 = arith.addf %22, %23 : vector<16x128xf32>
    %c0_9 = arith.constant 0 : index
    %c0_10 = arith.constant 0 : index
    %25 = vector.load %arg4[%c0_9, %c0_10] : memref<128x128xf32, #tpu.memory_space<vmem>>, vector<128x128xf32>
    %cst_11 = arith.constant dense<0.000000e+00> : vector<16x128xf32>
    %26 = tpu.matmul %24, %25, %cst_11 {dimension_numbers = #tpu.dot_dimension_numbers<[1], [0], [0], [1], [0, 0, 1, 1], [], []>} : vector<16x128xf32>, vector<128x128xf32>, vector<16x128xf32> -> vector<16x128xf32>
    %c0_12 = arith.constant 0 : index
    %c0_13 = arith.constant 0 : index
    %27 = vector.load %arg5[%c0_12, %c0_13] : memref<1x128xf32, #tpu.memory_space<vmem>>, vector<1x128xf32>
    %28 = vector.broadcast %27 : vector<1x128xf32> to vector<16x128xf32>
    %29 = arith.addf %26, %28 : vector<16x128xf32>
    %c0_14 = arith.constant 0 : index
    %c0_15 = arith.constant 0 : index
    %30 = vector.load %arg6[%c0_14, %c0_15] : memref<16x128xf32, #tpu.memory_space<vmem>>, vector<16x128xf32>
    tpu.vector_store %arg6[%c0_14, %c0_15], %29 {strides = array<i32>} : memref<16x128xf32, #tpu.memory_space<vmem>>, vector<16x128xf32>,
    return
  }
  func.func @transform_0(%arg0: i32) -> (i32, i32) {
    %c0_i32 = arith.constant 0 : i32
    %c0_i32_0 = arith.constant 0 : i32
    return %arg0, %c0_i32 : i32, i32
  }
  func.func @transform_1(%arg0: i32) -> (i32, i32) {
    %c0_i32 = arith.constant 0 : i32
    %c0_i32_0 = arith.constant 0 : i32
    %c0_i32_1 = arith.constant 0 : i32
    return %c0_i32, %c0_i32_0 : i32, i32
  }
  func.func @transform_2(%arg0: i32) -> (i32, i32) {
    %c0_i32 = arith.constant 0 : i32
    %c0_i32_0 = arith.constant 0 : i32
    %c0_i32_1 = arith.constant 0 : i32
    return %c0_i32, %c0_i32_0 : i32, i32
  }
  func.func @transform_3(%arg0: i32) -> (i32, i32) {
    %c0_i32 = arith.constant 0 : i32
    %c0_i32_0 = arith.constant 0 : i32
    %c0_i32_1 = arith.constant 0 : i32
    return %c0_i32, %c0_i32_0 : i32, i32
  }
  func.func @transform_4(%arg0: i32) -> (i32, i32) {
    %c0_i32 = arith.constant 0 : i32
    %c0_i32_0 = arith.constant 0 : i32
    %c0_i32_1 = arith.constant 0 : i32
    return %c0_i32, %c0_i32_0 : i32, i32
  }
  func.func @transform_5(%arg0: i32) -> (i32, i32) {
    %c0_i32 = arith.constant 0 : i32
    %c0_i32_0 = arith.constant 0 : i32
    return %arg0, %c0_i32 : i32, i32
  }
}

module attributes {stable_mosaic.version = 11 : i64} {
  func.func @_dwconv_kernel(%arg0: i32, %arg1: memref<1x4x4x4x128xf32, #tpu.memory_space<vmem>>, %arg2: memref<27x1x1x128xf32, #tpu.memory_space<vmem>>, %arg3: memref<1x1x1x128xf32, #tpu.memory_space<vmem>>, %arg4: memref<1x1x1x128xf32, #tpu.memory_space<vmem>>, %arg5: memref<1x2x2x2x128xf32, #tpu.memory_space<vmem>>) attributes {dimension_semantics = [#tpu.dimension_semantics<parallel>], iteration_bounds = array<i64: 2>, scalar_prefetch = 0 : i64, scratch_operands = 0 : i64, tpu.core_type = #tpu.core_type<tc>, window_params = [{transform_indices = @transform_0, window_bounds = array<i64: 1, 4, 4, 4, 128>}, {pipeline_mode = #tpu.pipeline_mode<synchronous>, transform_indices = @transform_1, window_bounds = array<i64: 27, 1, 1, 128>}, {pipeline_mode = #tpu.pipeline_mode<synchronous>, transform_indices = @transform_2, window_bounds = array<i64: 1, 1, 1, 128>}, {pipeline_mode = #tpu.pipeline_mode<synchronous>, transform_indices = @transform_3, window_bounds = array<i64: 1, 1, 1, 128>}, {transform_indices = @transform_4, window_bounds = array<i64: 1, 2, 2, 2, 128>}]} {
    %c0 = arith.constant 0 : index
    %c0_0 = arith.constant 0 : index
    %c0_1 = arith.constant 0 : index
    %c0_2 = arith.constant 0 : index
    %c0_3 = arith.constant 0 : index
    %0 = vector.load %arg1[%c0, %c0_0, %c0_1, %c0_2, %c0_3] : memref<1x4x4x4x128xf32, #tpu.memory_space<vmem>>, vector<1x4x4x4x128xf32>
    %1 = vector.shape_cast %0 : vector<1x4x4x4x128xf32> to vector<4x4x4x128xf32>
    %cst = arith.constant 0.000000e+00 : f32
    %2 = vector.broadcast %cst : f32 to vector<2x2x2x128xf32>
    %3 = vector.extract_strided_slice %1 {offsets = [0, 0, 0, 0], sizes = [2, 2, 2, 128], strides = [1, 1, 1, 1]} : vector<4x4x4x128xf32> to vector<2x2x2x128xf32>
    %c0_4 = arith.constant 0 : index
    %c0_5 = arith.constant 0 : index
    %c0_6 = arith.constant 0 : index
    %c0_7 = arith.constant 0 : index
    %4 = vector.load %arg2[%c0_4, %c0_5, %c0_6, %c0_7] : memref<27x1x1x128xf32, #tpu.memory_space<vmem>>, vector<1x1x1x128xf32>
    %5 = vector.shape_cast %4 : vector<1x1x1x128xf32> to vector<1x1x128xf32>
    %6 = vector.shape_cast %5 : vector<1x1x128xf32> to vector<1x1x1x128xf32>
    %7 = vector.broadcast %6 : vector<1x1x1x128xf32> to vector<2x2x2x128xf32>
    %8 = arith.mulf %3, %7 : vector<2x2x2x128xf32>
    %9 = arith.addf %2, %8 : vector<2x2x2x128xf32>
    %10 = vector.extract_strided_slice %1 {offsets = [0, 0, 1, 0], sizes = [2, 2, 2, 128], strides = [1, 1, 1, 1]} : vector<4x4x4x128xf32> to vector<2x2x2x128xf32>
    %c1 = arith.constant 1 : index
    %c0_8 = arith.constant 0 : index
    %c0_9 = arith.constant 0 : index
    %c0_10 = arith.constant 0 : index
    %11 = vector.load %arg2[%c1, %c0_8, %c0_9, %c0_10] : memref<27x1x1x128xf32, #tpu.memory_space<vmem>>, vector<1x1x1x128xf32>
    %12 = vector.shape_cast %11 : vector<1x1x1x128xf32> to vector<1x1x128xf32>
    %13 = vector.shape_cast %12 : vector<1x1x128xf32> to vector<1x1x1x128xf32>
    %14 = vector.broadcast %13 : vector<1x1x1x128xf32> to vector<2x2x2x128xf32>
    %15 = arith.mulf %10, %14 : vector<2x2x2x128xf32>
    %16 = arith.addf %9, %15 : vector<2x2x2x128xf32>
    %17 = vector.extract_strided_slice %1 {offsets = [0, 0, 2, 0], sizes = [2, 2, 2, 128], strides = [1, 1, 1, 1]} : vector<4x4x4x128xf32> to vector<2x2x2x128xf32>
    %c2 = arith.constant 2 : index
    %c0_11 = arith.constant 0 : index
    %c0_12 = arith.constant 0 : index
    %c0_13 = arith.constant 0 : index
    %18 = vector.load %arg2[%c2, %c0_11, %c0_12, %c0_13] : memref<27x1x1x128xf32, #tpu.memory_space<vmem>>, vector<1x1x1x128xf32>
    %19 = vector.shape_cast %18 : vector<1x1x1x128xf32> to vector<1x1x128xf32>
    %20 = vector.shape_cast %19 : vector<1x1x128xf32> to vector<1x1x1x128xf32>
    %21 = vector.broadcast %20 : vector<1x1x1x128xf32> to vector<2x2x2x128xf32>
    %22 = arith.mulf %17, %21 : vector<2x2x2x128xf32>
    %23 = arith.addf %16, %22 : vector<2x2x2x128xf32>
    %24 = vector.extract_strided_slice %1 {offsets = [0, 1, 0, 0], sizes = [2, 2, 2, 128], strides = [1, 1, 1, 1]} : vector<4x4x4x128xf32> to vector<2x2x2x128xf32>
    %c3 = arith.constant 3 : index
    %c0_14 = arith.constant 0 : index
    %c0_15 = arith.constant 0 : index
    %c0_16 = arith.constant 0 : index
    %25 = vector.load %arg2[%c3, %c0_14, %c0_15, %c0_16] : memref<27x1x1x128xf32, #tpu.memory_space<vmem>>, vector<1x1x1x128xf32>
    %26 = vector.shape_cast %25 : vector<1x1x1x128xf32> to vector<1x1x128xf32>
    %27 = vector.shape_cast %26 : vector<1x1x128xf32> to vector<1x1x1x128xf32>
    %28 = vector.broadcast %27 : vector<1x1x1x128xf32> to vector<2x2x2x128xf32>
    %29 = arith.mulf %24, %28 : vector<2x2x2x128xf32>
    %30 = arith.addf %23, %29 : vector<2x2x2x128xf32>
    %31 = vector.extract_strided_slice %1 {offsets = [0, 1, 1, 0], sizes = [2, 2, 2, 128], strides = [1, 1, 1, 1]} : vector<4x4x4x128xf32> to vector<2x2x2x128xf32>
    %c4 = arith.constant 4 : index
    %c0_17 = arith.constant 0 : index
    %c0_18 = arith.constant 0 : index
    %c0_19 = arith.constant 0 : index
    %32 = vector.load %arg2[%c4, %c0_17, %c0_18, %c0_19] : memref<27x1x1x128xf32, #tpu.memory_space<vmem>>, vector<1x1x1x128xf32>
    %33 = vector.shape_cast %32 : vector<1x1x1x128xf32> to vector<1x1x128xf32>
    %34 = vector.shape_cast %33 : vector<1x1x128xf32> to vector<1x1x1x128xf32>
    %35 = vector.broadcast %34 : vector<1x1x1x128xf32> to vector<2x2x2x128xf32>
    %36 = arith.mulf %31, %35 : vector<2x2x2x128xf32>
    %37 = arith.addf %30, %36 : vector<2x2x2x128xf32>
    %38 = vector.extract_strided_slice %1 {offsets = [0, 1, 2, 0], sizes = [2, 2, 2, 128], strides = [1, 1, 1, 1]} : vector<4x4x4x128xf32> to vector<2x2x2x128xf32>
    %c5 = arith.constant 5 : index
    %c0_20 = arith.constant 0 : index
    %c0_21 = arith.constant 0 : index
    %c0_22 = arith.constant 0 : index
    %39 = vector.load %arg2[%c5, %c0_20, %c0_21, %c0_22] : memref<27x1x1x128xf32, #tpu.memory_space<vmem>>, vector<1x1x1x128xf32>
    %40 = vector.shape_cast %39 : vector<1x1x1x128xf32> to vector<1x1x128xf32>
    %41 = vector.shape_cast %40 : vector<1x1x128xf32> to vector<1x1x1x128xf32>
    %42 = vector.broadcast %41 : vector<1x1x1x128xf32> to vector<2x2x2x128xf32>
    %43 = arith.mulf %38, %42 : vector<2x2x2x128xf32>
    %44 = arith.addf %37, %43 : vector<2x2x2x128xf32>
    %45 = vector.extract_strided_slice %1 {offsets = [0, 2, 0, 0], sizes = [2, 2, 2, 128], strides = [1, 1, 1, 1]} : vector<4x4x4x128xf32> to vector<2x2x2x128xf32>
    %c6 = arith.constant 6 : index
    %c0_23 = arith.constant 0 : index
    %c0_24 = arith.constant 0 : index
    %c0_25 = arith.constant 0 : index
    %46 = vector.load %arg2[%c6, %c0_23, %c0_24, %c0_25] : memref<27x1x1x128xf32, #tpu.memory_space<vmem>>, vector<1x1x1x128xf32>
    %47 = vector.shape_cast %46 : vector<1x1x1x128xf32> to vector<1x1x128xf32>
    %48 = vector.shape_cast %47 : vector<1x1x128xf32> to vector<1x1x1x128xf32>
    %49 = vector.broadcast %48 : vector<1x1x1x128xf32> to vector<2x2x2x128xf32>
    %50 = arith.mulf %45, %49 : vector<2x2x2x128xf32>
    %51 = arith.addf %44, %50 : vector<2x2x2x128xf32>
    %52 = vector.extract_strided_slice %1 {offsets = [0, 2, 1, 0], sizes = [2, 2, 2, 128], strides = [1, 1, 1, 1]} : vector<4x4x4x128xf32> to vector<2x2x2x128xf32>
    %c7 = arith.constant 7 : index
    %c0_26 = arith.constant 0 : index
    %c0_27 = arith.constant 0 : index
    %c0_28 = arith.constant 0 : index
    %53 = vector.load %arg2[%c7, %c0_26, %c0_27, %c0_28] : memref<27x1x1x128xf32, #tpu.memory_space<vmem>>, vector<1x1x1x128xf32>
    %54 = vector.shape_cast %53 : vector<1x1x1x128xf32> to vector<1x1x128xf32>
    %55 = vector.shape_cast %54 : vector<1x1x128xf32> to vector<1x1x1x128xf32>
    %56 = vector.broadcast %55 : vector<1x1x1x128xf32> to vector<2x2x2x128xf32>
    %57 = arith.mulf %52, %56 : vector<2x2x2x128xf32>
    %58 = arith.addf %51, %57 : vector<2x2x2x128xf32>
    %59 = vector.extract_strided_slice %1 {offsets = [0, 2, 2, 0], sizes = [2, 2, 2, 128], strides = [1, 1, 1, 1]} : vector<4x4x4x128xf32> to vector<2x2x2x128xf32>
    %c8 = arith.constant 8 : index
    %c0_29 = arith.constant 0 : index
    %c0_30 = arith.constant 0 : index
    %c0_31 = arith.constant 0 : index
    %60 = vector.load %arg2[%c8, %c0_29, %c0_30, %c0_31] : memref<27x1x1x128xf32, #tpu.memory_space<vmem>>, vector<1x1x1x128xf32>
    %61 = vector.shape_cast %60 : vector<1x1x1x128xf32> to vector<1x1x128xf32>
    %62 = vector.shape_cast %61 : vector<1x1x128xf32> to vector<1x1x1x128xf32>
    %63 = vector.broadcast %62 : vector<1x1x1x128xf32> to vector<2x2x2x128xf32>
    %64 = arith.mulf %59, %63 : vector<2x2x2x128xf32>
    %65 = arith.addf %58, %64 : vector<2x2x2x128xf32>
    %66 = vector.extract_strided_slice %1 {offsets = [1, 0, 0, 0], sizes = [2, 2, 2, 128], strides = [1, 1, 1, 1]} : vector<4x4x4x128xf32> to vector<2x2x2x128xf32>
    %c9 = arith.constant 9 : index
    %c0_32 = arith.constant 0 : index
    %c0_33 = arith.constant 0 : index
    %c0_34 = arith.constant 0 : index
    %67 = vector.load %arg2[%c9, %c0_32, %c0_33, %c0_34] : memref<27x1x1x128xf32, #tpu.memory_space<vmem>>, vector<1x1x1x128xf32>
    %68 = vector.shape_cast %67 : vector<1x1x1x128xf32> to vector<1x1x128xf32>
    %69 = vector.shape_cast %68 : vector<1x1x128xf32> to vector<1x1x1x128xf32>
    %70 = vector.broadcast %69 : vector<1x1x1x128xf32> to vector<2x2x2x128xf32>
    %71 = arith.mulf %66, %70 : vector<2x2x2x128xf32>
    %72 = arith.addf %65, %71 : vector<2x2x2x128xf32>
    %73 = vector.extract_strided_slice %1 {offsets = [1, 0, 1, 0], sizes = [2, 2, 2, 128], strides = [1, 1, 1, 1]} : vector<4x4x4x128xf32> to vector<2x2x2x128xf32>
    %c10 = arith.constant 10 : index
    %c0_35 = arith.constant 0 : index
    %c0_36 = arith.constant 0 : index
    %c0_37 = arith.constant 0 : index
    %74 = vector.load %arg2[%c10, %c0_35, %c0_36, %c0_37] : memref<27x1x1x128xf32, #tpu.memory_space<vmem>>, vector<1x1x1x128xf32>
    %75 = vector.shape_cast %74 : vector<1x1x1x128xf32> to vector<1x1x128xf32>
    %76 = vector.shape_cast %75 : vector<1x1x128xf32> to vector<1x1x1x128xf32>
    %77 = vector.broadcast %76 : vector<1x1x1x128xf32> to vector<2x2x2x128xf32>
    %78 = arith.mulf %73, %77 : vector<2x2x2x128xf32>
    %79 = arith.addf %72, %78 : vector<2x2x2x128xf32>
    %80 = vector.extract_strided_slice %1 {offsets = [1, 0, 2, 0], sizes = [2, 2, 2, 128], strides = [1, 1, 1, 1]} : vector<4x4x4x128xf32> to vector<2x2x2x128xf32>
    %c11 = arith.constant 11 : index
    %c0_38 = arith.constant 0 : index
    %c0_39 = arith.constant 0 : index
    %c0_40 = arith.constant 0 : index
    %81 = vector.load %arg2[%c11, %c0_38, %c0_39, %c0_40] : memref<27x1x1x128xf32, #tpu.memory_space<vmem>>, vector<1x1x1x128xf32>
    %82 = vector.shape_cast %81 : vector<1x1x1x128xf32> to vector<1x1x128xf32>
    %83 = vector.shape_cast %82 : vector<1x1x128xf32> to vector<1x1x1x128xf32>
    %84 = vector.broadcast %83 : vector<1x1x1x128xf32> to vector<2x2x2x128xf32>
    %85 = arith.mulf %80, %84 : vector<2x2x2x128xf32>
    %86 = arith.addf %79, %85 : vector<2x2x2x128xf32>
    %87 = vector.extract_strided_slice %1 {offsets = [1, 1, 0, 0], sizes = [2, 2, 2, 128], strides = [1, 1, 1, 1]} : vector<4x4x4x128xf32> to vector<2x2x2x128xf32>
    %c12 = arith.constant 12 : index
    %c0_41 = arith.constant 0 : index
    %c0_42 = arith.constant 0 : index
    %c0_43 = arith.constant 0 : index
    %88 = vector.load %arg2[%c12, %c0_41, %c0_42, %c0_43] : memref<27x1x1x128xf32, #tpu.memory_space<vmem>>, vector<1x1x1x128xf32>
    %89 = vector.shape_cast %88 : vector<1x1x1x128xf32> to vector<1x1x128xf32>
    %90 = vector.shape_cast %89 : vector<1x1x128xf32> to vector<1x1x1x128xf32>
    %91 = vector.broadcast %90 : vector<1x1x1x128xf32> to vector<2x2x2x128xf32>
    %92 = arith.mulf %87, %91 : vector<2x2x2x128xf32>
    %93 = arith.addf %86, %92 : vector<2x2x2x128xf32>
    %94 = vector.extract_strided_slice %1 {offsets = [1, 1, 1, 0], sizes = [2, 2, 2, 128], strides = [1, 1, 1, 1]} : vector<4x4x4x128xf32> to vector<2x2x2x128xf32>
    %c13 = arith.constant 13 : index
    %c0_44 = arith.constant 0 : index
    %c0_45 = arith.constant 0 : index
    %c0_46 = arith.constant 0 : index
    %95 = vector.load %arg2[%c13, %c0_44, %c0_45, %c0_46] : memref<27x1x1x128xf32, #tpu.memory_space<vmem>>, vector<1x1x1x128xf32>
    %96 = vector.shape_cast %95 : vector<1x1x1x128xf32> to vector<1x1x128xf32>
    %97 = vector.shape_cast %96 : vector<1x1x128xf32> to vector<1x1x1x128xf32>
    %98 = vector.broadcast %97 : vector<1x1x1x128xf32> to vector<2x2x2x128xf32>
    %99 = arith.mulf %94, %98 : vector<2x2x2x128xf32>
    %100 = arith.addf %93, %99 : vector<2x2x2x128xf32>
    %101 = vector.extract_strided_slice %1 {offsets = [1, 1, 2, 0], sizes = [2, 2, 2, 128], strides = [1, 1, 1, 1]} : vector<4x4x4x128xf32> to vector<2x2x2x128xf32>
    %c14 = arith.constant 14 : index
    %c0_47 = arith.constant 0 : index
    %c0_48 = arith.constant 0 : index
    %c0_49 = arith.constant 0 : index
    %102 = vector.load %arg2[%c14, %c0_47, %c0_48, %c0_49] : memref<27x1x1x128xf32, #tpu.memory_space<vmem>>, vector<1x1x1x128xf32>
    %103 = vector.shape_cast %102 : vector<1x1x1x128xf32> to vector<1x1x128xf32>
    %104 = vector.shape_cast %103 : vector<1x1x128xf32> to vector<1x1x1x128xf32>
    %105 = vector.broadcast %104 : vector<1x1x1x128xf32> to vector<2x2x2x128xf32>
    %106 = arith.mulf %101, %105 : vector<2x2x2x128xf32>
    %107 = arith.addf %100, %106 : vector<2x2x2x128xf32>
    %108 = vector.extract_strided_slice %1 {offsets = [1, 2, 0, 0], sizes = [2, 2, 2, 128], strides = [1, 1, 1, 1]} : vector<4x4x4x128xf32> to vector<2x2x2x128xf32>
    %c15 = arith.constant 15 : index
    %c0_50 = arith.constant 0 : index
    %c0_51 = arith.constant 0 : index
    %c0_52 = arith.constant 0 : index
    %109 = vector.load %arg2[%c15, %c0_50, %c0_51, %c0_52] : memref<27x1x1x128xf32, #tpu.memory_space<vmem>>, vector<1x1x1x128xf32>
    %110 = vector.shape_cast %109 : vector<1x1x1x128xf32> to vector<1x1x128xf32>
    %111 = vector.shape_cast %110 : vector<1x1x128xf32> to vector<1x1x1x128xf32>
    %112 = vector.broadcast %111 : vector<1x1x1x128xf32> to vector<2x2x2x128xf32>
    %113 = arith.mulf %108, %112 : vector<2x2x2x128xf32>
    %114 = arith.addf %107, %113 : vector<2x2x2x128xf32>
    %115 = vector.extract_strided_slice %1 {offsets = [1, 2, 1, 0], sizes = [2, 2, 2, 128], strides = [1, 1, 1, 1]} : vector<4x4x4x128xf32> to vector<2x2x2x128xf32>
    %c16 = arith.constant 16 : index
    %c0_53 = arith.constant 0 : index
    %c0_54 = arith.constant 0 : index
    %c0_55 = arith.constant 0 : index
    %116 = vector.load %arg2[%c16, %c0_53, %c0_54, %c0_55] : memref<27x1x1x128xf32, #tpu.memory_space<vmem>>, vector<1x1x1x128xf32>
    %117 = vector.shape_cast %116 : vector<1x1x1x128xf32> to vector<1x1x128xf32>
    %118 = vector.shape_cast %117 : vector<1x1x128xf32> to vector<1x1x1x128xf32>
    %119 = vector.broadcast %118 : vector<1x1x1x128xf32> to vector<2x2x2x128xf32>
    %120 = arith.mulf %115, %119 : vector<2x2x2x128xf32>
    %121 = arith.addf %114, %120 : vector<2x2x2x128xf32>
    %122 = vector.extract_strided_slice %1 {offsets = [1, 2, 2, 0], sizes = [2, 2, 2, 128], strides = [1, 1, 1, 1]} : vector<4x4x4x128xf32> to vector<2x2x2x128xf32>
    %c17 = arith.constant 17 : index
    %c0_56 = arith.constant 0 : index
    %c0_57 = arith.constant 0 : index
    %c0_58 = arith.constant 0 : index
    %123 = vector.load %arg2[%c17, %c0_56, %c0_57, %c0_58] : memref<27x1x1x128xf32, #tpu.memory_space<vmem>>, vector<1x1x1x128xf32>
    %124 = vector.shape_cast %123 : vector<1x1x1x128xf32> to vector<1x1x128xf32>
    %125 = vector.shape_cast %124 : vector<1x1x128xf32> to vector<1x1x1x128xf32>
    %126 = vector.broadcast %125 : vector<1x1x1x128xf32> to vector<2x2x2x128xf32>
    %127 = arith.mulf %122, %126 : vector<2x2x2x128xf32>
    %128 = arith.addf %121, %127 : vector<2x2x2x128xf32>
    %129 = vector.extract_strided_slice %1 {offsets = [2, 0, 0, 0], sizes = [2, 2, 2, 128], strides = [1, 1, 1, 1]} : vector<4x4x4x128xf32> to vector<2x2x2x128xf32>
    %c18 = arith.constant 18 : index
    %c0_59 = arith.constant 0 : index
    %c0_60 = arith.constant 0 : index
    %c0_61 = arith.constant 0 : index
    %130 = vector.load %arg2[%c18, %c0_59, %c0_60, %c0_61] : memref<27x1x1x128xf32, #tpu.memory_space<vmem>>, vector<1x1x1x128xf32>
    %131 = vector.shape_cast %130 : vector<1x1x1x128xf32> to vector<1x1x128xf32>
    %132 = vector.shape_cast %131 : vector<1x1x128xf32> to vector<1x1x1x128xf32>
    %133 = vector.broadcast %132 : vector<1x1x1x128xf32> to vector<2x2x2x128xf32>
    %134 = arith.mulf %129, %133 : vector<2x2x2x128xf32>
    %135 = arith.addf %128, %134 : vector<2x2x2x128xf32>
    %136 = vector.extract_strided_slice %1 {offsets = [2, 0, 1, 0], sizes = [2, 2, 2, 128], strides = [1, 1, 1, 1]} : vector<4x4x4x128xf32> to vector<2x2x2x128xf32>
    %c19 = arith.constant 19 : index
    %c0_62 = arith.constant 0 : index
    %c0_63 = arith.constant 0 : index
    %c0_64 = arith.constant 0 : index
    %137 = vector.load %arg2[%c19, %c0_62, %c0_63, %c0_64] : memref<27x1x1x128xf32, #tpu.memory_space<vmem>>, vector<1x1x1x128xf32>
    %138 = vector.shape_cast %137 : vector<1x1x1x128xf32> to vector<1x1x128xf32>
    %139 = vector.shape_cast %138 : vector<1x1x128xf32> to vector<1x1x1x128xf32>
    %140 = vector.broadcast %139 : vector<1x1x1x128xf32> to vector<2x2x2x128xf32>
    %141 = arith.mulf %136, %140 : vector<2x2x2x128xf32>
    %142 = arith.addf %135, %141 : vector<2x2x2x128xf32>
    %143 = vector.extract_strided_slice %1 {offsets = [2, 0, 2, 0], sizes = [2, 2, 2, 128], strides = [1, 1, 1, 1]} : vector<4x4x4x128xf32> to vector<2x2x2x128xf32>
    %c20 = arith.constant 20 : index
    %c0_65 = arith.constant 0 : index
    %c0_66 = arith.constant 0 : index
    %c0_67 = arith.constant 0 : index
    %144 = vector.load %arg2[%c20, %c0_65, %c0_66, %c0_67] : memref<27x1x1x128xf32, #tpu.memory_space<vmem>>, vector<1x1x1x128xf32>
    %145 = vector.shape_cast %144 : vector<1x1x1x128xf32> to vector<1x1x128xf32>
    %146 = vector.shape_cast %145 : vector<1x1x128xf32> to vector<1x1x1x128xf32>
    %147 = vector.broadcast %146 : vector<1x1x1x128xf32> to vector<2x2x2x128xf32>
    %148 = arith.mulf %143, %147 : vector<2x2x2x128xf32>
    %149 = arith.addf %142, %148 : vector<2x2x2x128xf32>
    %150 = vector.extract_strided_slice %1 {offsets = [2, 1, 0, 0], sizes = [2, 2, 2, 128], strides = [1, 1, 1, 1]} : vector<4x4x4x128xf32> to vector<2x2x2x128xf32>
    %c21 = arith.constant 21 : index
    %c0_68 = arith.constant 0 : index
    %c0_69 = arith.constant 0 : index
    %c0_70 = arith.constant 0 : index
    %151 = vector.load %arg2[%c21, %c0_68, %c0_69, %c0_70] : memref<27x1x1x128xf32, #tpu.memory_space<vmem>>, vector<1x1x1x128xf32>
    %152 = vector.shape_cast %151 : vector<1x1x1x128xf32> to vector<1x1x128xf32>
    %153 = vector.shape_cast %152 : vector<1x1x128xf32> to vector<1x1x1x128xf32>
    %154 = vector.broadcast %153 : vector<1x1x1x128xf32> to vector<2x2x2x128xf32>
    %155 = arith.mulf %150, %154 : vector<2x2x2x128xf32>
    %156 = arith.addf %149, %155 : vector<2x2x2x128xf32>
    %157 = vector.extract_strided_slice %1 {offsets = [2, 1, 1, 0], sizes = [2, 2, 2, 128], strides = [1, 1, 1, 1]} : vector<4x4x4x128xf32> to vector<2x2x2x128xf32>
    %c22 = arith.constant 22 : index
    %c0_71 = arith.constant 0 : index
    %c0_72 = arith.constant 0 : index
    %c0_73 = arith.constant 0 : index
    %158 = vector.load %arg2[%c22, %c0_71, %c0_72, %c0_73] : memref<27x1x1x128xf32, #tpu.memory_space<vmem>>, vector<1x1x1x128xf32>
    %159 = vector.shape_cast %158 : vector<1x1x1x128xf32> to vector<1x1x128xf32>
    %160 = vector.shape_cast %159 : vector<1x1x128xf32> to vector<1x1x1x128xf32>
    %161 = vector.broadcast %160 : vector<1x1x1x128xf32> to vector<2x2x2x128xf32>
    %162 = arith.mulf %157, %161 : vector<2x2x2x128xf32>
    %163 = arith.addf %156, %162 : vector<2x2x2x128xf32>
    %164 = vector.extract_strided_slice %1 {offsets = [2, 1, 2, 0], sizes = [2, 2, 2, 128], strides = [1, 1, 1, 1]} : vector<4x4x4x128xf32> to vector<2x2x2x128xf32>
    %c23 = arith.constant 23 : index
    %c0_74 = arith.constant 0 : index
    %c0_75 = arith.constant 0 : index
    %c0_76 = arith.constant 0 : index
    %165 = vector.load %arg2[%c23, %c0_74, %c0_75, %c0_76] : memref<27x1x1x128xf32, #tpu.memory_space<vmem>>, vector<1x1x1x128xf32>
    %166 = vector.shape_cast %165 : vector<1x1x1x128xf32> to vector<1x1x128xf32>
    %167 = vector.shape_cast %166 : vector<1x1x128xf32> to vector<1x1x1x128xf32>
    %168 = vector.broadcast %167 : vector<1x1x1x128xf32> to vector<2x2x2x128xf32>
    %169 = arith.mulf %164, %168 : vector<2x2x2x128xf32>
    %170 = arith.addf %163, %169 : vector<2x2x2x128xf32>
    %171 = vector.extract_strided_slice %1 {offsets = [2, 2, 0, 0], sizes = [2, 2, 2, 128], strides = [1, 1, 1, 1]} : vector<4x4x4x128xf32> to vector<2x2x2x128xf32>
    %c24 = arith.constant 24 : index
    %c0_77 = arith.constant 0 : index
    %c0_78 = arith.constant 0 : index
    %c0_79 = arith.constant 0 : index
    %172 = vector.load %arg2[%c24, %c0_77, %c0_78, %c0_79] : memref<27x1x1x128xf32, #tpu.memory_space<vmem>>, vector<1x1x1x128xf32>
    %173 = vector.shape_cast %172 : vector<1x1x1x128xf32> to vector<1x1x128xf32>
    %174 = vector.shape_cast %173 : vector<1x1x128xf32> to vector<1x1x1x128xf32>
    %175 = vector.broadcast %174 : vector<1x1x1x128xf32> to vector<2x2x2x128xf32>
    %176 = arith.mulf %171, %175 : vector<2x2x2x128xf32>
    %177 = arith.addf %170, %176 : vector<2x2x2x128xf32>
    %178 = vector.extract_strided_slice %1 {offsets = [2, 2, 1, 0], sizes = [2, 2, 2, 128], strides = [1, 1, 1, 1]} : vector<4x4x4x128xf32> to vector<2x2x2x128xf32>
    %c25 = arith.constant 25 : index
    %c0_80 = arith.constant 0 : index
    %c0_81 = arith.constant 0 : index
    %c0_82 = arith.constant 0 : index
    %179 = vector.load %arg2[%c25, %c0_80, %c0_81, %c0_82] : memref<27x1x1x128xf32, #tpu.memory_space<vmem>>, vector<1x1x1x128xf32>
    %180 = vector.shape_cast %179 : vector<1x1x1x128xf32> to vector<1x1x128xf32>
    %181 = vector.shape_cast %180 : vector<1x1x128xf32> to vector<1x1x1x128xf32>
    %182 = vector.broadcast %181 : vector<1x1x1x128xf32> to vector<2x2x2x128xf32>
    %183 = arith.mulf %178, %182 : vector<2x2x2x128xf32>
    %184 = arith.addf %177, %183 : vector<2x2x2x128xf32>
    %185 = vector.extract_strided_slice %1 {offsets = [2, 2, 2, 0], sizes = [2, 2, 2, 128], strides = [1, 1, 1, 1]} : vector<4x4x4x128xf32> to vector<2x2x2x128xf32>
    %c26 = arith.constant 26 : index
    %c0_83 = arith.constant 0 : index
    %c0_84 = arith.constant 0 : index
    %c0_85 = arith.constant 0 : index
    %186 = vector.load %arg2[%c26, %c0_83, %c0_84, %c0_85] : memref<27x1x1x128xf32, #tpu.memory_space<vmem>>, vector<1x1x1x128xf32>
    %187 = vector.shape_cast %186 : vector<1x1x1x128xf32> to vector<1x1x128xf32>
    %188 = vector.shape_cast %187 : vector<1x1x128xf32> to vector<1x1x1x128xf32>
    %189 = vector.broadcast %188 : vector<1x1x1x128xf32> to vector<2x2x2x128xf32>
    %190 = arith.mulf %185, %189 : vector<2x2x2x128xf32>
    %191 = arith.addf %184, %190 : vector<2x2x2x128xf32>
    %c0_86 = arith.constant 0 : index
    %c0_87 = arith.constant 0 : index
    %c0_88 = arith.constant 0 : index
    %c0_89 = arith.constant 0 : index
    %192 = vector.load %arg3[%c0_86, %c0_87, %c0_88, %c0_89] : memref<1x1x1x128xf32, #tpu.memory_space<vmem>>, vector<1x1x1x128xf32>
    %193 = vector.shape_cast %192 : vector<1x1x1x128xf32> to vector<1x1x128xf32>
    %194 = vector.shape_cast %193 : vector<1x1x128xf32> to vector<1x1x1x128xf32>
    %195 = vector.broadcast %194 : vector<1x1x1x128xf32> to vector<2x2x2x128xf32>
    %196 = arith.mulf %191, %195 : vector<2x2x2x128xf32>
    %c0_90 = arith.constant 0 : index
    %c0_91 = arith.constant 0 : index
    %c0_92 = arith.constant 0 : index
    %c0_93 = arith.constant 0 : index
    %197 = vector.load %arg4[%c0_90, %c0_91, %c0_92, %c0_93] : memref<1x1x1x128xf32, #tpu.memory_space<vmem>>, vector<1x1x1x128xf32>
    %198 = vector.shape_cast %197 : vector<1x1x1x128xf32> to vector<1x1x128xf32>
    %199 = vector.shape_cast %198 : vector<1x1x128xf32> to vector<1x1x1x128xf32>
    %200 = vector.broadcast %199 : vector<1x1x1x128xf32> to vector<2x2x2x128xf32>
    %201 = arith.addf %196, %200 : vector<2x2x2x128xf32>
    %cst_94 = arith.constant 5.000000e-01 : f32
    %202 = vector.broadcast %cst_94 : f32 to vector<2x2x2x128xf32>
    %203 = arith.mulf %202, %201 : vector<2x2x2x128xf32>
    %cst_95 = arith.constant 4.471500e-02 : f32
    %204 = vector.broadcast %cst_95 : f32 to vector<2x2x2x128xf32>
    %205 = arith.mulf %204, %201 : vector<2x2x2x128xf32>
    %206 = arith.mulf %205, %201 : vector<2x2x2x128xf32>
    %207 = arith.mulf %206, %201 : vector<2x2x2x128xf32>
    %208 = arith.addf %201, %207 : vector<2x2x2x128xf32>
    %cst_96 = arith.constant 0.797884583 : f32
    %209 = vector.broadcast %cst_96 : f32 to vector<2x2x2x128xf32>
    %210 = arith.mulf %209, %208 : vector<2x2x2x128xf32>
    %211 = math.tanh %210 : vector<2x2x2x128xf32>
    %cst_97 = arith.constant 1.000000e+00 : f32
    %212 = vector.broadcast %cst_97 : f32 to vector<2x2x2x128xf32>
    %213 = arith.addf %212, %211 : vector<2x2x2x128xf32>
    %214 = arith.mulf %203, %213 : vector<2x2x2x128xf32>
    %c0_98 = arith.constant 0 : index
    %c0_99 = arith.constant 0 : index
    %c0_100 = arith.constant 0 : index
    %c0_101 = arith.constant 0 : index
    %c0_102 = arith.constant 0 : index
    %215 = vector.load %arg5[%c0_98, %c0_99, %c0_100, %c0_101, %c0_102] : memref<1x2x2x2x128xf32, #tpu.memory_space<vmem>>, vector<1x2x2x2x128xf32>
    %216 = vector.shape_cast %215 : vector<1x2x2x2x128xf32> to vector<2x2x2x128xf32>
    %217 = vector.shape_cast %214 : vector<2x2x2x128xf32> to vector<1x2x2x2x128xf32>
    tpu.vector_store %arg5[%c0_98, %c0_99, %c0_100, %c0_101, %c0_102], %217 {strides = array<i32>} : memref<1x2x2x2x128xf32, #tpu.memory_space<vmem>>, vector<1x2x2x2x128xf32>,
    return
  }
  func.func @transform_0(%arg0: i32) -> (i32, i32, i32, i32, i32) {
    %c0_i32 = arith.constant 0 : i32
    %c0_i32_0 = arith.constant 0 : i32
    %c0_i32_1 = arith.constant 0 : i32
    %c0_i32_2 = arith.constant 0 : i32
    %c0_i32_3 = arith.constant 0 : i32
    return %arg0, %c0_i32, %c0_i32_0, %c0_i32_1, %c0_i32_2 : i32, i32, i32, i32, i32
  }
  func.func @transform_1(%arg0: i32) -> (i32, i32, i32, i32) {
    %c0_i32 = arith.constant 0 : i32
    %c0_i32_0 = arith.constant 0 : i32
    %c0_i32_1 = arith.constant 0 : i32
    %c0_i32_2 = arith.constant 0 : i32
    %c0_i32_3 = arith.constant 0 : i32
    return %c0_i32, %c0_i32_0, %c0_i32_1, %c0_i32_2 : i32, i32, i32, i32
  }
  func.func @transform_2(%arg0: i32) -> (i32, i32, i32, i32) {
    %c0_i32 = arith.constant 0 : i32
    %c0_i32_0 = arith.constant 0 : i32
    %c0_i32_1 = arith.constant 0 : i32
    %c0_i32_2 = arith.constant 0 : i32
    %c0_i32_3 = arith.constant 0 : i32
    return %c0_i32, %c0_i32_0, %c0_i32_1, %c0_i32_2 : i32, i32, i32, i32
  }
  func.func @transform_3(%arg0: i32) -> (i32, i32, i32, i32) {
    %c0_i32 = arith.constant 0 : i32
    %c0_i32_0 = arith.constant 0 : i32
    %c0_i32_1 = arith.constant 0 : i32
    %c0_i32_2 = arith.constant 0 : i32
    %c0_i32_3 = arith.constant 0 : i32
    return %c0_i32, %c0_i32_0, %c0_i32_1, %c0_i32_2 : i32, i32, i32, i32
  }
  func.func @transform_4(%arg0: i32) -> (i32, i32, i32, i32, i32) {
    %c0_i32 = arith.constant 0 : i32
    %c0_i32_0 = arith.constant 0 : i32
    %c0_i32_1 = arith.constant 0 : i32
    %c0_i32_2 = arith.constant 0 : i32
    %c0_i32_3 = arith.constant 0 : i32
    return %arg0, %c0_i32, %c0_i32_0, %c0_i32_1, %c0_i32_2 : i32, i32, i32, i32, i32
  }
}

</mosaic_0001>

<llo_original>
// kernel: transformer_block.7
$region0: #{transformer_block.7}
  #allocation0 [shape = 'u32[]', space=smem, size = 0x4, offset = 0x4, fixed_abs, tag = 'smem constant byte address 0x4 - core index']
  #allocation1 [shape = 'u32[144,128]{1,0:T(1,128)}', space=vmem, size = 0x12000, scoped, tag = 'internal scratch']
  %s0 = inlined_call_operand.vmem [shape: f32[16,128], index: 0, kind: input, shape index: {}]
  %s1 = inlined_call_operand.vmem [shape: f32[1,128], index: 1, kind: input, shape index: {}]
  %s2 = inlined_call_operand.vmem [shape: f32[1,128], index: 2, kind: input, shape index: {}]
  %s3 = inlined_call_operand.vmem [shape: f32[128,128], index: 3, kind: input, shape index: {}]
  %s4 = inlined_call_operand.vmem [shape: f32[16,128], index: 4, kind: output, shape index: {0}]
  %s5 = inlined_call_operand.vmem [shape: f32[16,128], index: 5, kind: output, shape index: {1}]
  %6 = xla_tuple %s4, %s5
  %s7 = sld [smem:[#allocation0]]
  $region34: #{transformer_block.7} parent=0
    _
  %s9 = ssub.s32 1, %s7
  %s10 = scalar_select 0, %s9, %s7
  // Predicated region
  $region2: #{transformer_block.7} parent=0 // pred_check
    _
  $region3: #{transformer_block.7} parent=0 // pred_check_branch
    %12 = sbr.rel (0) target = $region5
  $region4: #{transformer_block.7} parent=0 // pred_region
    _
  $region5: #{transformer_block.7} parent=0 // pred_fallthru
    _
  // Predicated region
  $region6: #{transformer_block.7} parent=0 // pred_check
    _
  $region7: #{transformer_block.7} parent=0 // pred_check_branch
    %14 = sbr.rel (0) target = $region9
  $region8: #{transformer_block.7} parent=0 // pred_region
    _
  $region9: #{transformer_block.7} parent=0 // pred_fallthru
    _
  // Predicated region
  $region10: #{transformer_block.7} parent=0 // pred_check
    _
  $region11: #{transformer_block.7} parent=0 // pred_check_branch
    %16 = sbr.rel (0) target = $region13
  $region12: #{transformer_block.7} parent=0 // pred_region
    _
  $region13: #{transformer_block.7} parent=0 // pred_fallthru
    _
  // Predicated region
  $region14: #{transformer_block.7} parent=0 // pred_check
    _
  $region15: #{transformer_block.7} parent=0 // pred_check_branch
    %18 = sbr.rel (0) target = $region17
  $region16: #{transformer_block.7} parent=0 // pred_region
    _
  $region17: #{transformer_block.7} parent=0 // pred_fallthru
    _
  %v19 = vld [vmem:[%s0] sm:$0xff]
  %v20 = vld [vmem:[%s0 + $0x8] sm:$0xff]
  %v21 = vld [vmem:[%s1] sm:$0x1]
  %v22 = vld [vmem:[%s2] sm:$0x1]
  %23 = vadd.xlane.f32.xlu0 %v19
  %v24 = vpop.xlane.xlu0 %23
  %25 = vadd.xlane.f32.xlu0 %v20
  %v26 = vpop.xlane.xlu0 %25
  %v27 = vmul.f32 %v24, 0.03125
  %v28 = vmul.f32 %v26, 0.03125
  %v29 = vmul.f32 %v19, %v19
  %v30 = vmul.f32 %v20, %v20
  %31 = vadd.xlane.f32.xlu0 %v29
  %v32 = vpop.xlane.xlu0 %31
  %33 = vadd.xlane.f32.xlu0 %v30
  %v34 = vpop.xlane.xlu0 %33
  %v35 = vmul.f32 %v32, 0.03125
  %v36 = vmul.f32 %v34, 0.03125
  %v37 = vmul.f32 %v27, %v27
  %v38 = vmul.f32 %v28, %v28
  %v39 = vsub.f32 %v35, %v37
  %v40 = vsub.f32 %v36, %v38
  %v41 = vsub.f32 %v19, %v27
  %v42 = vsub.f32 %v20, %v28
  %v43 = vadd.f32 %v39, 1e-05
  %v44 = vadd.f32 %v40, 1e-05
  %v45 = vrsqrt.pop %v43
  %v46 = vrsqrt.pop %v44
  %v47 = vmul.f32 %v41, %v45
  %v48 = vmul.f32 %v42, %v46
  %v50 = vlaneseq
  %v51 = vshrl.u32 %v50, 7
  %v52 = vsub.s32 0, %v51
  %v53 = vrot.slane %v21, %v52
  %v55 = vmul.f32 %v47, %v53
  %v56 = vmul.f32 %v48, %v53
  %v58 = vlaneseq
  %v59 = vshrl.u32 %v58, 7
  %v60 = vsub.s32 0, %v59
  %v61 = vrot.slane %v22, %v60
  %v63 = vadd.f32 %v55, %v61
  %v64 = vadd.f32 %v56, %v61
  %65 = vst [vmem:[%s4] sm:$0xff] %v63
  %66 = vst [vmem:[%s4 + $0x8] sm:$0xff] %v64
  %v67 = vld [vmem:[%s3] sm:$0xff]
  %v68 = vld [vmem:[%s3 + $0x8] sm:$0xff]
  %v69 = vld [vmem:[%s3 + $0x10] sm:$0xff]
  %v70 = vld [vmem:[%s3 + $0x18] sm:$0xff]
  %v71 = vld [vmem:[%s3 + $0x20] sm:$0xff]
  %v72 = vld [vmem:[%s3 + $0x28] sm:$0xff]
  %v73 = vld [vmem:[%s3 + $0x30] sm:$0xff]
  %v74 = vld [vmem:[%s3 + $0x38] sm:$0xff]
  %v75 = vld [vmem:[%s3 + $0x40] sm:$0xff]
  %v76 = vld [vmem:[%s3 + $0x48] sm:$0xff]
  %v77 = vld [vmem:[%s3 + $0x50] sm:$0xff]
  %v78 = vld [vmem:[%s3 + $0x58] sm:$0xff]
  %v79 = vld [vmem:[%s3 + $0x60] sm:$0xff]
  %v80 = vld [vmem:[%s3 + $0x68] sm:$0xff]
  %v81 = vld [vmem:[%s3 + $0x70] sm:$0xff]
  %v82 = vld [vmem:[%s3 + $0x78] sm:$0xff]
  %83 = vmatprep.subr.mxu0 0.0
  %84 = vmatpush1.msra.mxu0 %v67
  %85 = vmatprep.subr.mxu0 0.0
  %86 = vmatpush1.msra.mxu0 %v68
  %87 = vmatprep.subr.mxu0 0.0
  %88 = vmatpush1.msra.mxu0 %v69
  %89 = vmatprep.subr.mxu0 0.0
  %90 = vmatpush1.msra.mxu0 %v70
  %91 = vmatprep.subr.mxu0 0.0
  %92 = vmatpush1.msra.mxu0 %v71
  %93 = vmatprep.subr.mxu0 0.0
  %94 = vmatpush1.msra.mxu0 %v72
  %95 = vmatprep.subr.mxu0 0.0
  %96 = vmatpush1.msra.mxu0 %v73
  %97 = vmatprep.subr.mxu0 0.0
  %98 = vmatpush1.msra.mxu0 %v74
  %99 = vmatprep.subr.mxu0 0.0
  %100 = vmatpush1.msra.mxu0 %v75
  %101 = vmatprep.subr.mxu0 0.0
  %102 = vmatpush1.msra.mxu0 %v76
  %103 = vmatprep.subr.mxu0 0.0
  %104 = vmatpush1.msra.mxu0 %v77
  %105 = vmatprep.subr.mxu0 0.0
  %106 = vmatpush1.msra.mxu0 %v78
  %107 = vmatprep.subr.mxu0 0.0
  %108 = vmatpush1.msra.mxu0 %v79
  %109 = vmatprep.subr.mxu0 0.0
  %110 = vmatpush1.msra.mxu0 %v80
  %111 = vmatprep.subr.mxu0 0.0
  %112 = vmatpush1.msra.mxu0 %v81
  %113 = vmatprep.subr.mxu0 0.0
  %114 = vmatpush1.msra.mxu0 %v82
  %115 = vmatprep.subr.mxu0 0.0
  %116 = vmatpush1.msra.mxu0 0.0
  %117 = vmatprep.subr.mxu0 0.0
  %118 = vmatpush1.msra.mxu0 0.0
  %119 = vmatprep.subr.mxu0 0.0
  %120 = vmatpush1.msra.mxu0 0.0
  %121 = vmatprep.subr.mxu0 0.0
  %122 = vmatpush1.msra.mxu0 0.0
  %123 = vmatprep.subr.mxu0 0.0
  %124 = vmatpush1.msra.mxu0 0.0
  %125 = vmatprep.subr.mxu0 0.0
  %126 = vmatpush1.msra.mxu0 0.0
  %127 = vmatprep.subr.mxu0 0.0
  %128 = vmatpush1.msra.mxu0 0.0
  %129 = vmatprep.subr.mxu0 0.0
  %130 = vmatpush1.msra.mxu0 0.0
  %131 = vmatprep.subr.mxu0 0.0
  %132 = vmatpush1.msra.mxu0 0.0
  %133 = vmatprep.subr.mxu0 0.0
  %134 = vmatpush1.msra.mxu0 0.0
  %135 = vmatprep.subr.mxu0 0.0
  %136 = vmatpush1.msra.mxu0 0.0
  %137 = vmatprep.subr.mxu0 0.0
  %138 = vmatpush1.msra.mxu0 0.0
  %139 = vmatprep.subr.mxu0 0.0
  %140 = vmatpush1.msra.mxu0 0.0
  %141 = vmatprep.subr.mxu0 0.0
  %142 = vmatpush1.msra.mxu0 0.0
  %143 = vmatprep.subr.mxu0 0.0
  %144 = vmatpush1.msra.mxu0 0.0
  %145 = vmatprep.subr.mxu0 0.0
  %146 = vmatpush1.msra.mxu0 0.0
  %147 = vmatprep.mubr.f32.mxu0 0.0
  %148 = vmatmul.mubr.f32.gmra.mrb[0].mxu0 %v63
  %v149 = vpop.f32.mrb[0].mxu0
  %v150 = vadd.f32 0.0, %v149
  %v151 = vpop.f32.mrb[0].mxu0
  %152 = vmatprep.mubr.f32.mxu0 0.0
  %153 = vmatmul.mubr.f32.gmra.mrb[0].mxu0 %v64
  %v154 = vpop.f32.mrb[0].mxu0
  %v155 = vadd.f32 0.0, %v154
  %v156 = vpop.f32.mrb[0].mxu0
  %157 = vdwg.mxu0
  %158 = vst [vmem:[%s5] sm:$0xff] %v150
  %159 = vst [vmem:[%s5 + $0x8] sm:$0xff] %v155
  // Predicated region
  $region18: #{transformer_block.7} parent=0 // pred_check
    _
  $region19: #{transformer_block.7} parent=0 // pred_check_branch
    %161 = sbr.rel (0) target = $region21
  $region20: #{transformer_block.7} parent=0 // pred_region
    _
  $region21: #{transformer_block.7} parent=0 // pred_fallthru
    _
  // Predicated region
  $region22: #{transformer_block.7} parent=0 // pred_check
    _
  $region23: #{transformer_block.7} parent=0 // pred_check_branch
    %163 = sbr.rel (0) target = $region25
  $region24: #{transformer_block.7} parent=0 // pred_region
    _
  $region25: #{transformer_block.7} parent=0 // pred_fallthru
    _
  // Predicated region
  $region26: #{transformer_block.7} parent=0 // pred_check
    _
  $region27: #{transformer_block.7} parent=0 // pred_check_branch
    %165 = sbr.rel (0) target = $region29
  $region28: #{transformer_block.7} parent=0 // pred_region
    _
  $region29: #{transformer_block.7} parent=0 // pred_fallthru
    _
  // Predicated region
  $region30: #{transformer_block.7} parent=0 // pred_check
    _
  $region31: #{transformer_block.7} parent=0 // pred_check_branch
    %167 = sbr.rel (0) target = $region33
  $region32: #{transformer_block.7} parent=0 // pred_region
    _
  $region33: #{transformer_block.7} parent=0 // pred_fallthru
    _

// kernel: transformer_block.8
$region0: #{transformer_block.8}
  #allocation0 [shape = 'u32[]', space=smem, size = 0x4, offset = 0x4, fixed_abs, tag = 'smem constant byte address 0x4 - core index']
  #allocation1 [shape = 'u32[144,128]{1,0:T(1,128)}', space=vmem, size = 0x12000, scoped, tag = 'internal scratch']
  %s0 = inlined_call_operand.vmem [shape: f32[8,256], index: 0, kind: input, shape index: {}]
  %s1 = inlined_call_operand.vmem [shape: f32[256,128], index: 1, kind: input, shape index: {}]
  %s2 = inlined_call_operand.vmem [shape: f32[1,128], index: 2, kind: input, shape index: {}]
  %s3 = inlined_call_operand.vmem [shape: f32[1,128], index: 3, kind: input, shape index: {}]
  %s4 = inlined_call_operand.vmem [shape: f32[1,128], index: 4, kind: input, shape index: {}]
  %s5 = inlined_call_operand.vmem [shape: f32[128,128], index: 5, kind: input, shape index: {}]
  %s6 = inlined_call_operand.vmem [shape: f32[8,128], index: 6, kind: output, shape index: {}]
  %s7 = sld [smem:[#allocation0]]
  $region34: #{transformer_block.8} parent=0
    _
  %s9 = ssub.s32 1, %s7
  %s10 = scalar_select 0, %s9, %s7
  // Predicated region
  $region2: #{transformer_block.8} parent=0 // pred_check
    _
  $region3: #{transformer_block.8} parent=0 // pred_check_branch
    %12 = sbr.rel (0) target = $region5
  $region4: #{transformer_block.8} parent=0 // pred_region
    _
  $region5: #{transformer_block.8} parent=0 // pred_fallthru
    _
  // Predicated region
  $region6: #{transformer_block.8} parent=0 // pred_check
    _
  $region7: #{transformer_block.8} parent=0 // pred_check_branch
    %14 = sbr.rel (0) target = $region9
  $region8: #{transformer_block.8} parent=0 // pred_region
    _
  $region9: #{transformer_block.8} parent=0 // pred_fallthru
    _
  // Predicated region
  $region10: #{transformer_block.8} parent=0 // pred_check
    _
  $region11: #{transformer_block.8} parent=0 // pred_check_branch
    %16 = sbr.rel (0) target = $region13
  $region12: #{transformer_block.8} parent=0 // pred_region
    _
  $region13: #{transformer_block.8} parent=0 // pred_fallthru
    _
  // Predicated region
  $region14: #{transformer_block.8} parent=0 // pred_check
    _
  $region15: #{transformer_block.8} parent=0 // pred_check_branch
    %18 = sbr.rel (0) target = $region17
  $region16: #{transformer_block.8} parent=0 // pred_region
    _
  $region17: #{transformer_block.8} parent=0 // pred_fallthru
    _
  // Predicated region
  $region18: #{transformer_block.8} parent=0 // pred_check
    _
  $region19: #{transformer_block.8} parent=0 // pred_check_branch
    %20 = sbr.rel (0) target = $region21
  $region20: #{transformer_block.8} parent=0 // pred_region
    _
  $region21: #{transformer_block.8} parent=0 // pred_fallthru
    _
  // Predicated region
  $region22: #{transformer_block.8} parent=0 // pred_check
    _
  $region23: #{transformer_block.8} parent=0 // pred_check_branch
    %22 = sbr.rel (0) target = $region25
  $region24: #{transformer_block.8} parent=0 // pred_region
    _
  $region25: #{transformer_block.8} parent=0 // pred_fallthru
    _
  %v23 = vld [vmem:[%s0] sm:$0xff]
  %v24 = vld [vmem:[%s0 + $0x8] sm:$0xff]
  %v25 = vld [vmem:[%s1] sm:$0xff]
  %v26 = vld [vmem:[%s1 + $0x8] sm:$0xff]
  %v27 = vld [vmem:[%s1 + $0x10] sm:$0xff]
  %v28 = vld [vmem:[%s1 + $0x18] sm:$0xff]
  %v29 = vld [vmem:[%s1 + $0x20] sm:$0xff]
  %v30 = vld [vmem:[%s1 + $0x28] sm:$0xff]
  %v31 = vld [vmem:[%s1 + $0x30] sm:$0xff]
  %v32 = vld [vmem:[%s1 + $0x38] sm:$0xff]
  %v33 = vld [vmem:[%s1 + $0x40] sm:$0xff]
  %v34 = vld [vmem:[%s1 + $0x48] sm:$0xff]
  %v35 = vld [vmem:[%s1 + $0x50] sm:$0xff]
  %v36 = vld [vmem:[%s1 + $0x58] sm:$0xff]
  %v37 = vld [vmem:[%s1 + $0x60] sm:$0xff]
  %v38 = vld [vmem:[%s1 + $0x68] sm:$0xff]
  %v39 = vld [vmem:[%s1 + $0x70] sm:$0xff]
  %v40 = vld [vmem:[%s1 + $0x78] sm:$0xff]
  %v41 = vld [vmem:[%s1 + $0x80] sm:$0xff]
  %v42 = vld [vmem:[%s1 + $0x88] sm:$0xff]
  %v43 = vld [vmem:[%s1 + $0x90] sm:$0xff]
  %v44 = vld [vmem:[%s1 + $0x98] sm:$0xff]
  %v45 = vld [vmem:[%s1 + $0xa0] sm:$0xff]
  %v46 = vld [vmem:[%s1 + $0xa8] sm:$0xff]
  %v47 = vld [vmem:[%s1 + $0xb0] sm:$0xff]
  %v48 = vld [vmem:[%s1 + $0xb8] sm:$0xff]
  %v49 = vld [vmem:[%s1 + $0xc0] sm:$0xff]
  %v50 = vld [vmem:[%s1 + $0xc8] sm:$0xff]
  %v51 = vld [vmem:[%s1 + $0xd0] sm:$0xff]
  %v52 = vld [vmem:[%s1 + $0xd8] sm:$0xff]
  %v53 = vld [vmem:[%s1 + $0xe0] sm:$0xff]
  %v54 = vld [vmem:[%s1 + $0xe8] sm:$0xff]
  %v55 = vld [vmem:[%s1 + $0xf0] sm:$0xff]
  %v56 = vld [vmem:[%s1 + $0xf8] sm:$0xff]
  %v57 = vld [vmem:[%s2] sm:$0x1]
  %v59 = vlaneseq
  %v60 = vshrl.u32 %v59, 7
  %v61 = vsub.s32 0, %v60
  %v62 = vrot.slane %v57, %v61
  %64 = vmatprep.subr.mxu0 0.0
  %65 = vmatpush1.msra.mxu0 %v25
  %66 = vmatprep.subr.mxu0 0.0
  %67 = vmatpush1.msra.mxu0 %v26
  %68 = vmatprep.subr.mxu0 0.0
  %69 = vmatpush1.msra.mxu0 %v27
  %70 = vmatprep.subr.mxu0 0.0
  %71 = vmatpush1.msra.mxu0 %v28
  %72 = vmatprep.subr.mxu0 0.0
  %73 = vmatpush1.msra.mxu0 %v29
  %74 = vmatprep.subr.mxu0 0.0
  %75 = vmatpush1.msra.mxu0 %v30
  %76 = vmatprep.subr.mxu0 0.0
  %77 = vmatpush1.msra.mxu0 %v31
  %78 = vmatprep.subr.mxu0 0.0
  %79 = vmatpush1.msra.mxu0 %v32
  %80 = vmatprep.subr.mxu0 0.0
  %81 = vmatpush1.msra.mxu0 %v33
  %82 = vmatprep.subr.mxu0 0.0
  %83 = vmatpush1.msra.mxu0 %v34
  %84 = vmatprep.subr.mxu0 0.0
  %85 = vmatpush1.msra.mxu0 %v35
  %86 = vmatprep.subr.mxu0 0.0
  %87 = vmatpush1.msra.mxu0 %v36
  %88 = vmatprep.subr.mxu0 0.0
  %89 = vmatpush1.msra.mxu0 %v37
  %90 = vmatprep.subr.mxu0 0.0
  %91 = vmatpush1.msra.mxu0 %v38
  %92 = vmatprep.subr.mxu0 0.0
  %93 = vmatpush1.msra.mxu0 %v39
  %94 = vmatprep.subr.mxu0 0.0
  %95 = vmatpush1.msra.mxu0 %v40
  %96 = vmatprep.subr.mxu0 0.0
  %97 = vmatpush1.msra.mxu0 %v41
  %98 = vmatprep.subr.mxu0 0.0
  %99 = vmatpush1.msra.mxu0 %v42
  %100 = vmatprep.subr.mxu0 0.0
  %101 = vmatpush1.msra.mxu0 %v43
  %102 = vmatprep.subr.mxu0 0.0
  %103 = vmatpush1.msra.mxu0 %v44
  %104 = vmatprep.subr.mxu0 0.0
  %105 = vmatpush1.msra.mxu0 %v45
  %106 = vmatprep.subr.mxu0 0.0
  %107 = vmatpush1.msra.mxu0 %v46
  %108 = vmatprep.subr.mxu0 0.0
  %109 = vmatpush1.msra.mxu0 %v47
  %110 = vmatprep.subr.mxu0 0.0
  %111 = vmatpush1.msra.mxu0 %v48
  %112 = vmatprep.subr.mxu0 0.0
  %113 = vmatpush1.msra.mxu0 %v49
  %114 = vmatprep.subr.mxu0 0.0
  %115 = vmatpush1.msra.mxu0 %v50
  %116 = vmatprep.subr.mxu0 0.0
  %117 = vmatpush1.msra.mxu0 %v51
  %118 = vmatprep.subr.mxu0 0.0
  %119 = vmatpush1.msra.mxu0 %v52
  %120 = vmatprep.subr.mxu0 0.0
  %121 = vmatpush1.msra.mxu0 %v53
  %122 = vmatprep.subr.mxu0 0.0
  %123 = vmatpush1.msra.mxu0 %v54
  %124 = vmatprep.subr.mxu0 0.0
  %125 = vmatpush1.msra.mxu0 %v55
  %126 = vmatprep.subr.mxu0 0.0
  %127 = vmatpush1.msra.mxu0 %v56
  %128 = vmatprep.mubr.f32.mxu0 %v24
  %129 = vmatmul.mubr.f32.gmra.mrb[0].mxu0 %v23
  %v130 = vpop.f32.mrb[0].mxu0
  %v131 = vadd.f32 %v62, %v130
  %v132 = vpop.f32.mrb[0].mxu0
  %133 = vdwg.mxu0
  %134 = vadd.xlane.f32.xlu0 %v131
  %v135 = vpop.xlane.xlu0 %134
  %v136 = vmul.f32 %v135, 0.03125
  %v137 = vmul.f32 %v131, %v131
  %138 = vadd.xlane.f32.xlu0 %v137
  %v139 = vpop.xlane.xlu0 %138
  %v140 = vmul.f32 %v139, 0.03125
  %v141 = vmul.f32 %v136, %v136
  %v142 = vsub.f32 %v140, %v141
  %v143 = vsub.f32 %v131, %v136
  %v144 = vadd.f32 %v142, 1e-05
  %v145 = vrsqrt.pop %v144
  %v146 = vmul.f32 %v143, %v145
  %v147 = vld [vmem:[%s3] sm:$0x1]
  %v149 = vlaneseq
  %v150 = vshrl.u32 %v149, 7
  %v151 = vsub.s32 0, %v150
  %v152 = vrot.slane %v147, %v151
  %v154 = vmul.f32 %v146, %v152
  %v155 = vld [vmem:[%s4] sm:$0x1]
  %v157 = vlaneseq
  %v158 = vshrl.u32 %v157, 7
  %v159 = vsub.s32 0, %v158
  %v160 = vrot.slane %v155, %v159
  %v162 = vadd.f32 %v154, %v160
  %v163 = vld [vmem:[%s5] sm:$0xff]
  %v164 = vld [vmem:[%s5 + $0x8] sm:$0xff]
  %v165 = vld [vmem:[%s5 + $0x10] sm:$0xff]
  %v166 = vld [vmem:[%s5 + $0x18] sm:$0xff]
  %v167 = vld [vmem:[%s5 + $0x20] sm:$0xff]
  %v168 = vld [vmem:[%s5 + $0x28] sm:$0xff]
  %v169 = vld [vmem:[%s5 + $0x30] sm:$0xff]
  %v170 = vld [vmem:[%s5 + $0x38] sm:$0xff]
  %v171 = vld [vmem:[%s5 + $0x40] sm:$0xff]
  %v172 = vld [vmem:[%s5 + $0x48] sm:$0xff]
  %v173 = vld [vmem:[%s5 + $0x50] sm:$0xff]
  %v174 = vld [vmem:[%s5 + $0x58] sm:$0xff]
  %v175 = vld [vmem:[%s5 + $0x60] sm:$0xff]
  %v176 = vld [vmem:[%s5 + $0x68] sm:$0xff]
  %v177 = vld [vmem:[%s5 + $0x70] sm:$0xff]
  %v178 = vld [vmem:[%s5 + $0x78] sm:$0xff]
  %179 = vmatprep.subr.mxu0 0.0
  %180 = vmatpush1.msra.mxu0 %v163
  %181 = vmatprep.subr.mxu0 0.0
  %182 = vmatpush1.msra.mxu0 %v164
  %183 = vmatprep.subr.mxu0 0.0
  %184 = vmatpush1.msra.mxu0 %v165
  %185 = vmatprep.subr.mxu0 0.0
  %186 = vmatpush1.msra.mxu0 %v166
  %187 = vmatprep.subr.mxu0 0.0
  %188 = vmatpush1.msra.mxu0 %v167
  %189 = vmatprep.subr.mxu0 0.0
  %190 = vmatpush1.msra.mxu0 %v168
  %191 = vmatprep.subr.mxu0 0.0
  %192 = vmatpush1.msra.mxu0 %v169
  %193 = vmatprep.subr.mxu0 0.0
  %194 = vmatpush1.msra.mxu0 %v170
  %195 = vmatprep.subr.mxu0 0.0
  %196 = vmatpush1.msra.mxu0 %v171
  %197 = vmatprep.subr.mxu0 0.0
  %198 = vmatpush1.msra.mxu0 %v172
  %199 = vmatprep.subr.mxu0 0.0
  %200 = vmatpush1.msra.mxu0 %v173
  %201 = vmatprep.subr.mxu0 0.0
  %202 = vmatpush1.msra.mxu0 %v174
  %203 = vmatprep.subr.mxu0 0.0
  %204 = vmatpush1.msra.mxu0 %v175
  %205 = vmatprep.subr.mxu0 0.0
  %206 = vmatpush1.msra.mxu0 %v176
  %207 = vmatprep.subr.mxu0 0.0
  %208 = vmatpush1.msra.mxu0 %v177
  %209 = vmatprep.subr.mxu0 0.0
  %210 = vmatpush1.msra.mxu0 %v178
  %211 = vmatprep.subr.mxu0 0.0
  %212 = vmatpush1.msra.mxu0 0.0
  %213 = vmatprep.subr.mxu0 0.0
  %214 = vmatpush1.msra.mxu0 0.0
  %215 = vmatprep.subr.mxu0 0.0
  %216 = vmatpush1.msra.mxu0 0.0
  %217 = vmatprep.subr.mxu0 0.0
  %218 = vmatpush1.msra.mxu0 0.0
  %219 = vmatprep.subr.mxu0 0.0
  %220 = vmatpush1.msra.mxu0 0.0
  %221 = vmatprep.subr.mxu0 0.0
  %222 = vmatpush1.msra.mxu0 0.0
  %223 = vmatprep.subr.mxu0 0.0
  %224 = vmatpush1.msra.mxu0 0.0
  %225 = vmatprep.subr.mxu0 0.0
  %226 = vmatpush1.msra.mxu0 0.0
  %227 = vmatprep.subr.mxu0 0.0
  %228 = vmatpush1.msra.mxu0 0.0
  %229 = vmatprep.subr.mxu0 0.0
  %230 = vmatpush1.msra.mxu0 0.0
  %231 = vmatprep.subr.mxu0 0.0
  %232 = vmatpush1.msra.mxu0 0.0
  %233 = vmatprep.subr.mxu0 0.0
  %234 = vmatpush1.msra.mxu0 0.0
  %235 = vmatprep.subr.mxu0 0.0
  %236 = vmatpush1.msra.mxu0 0.0
  %237 = vmatprep.subr.mxu0 0.0
  %238 = vmatpush1.msra.mxu0 0.0
  %239 = vmatprep.subr.mxu0 0.0
  %240 = vmatpush1.msra.mxu0 0.0
  %241 = vmatprep.subr.mxu0 0.0
  %242 = vmatpush1.msra.mxu0 0.0
  %243 = vmatprep.mubr.f32.mxu0 0.0
  %244 = vmatmul.mubr.f32.gmra.mrb[0].mxu0 %v162
  %v245 = vpop.f32.mrb[0].mxu0
  %v246 = vadd.f32 0.0, %v245
  %v247 = vpop.f32.mrb[0].mxu0
  %248 = vdwg.mxu0
  %249 = vst [vmem:[%s6] sm:$0xff] %v246
  // Predicated region
  $region26: #{transformer_block.8} parent=0 // pred_check
    _
  $region27: #{transformer_block.8} parent=0 // pred_check_branch
    %251 = sbr.rel (0) target = $region29
  $region28: #{transformer_block.8} parent=0 // pred_region
    _
  $region29: #{transformer_block.8} parent=0 // pred_fallthru
    _
  // Predicated region
  $region30: #{transformer_block.8} parent=0 // pred_check
    _
  $region31: #{transformer_block.8} parent=0 // pred_check_branch
    %253 = sbr.rel (0) target = $region33
  $region32: #{transformer_block.8} parent=0 // pred_region
    _
  $region33: #{transformer_block.8} parent=0 // pred_fallthru
    _

// kernel: transformer_block.10
$region0: #{transformer_block.10}
  #allocation0 [shape = 'u32[]', space=smem, size = 0x4, offset = 0x4, fixed_abs, tag = 'smem constant byte address 0x4 - core index']
  #allocation1 [shape = 'u32[144,128]{1,0:T(1,128)}', space=vmem, size = 0x12000, scoped, tag = 'internal scratch']
  %s0 = inlined_call_operand.vmem [shape: f32[16,128], index: 0, kind: input, shape index: {}]
  %s1 = inlined_call_operand.vmem [shape: f32[128,128], index: 1, kind: input, shape index: {}]
  %s2 = inlined_call_operand.vmem [shape: f32[1,128], index: 2, kind: input, shape index: {}]
  %s3 = inlined_call_operand.vmem [shape: f32[16,128], index: 3, kind: input, shape index: {}]
  %s4 = inlined_call_operand.vmem [shape: f32[16,128], index: 4, kind: output, shape index: {}]
  %s5 = sld [smem:[#allocation0]]
  $region26: #{transformer_block.10} parent=0
    _
  %s7 = ssub.s32 1, %s5
  %s8 = scalar_select 0, %s7, %s5
  // Predicated region
  $region2: #{transformer_block.10} parent=0 // pred_check
    _
  $region3: #{transformer_block.10} parent=0 // pred_check_branch
    %10 = sbr.rel (0) target = $region5
  $region4: #{transformer_block.10} parent=0 // pred_region
    _
  $region5: #{transformer_block.10} parent=0 // pred_fallthru
    _
  // Predicated region
  $region6: #{transformer_block.10} parent=0 // pred_check
    _
  $region7: #{transformer_block.10} parent=0 // pred_check_branch
    %12 = sbr.rel (0) target = $region9
  $region8: #{transformer_block.10} parent=0 // pred_region
    _
  $region9: #{transformer_block.10} parent=0 // pred_fallthru
    _
  // Predicated region
  $region10: #{transformer_block.10} parent=0 // pred_check
    _
  $region11: #{transformer_block.10} parent=0 // pred_check_branch
    %14 = sbr.rel (0) target = $region13
  $region12: #{transformer_block.10} parent=0 // pred_region
    _
  $region13: #{transformer_block.10} parent=0 // pred_fallthru
    _
  // Predicated region
  $region14: #{transformer_block.10} parent=0 // pred_check
    _
  $region15: #{transformer_block.10} parent=0 // pred_check_branch
    %16 = sbr.rel (0) target = $region17
  $region16: #{transformer_block.10} parent=0 // pred_region
    _
  $region17: #{transformer_block.10} parent=0 // pred_fallthru
    _
  %v17 = vld [vmem:[%s0] sm:$0xff]
  %v18 = vld [vmem:[%s0 + $0x8] sm:$0xff]
  %v19 = vld [vmem:[%s1] sm:$0xff]
  %v20 = vld [vmem:[%s1 + $0x8] sm:$0xff]
  %v21 = vld [vmem:[%s1 + $0x10] sm:$0xff]
  %v22 = vld [vmem:[%s1 + $0x18] sm:$0xff]
  %v23 = vld [vmem:[%s1 + $0x20] sm:$0xff]
  %v24 = vld [vmem:[%s1 + $0x28] sm:$0xff]
  %v25 = vld [vmem:[%s1 + $0x30] sm:$0xff]
  %v26 = vld [vmem:[%s1 + $0x38] sm:$0xff]
  %v27 = vld [vmem:[%s1 + $0x40] sm:$0xff]
  %v28 = vld [vmem:[%s1 + $0x48] sm:$0xff]
  %v29 = vld [vmem:[%s1 + $0x50] sm:$0xff]
  %v30 = vld [vmem:[%s1 + $0x58] sm:$0xff]
  %v31 = vld [vmem:[%s1 + $0x60] sm:$0xff]
  %v32 = vld [vmem:[%s1 + $0x68] sm:$0xff]
  %v33 = vld [vmem:[%s1 + $0x70] sm:$0xff]
  %v34 = vld [vmem:[%s1 + $0x78] sm:$0xff]
  %v35 = vld [vmem:[%s2] sm:$0x1]
  %v37 = vlaneseq
  %v38 = vshrl.u32 %v37, 7
  %v39 = vsub.s32 0, %v38
  %v40 = vrot.slane %v35, %v39
  %42 = vmatprep.subr.mxu0 0.0
  %43 = vmatpush1.msra.mxu0 %v19
  %44 = vmatprep.subr.mxu0 0.0
  %45 = vmatpush1.msra.mxu0 %v20
  %46 = vmatprep.subr.mxu0 0.0
  %47 = vmatpush1.msra.mxu0 %v21
  %48 = vmatprep.subr.mxu0 0.0
  %49 = vmatpush1.msra.mxu0 %v22
  %50 = vmatprep.subr.mxu0 0.0
  %51 = vmatpush1.msra.mxu0 %v23
  %52 = vmatprep.subr.mxu0 0.0
  %53 = vmatpush1.msra.mxu0 %v24
  %54 = vmatprep.subr.mxu0 0.0
  %55 = vmatpush1.msra.mxu0 %v25
  %56 = vmatprep.subr.mxu0 0.0
  %57 = vmatpush1.msra.mxu0 %v26
  %58 = vmatprep.subr.mxu0 0.0
  %59 = vmatpush1.msra.mxu0 %v27
  %60 = vmatprep.subr.mxu0 0.0
  %61 = vmatpush1.msra.mxu0 %v28
  %62 = vmatprep.subr.mxu0 0.0
  %63 = vmatpush1.msra.mxu0 %v29
  %64 = vmatprep.subr.mxu0 0.0
  %65 = vmatpush1.msra.mxu0 %v30
  %66 = vmatprep.subr.mxu0 0.0
  %67 = vmatpush1.msra.mxu0 %v31
  %68 = vmatprep.subr.mxu0 0.0
  %69 = vmatpush1.msra.mxu0 %v32
  %70 = vmatprep.subr.mxu0 0.0
  %71 = vmatpush1.msra.mxu0 %v33
  %72 = vmatprep.subr.mxu0 0.0
  %73 = vmatpush1.msra.mxu0 %v34
  %74 = vmatprep.subr.mxu0 0.0
  %75 = vmatpush1.msra.mxu0 0.0
  %76 = vmatprep.subr.mxu0 0.0
  %77 = vmatpush1.msra.mxu0 0.0
  %78 = vmatprep.subr.mxu0 0.0
  %79 = vmatpush1.msra.mxu0 0.0
  %80 = vmatprep.subr.mxu0 0.0
  %81 = vmatpush1.msra.mxu0 0.0
  %82 = vmatprep.subr.mxu0 0.0
  %83 = vmatpush1.msra.mxu0 0.0
  %84 = vmatprep.subr.mxu0 0.0
  %85 = vmatpush1.msra.mxu0 0.0
  %86 = vmatprep.subr.mxu0 0.0
  %87 = vmatpush1.msra.mxu0 0.0
  %88 = vmatprep.subr.mxu0 0.0
  %89 = vmatpush1.msra.mxu0 0.0
  %90 = vmatprep.subr.mxu0 0.0
  %91 = vmatpush1.msra.mxu0 0.0
  %92 = vmatprep.subr.mxu0 0.0
  %93 = vmatpush1.msra.mxu0 0.0
  %94 = vmatprep.subr.mxu0 0.0
  %95 = vmatpush1.msra.mxu0 0.0
  %96 = vmatprep.subr.mxu0 0.0
  %97 = vmatpush1.msra.mxu0 0.0
  %98 = vmatprep.subr.mxu0 0.0
  %99 = vmatpush1.msra.mxu0 0.0
  %100 = vmatprep.subr.mxu0 0.0
  %101 = vmatpush1.msra.mxu0 0.0
  %102 = vmatprep.subr.mxu0 0.0
  %103 = vmatpush1.msra.mxu0 0.0
  %104 = vmatprep.subr.mxu0 0.0
  %105 = vmatpush1.msra.mxu0 0.0
  %106 = vmatprep.mubr.f32.mxu0 0.0
  %107 = vmatmul.mubr.f32.gmra.mrb[0].mxu0 %v17
  %v108 = vpop.f32.mrb[0].mxu0
  %v109 = vadd.f32 %v40, %v108
  %v110 = vpop.f32.mrb[0].mxu0
  %111 = vmatprep.mubr.f32.mxu0 0.0
  %112 = vmatmul.mubr.f32.gmra.mrb[0].mxu0 %v18
  %v113 = vpop.f32.mrb[0].mxu0
  %v114 = vadd.f32 %v40, %v113
  %v115 = vpop.f32.mrb[0].mxu0
  %116 = vdwg.mxu0
  %v117 = vld [vmem:[%s3] sm:$0xff]
  %v118 = vld [vmem:[%s3 + $0x8] sm:$0xff]
  %v119 = vadd.f32 %v109, %v117
  %v120 = vadd.f32 %v114, %v118
  %121 = vst [vmem:[%s4] sm:$0xff] %v119
  %122 = vst [vmem:[%s4 + $0x8] sm:$0xff] %v120
  // Predicated region
  $region18: #{transformer_block.10} parent=0 // pred_check
    _
  $region19: #{transformer_block.10} parent=0 // pred_check_branch
    %124 = sbr.rel (0) target = $region21
  $region20: #{transformer_block.10} parent=0 // pred_region
    _
  $region21: #{transformer_block.10} parent=0 // pred_fallthru
    _
  // Predicated region
  $region22: #{transformer_block.10} parent=0 // pred_check
    _
  $region23: #{transformer_block.10} parent=0 // pred_check_branch
    %126 = sbr.rel (0) target = $region25
  $region24: #{transformer_block.10} parent=0 // pred_region
    _
  $region25: #{transformer_block.10} parent=0 // pred_fallthru
    _

// kernel: transformer_block.11
$region0: #{transformer_block.11}
  #allocation0 [shape = 'u32[]', space=smem, size = 0x4, offset = 0x4, fixed_abs, tag = 'smem constant byte address 0x4 - core index']
  #allocation1 [shape = 'u32[144,128]{1,0:T(1,128)}', space=vmem, size = 0x12000, scoped, tag = 'internal scratch']
  %s0 = inlined_call_operand.vmem [shape: f32[16,128], index: 0, kind: input, shape index: {}]
  %s1 = inlined_call_operand.vmem [shape: f32[1,128], index: 1, kind: input, shape index: {}]
  %s2 = inlined_call_operand.vmem [shape: f32[1,128], index: 2, kind: input, shape index: {}]
  %s3 = inlined_call_operand.vmem [shape: f32[128,128], index: 3, kind: input, shape index: {}]
  %s4 = inlined_call_operand.vmem [shape: f32[1,128], index: 4, kind: input, shape index: {}]
  %s5 = inlined_call_operand.vmem [shape: f32[16,128], index: 5, kind: output, shape index: {}]
  %s6 = sld [smem:[#allocation0]]
  $region30: #{transformer_block.11} parent=0
    _
  %s8 = ssub.s32 1, %s6
  %s9 = scalar_select 0, %s8, %s6
  // Predicated region
  $region2: #{transformer_block.11} parent=0 // pred_check
    _
  $region3: #{transformer_block.11} parent=0 // pred_check_branch
    %11 = sbr.rel (0) target = $region5
  $region4: #{transformer_block.11} parent=0 // pred_region
    _
  $region5: #{transformer_block.11} parent=0 // pred_fallthru
    _
  // Predicated region
  $region6: #{transformer_block.11} parent=0 // pred_check
    _
  $region7: #{transformer_block.11} parent=0 // pred_check_branch
    %13 = sbr.rel (0) target = $region9
  $region8: #{transformer_block.11} parent=0 // pred_region
    _
  $region9: #{transformer_block.11} parent=0 // pred_fallthru
    _
  // Predicated region
  $region10: #{transformer_block.11} parent=0 // pred_check
    _
  $region11: #{transformer_block.11} parent=0 // pred_check_branch
    %15 = sbr.rel (0) target = $region13
  $region12: #{transformer_block.11} parent=0 // pred_region
    _
  $region13: #{transformer_block.11} parent=0 // pred_fallthru
    _
  // Predicated region
  $region14: #{transformer_block.11} parent=0 // pred_check
    _
  $region15: #{transformer_block.11} parent=0 // pred_check_branch
    %17 = sbr.rel (0) target = $region17
  $region16: #{transformer_block.11} parent=0 // pred_region
    _
  $region17: #{transformer_block.11} parent=0 // pred_fallthru
    _
  // Predicated region
  $region18: #{transformer_block.11} parent=0 // pred_check
    _
  $region19: #{transformer_block.11} parent=0 // pred_check_branch
    %19 = sbr.rel (0) target = $region21
  $region20: #{transformer_block.11} parent=0 // pred_region
    _
  $region21: #{transformer_block.11} parent=0 // pred_fallthru
    _
  %v20 = vld [vmem:[%s0] sm:$0xff]
  %v21 = vld [vmem:[%s0 + $0x8] sm:$0xff]
  %v22 = vld [vmem:[%s1] sm:$0x1]
  %v23 = vld [vmem:[%s2] sm:$0x1]
  %24 = vadd.xlane.f32.xlu0 %v20
  %v25 = vpop.xlane.xlu0 %24
  %26 = vadd.xlane.f32.xlu0 %v21
  %v27 = vpop.xlane.xlu0 %26
  %v28 = vmul.f32 %v25, 0.03125
  %v29 = vmul.f32 %v27, 0.03125
  %v30 = vmul.f32 %v20, %v20
  %v31 = vmul.f32 %v21, %v21
  %32 = vadd.xlane.f32.xlu0 %v30
  %v33 = vpop.xlane.xlu0 %32
  %34 = vadd.xlane.f32.xlu0 %v31
  %v35 = vpop.xlane.xlu0 %34
  %v36 = vmul.f32 %v33, 0.03125
  %v37 = vmul.f32 %v35, 0.03125
  %v38 = vmul.f32 %v28, %v28
  %v39 = vmul.f32 %v29, %v29
  %v40 = vsub.f32 %v36, %v38
  %v41 = vsub.f32 %v37, %v39
  %v42 = vsub.f32 %v20, %v28
  %v43 = vsub.f32 %v21, %v29
  %v44 = vadd.f32 %v40, 1e-05
  %v45 = vadd.f32 %v41, 1e-05
  %v46 = vrsqrt.pop %v44
  %v47 = vrsqrt.pop %v45
  %v48 = vmul.f32 %v42, %v46
  %v49 = vmul.f32 %v43, %v47
  %v51 = vlaneseq
  %v52 = vshrl.u32 %v51, 7
  %v53 = vsub.s32 0, %v52
  %v54 = vrot.slane %v22, %v53
  %v56 = vmul.f32 %v48, %v54
  %v57 = vmul.f32 %v49, %v54
  %v59 = vlaneseq
  %v60 = vshrl.u32 %v59, 7
  %v61 = vsub.s32 0, %v60
  %v62 = vrot.slane %v23, %v61
  %v64 = vadd.f32 %v56, %v62
  %v65 = vadd.f32 %v57, %v62
  %v66 = vld [vmem:[%s3] sm:$0xff]
  %v67 = vld [vmem:[%s3 + $0x8] sm:$0xff]
  %v68 = vld [vmem:[%s3 + $0x10] sm:$0xff]
  %v69 = vld [vmem:[%s3 + $0x18] sm:$0xff]
  %v70 = vld [vmem:[%s3 + $0x20] sm:$0xff]
  %v71 = vld [vmem:[%s3 + $0x28] sm:$0xff]
  %v72 = vld [vmem:[%s3 + $0x30] sm:$0xff]
  %v73 = vld [vmem:[%s3 + $0x38] sm:$0xff]
  %v74 = vld [vmem:[%s3 + $0x40] sm:$0xff]
  %v75 = vld [vmem:[%s3 + $0x48] sm:$0xff]
  %v76 = vld [vmem:[%s3 + $0x50] sm:$0xff]
  %v77 = vld [vmem:[%s3 + $0x58] sm:$0xff]
  %v78 = vld [vmem:[%s3 + $0x60] sm:$0xff]
  %v79 = vld [vmem:[%s3 + $0x68] sm:$0xff]
  %v80 = vld [vmem:[%s3 + $0x70] sm:$0xff]
  %v81 = vld [vmem:[%s3 + $0x78] sm:$0xff]
  %v82 = vld [vmem:[%s4] sm:$0x1]
  %v84 = vlaneseq
  %v85 = vshrl.u32 %v84, 7
  %v86 = vsub.s32 0, %v85
  %v87 = vrot.slane %v82, %v86
  %89 = vmatprep.subr.mxu0 0.0
  %90 = vmatpush1.msra.mxu0 %v66
  %91 = vmatprep.subr.mxu0 0.0
  %92 = vmatpush1.msra.mxu0 %v67
  %93 = vmatprep.subr.mxu0 0.0
  %94 = vmatpush1.msra.mxu0 %v68
  %95 = vmatprep.subr.mxu0 0.0
  %96 = vmatpush1.msra.mxu0 %v69
  %97 = vmatprep.subr.mxu0 0.0
  %98 = vmatpush1.msra.mxu0 %v70
  %99 = vmatprep.subr.mxu0 0.0
  %100 = vmatpush1.msra.mxu0 %v71
  %101 = vmatprep.subr.mxu0 0.0
  %102 = vmatpush1.msra.mxu0 %v72
  %103 = vmatprep.subr.mxu0 0.0
  %104 = vmatpush1.msra.mxu0 %v73
  %105 = vmatprep.subr.mxu0 0.0
  %106 = vmatpush1.msra.mxu0 %v74
  %107 = vmatprep.subr.mxu0 0.0
  %108 = vmatpush1.msra.mxu0 %v75
  %109 = vmatprep.subr.mxu0 0.0
  %110 = vmatpush1.msra.mxu0 %v76
  %111 = vmatprep.subr.mxu0 0.0
  %112 = vmatpush1.msra.mxu0 %v77
  %113 = vmatprep.subr.mxu0 0.0
  %114 = vmatpush1.msra.mxu0 %v78
  %115 = vmatprep.subr.mxu0 0.0
  %116 = vmatpush1.msra.mxu0 %v79
  %117 = vmatprep.subr.mxu0 0.0
  %118 = vmatpush1.msra.mxu0 %v80
  %119 = vmatprep.subr.mxu0 0.0
  %120 = vmatpush1.msra.mxu0 %v81
  %121 = vmatprep.subr.mxu0 0.0
  %122 = vmatpush1.msra.mxu0 0.0
  %123 = vmatprep.subr.mxu0 0.0
  %124 = vmatpush1.msra.mxu0 0.0
  %125 = vmatprep.subr.mxu0 0.0
  %126 = vmatpush1.msra.mxu0 0.0
  %127 = vmatprep.subr.mxu0 0.0
  %128 = vmatpush1.msra.mxu0 0.0
  %129 = vmatprep.subr.mxu0 0.0
  %130 = vmatpush1.msra.mxu0 0.0
  %131 = vmatprep.subr.mxu0 0.0
  %132 = vmatpush1.msra.mxu0 0.0
  %133 = vmatprep.subr.mxu0 0.0
  %134 = vmatpush1.msra.mxu0 0.0
  %135 = vmatprep.subr.mxu0 0.0
  %136 = vmatpush1.msra.mxu0 0.0
  %137 = vmatprep.subr.mxu0 0.0
  %138 = vmatpush1.msra.mxu0 0.0
  %139 = vmatprep.subr.mxu0 0.0
  %140 = vmatpush1.msra.mxu0 0.0
  %141 = vmatprep.subr.mxu0 0.0
  %142 = vmatpush1.msra.mxu0 0.0
  %143 = vmatprep.subr.mxu0 0.0
  %144 = vmatpush1.msra.mxu0 0.0
  %145 = vmatprep.subr.mxu0 0.0
  %146 = vmatpush1.msra.mxu0 0.0
  %147 = vmatprep.subr.mxu0 0.0
  %148 = vmatpush1.msra.mxu0 0.0
  %149 = vmatprep.subr.mxu0 0.0
  %150 = vmatpush1.msra.mxu0 0.0
  %151 = vmatprep.subr.mxu0 0.0
  %152 = vmatpush1.msra.mxu0 0.0
  %153 = vmatprep.mubr.f32.mxu0 0.0
  %154 = vmatmul.mubr.f32.gmra.mrb[0].mxu0 %v64
  %v155 = vpop.f32.mrb[0].mxu0
  %v156 = vadd.f32 %v87, %v155
  %v157 = vpop.f32.mrb[0].mxu0
  %158 = vmatprep.mubr.f32.mxu0 0.0
  %159 = vmatmul.mubr.f32.gmra.mrb[0].mxu0 %v65
  %v160 = vpop.f32.mrb[0].mxu0
  %v161 = vadd.f32 %v87, %v160
  %v162 = vpop.f32.mrb[0].mxu0
  %163 = vdwg.mxu0
  %164 = vst [vmem:[%s5] sm:$0xff] %v156
  %165 = vst [vmem:[%s5 + $0x8] sm:$0xff] %v161
  // Predicated region
  $region22: #{transformer_block.11} parent=0 // pred_check
    _
  $region23: #{transformer_block.11} parent=0 // pred_check_branch
    %167 = sbr.rel (0) target = $region25
  $region24: #{transformer_block.11} parent=0 // pred_region
    _
  $region25: #{transformer_block.11} parent=0 // pred_fallthru
    _
  // Predicated region
  $region26: #{transformer_block.11} parent=0 // pred_check
    _
  $region27: #{transformer_block.11} parent=0 // pred_check_branch
    %169 = sbr.rel (0) target = $region29
  $region28: #{transformer_block.11} parent=0 // pred_region
    _
  $region29: #{transformer_block.11} parent=0 // pred_fallthru
    _

// kernel: transformer_block.9
$region0: #{transformer_block.9}
  #allocation0 [shape = 'u32[]', space=smem, size = 0x4, offset = 0x4, fixed_abs, tag = 'smem constant byte address 0x4 - core index']
  #allocation1 [shape = 'u32[144,128]{1,0:T(1,128)}', space=vmem, size = 0x12000, scoped, tag = 'internal scratch']
  %s0 = inlined_call_operand.vmem [shape: f32[2,8,8,128], index: 0, kind: input, shape index: {}]
  %s1 = inlined_call_operand.vmem [shape: f32[2,8,128,128], index: 1, kind: input, shape index: {}]
  %s2 = inlined_call_operand.vmem [shape: f32[2,8,128,128], index: 2, kind: input, shape index: {}]
  %s3 = inlined_call_operand.vmem [shape: f32[2,8,8,128], index: 3, kind: output, shape index: {}]
  %s4 = sld [smem:[#allocation0]]
  $region45: #{transformer_block.9} parent=0
    _
  %s6 = ssub.s32 1, %s4
  %s7 = scalar_select 0, %s6, %s4
  loop: start=0, step=1, limit=4
  $region2: #{transformer_block.9} parent=0 // loop_pre_header
    _
  $region3: #{transformer_block.9} parent=0 // loop_header
    %s9 = sphi 0, %s13
    %p10 = scmp.ge.s32.totalorder %s9, 4
    %s19 = sphi 0, %s21
    %s22 = sphi 0, %s19
    %s23 = sphi 0, %s22
    %s39 = sphi 0, %s23
    %s45 = sphi 0, %s47
    %s48 = sphi 0, %s45
    %s49 = sphi 0, %s48
    %s65 = sphi 0, %s49
    %s71 = sphi 0, %s73
    %s74 = sphi 0, %s71
    %s75 = sphi 0, %s74
    %s91 = sphi 0, %s75
    %s97 = sphi 0, %s99
    %s100 = sphi 0, %s97
    %s101 = sphi 0, %s100
    %s117 = sphi 0, %s101
  $region4: #{transformer_block.9} parent=0 // loop_header_branch
    %12 = sbr.rel (%p10) target = $region8
  $region5: #{transformer_block.9} parent=0 // loop_body
    %s14 = ssub.s32 %s9, 1
    %s15 = ssub.s32 %s9, 2
    %s16 = sadd.s32 %s9, 1
    %s17 = ssub.s32 %s9, %s16
    %p18 = scmp.eq.s32.totalorder %s17, 0
    %s20 = sadd.s32 %s19, 1
    %s21 = scalar_select %p18, %s19, %s20
    %p24 = pneg %p18
    %p25 = scmp.eq.s32.totalorder %s9, 1
    %p26 = por %p24, %p25
    %p27 = scmp.ne.s32.totalorder %s19, %s22
    %p28 = scmp.eq.s32.totalorder %s9, 0
    %p29 = por %p27, %p28
    %p30 = scmp.ne.s32.totalorder %s19, %s22
    %p31 = scmp.eq.s32.totalorder %s14, 1
    %p32 = por %p30, %p31
    %p33 = scmp.ne.s32.totalorder %s22, %s23
    %p34 = scmp.eq.s32.totalorder %s14, 0
    %p35 = por %p33, %p34
    %p36 = scmp.ne.s32.totalorder %s22, %s23
    %p37 = scmp.eq.s32.totalorder %s15, 1
    %p38 = por %p36, %p37
    %p40 = scmp.ne.s32.totalorder %s23, %s39
    %p41 = scmp.eq.s32.totalorder %s15, 0
    %p42 = por %p40, %p41
    %s43 = ssub.s32 %s9, %s16
    %p44 = scmp.eq.s32.totalorder %s43, 0
    %s46 = sadd.s32 %s45, 1
    %s47 = scalar_select %p44, %s45, %s46
    %p50 = pneg %p44
    %p51 = scmp.eq.s32.totalorder %s9, 1
    %p52 = por %p50, %p51
    %p53 = scmp.ne.s32.totalorder %s45, %s48
    %p54 = scmp.eq.s32.totalorder %s9, 0
    %p55 = por %p53, %p54
    %p56 = scmp.ne.s32.totalorder %s45, %s48
    %p57 = scmp.eq.s32.totalorder %s14, 1
    %p58 = por %p56, %p57
    %p59 = scmp.ne.s32.totalorder %s48, %s49
    %p60 = scmp.eq.s32.totalorder %s14, 0
    %p61 = por %p59, %p60
    %p62 = scmp.ne.s32.totalorder %s48, %s49
    %p63 = scmp.eq.s32.totalorder %s15, 1
    %p64 = por %p62, %p63
    %p66 = scmp.ne.s32.totalorder %s49, %s65
    %p67 = scmp.eq.s32.totalorder %s15, 0
    %p68 = por %p66, %p67
    %s69 = ssub.s32 %s9, %s16
    %p70 = scmp.eq.s32.totalorder %s69, 0
    %s72 = sadd.s32 %s71, 1
    %s73 = scalar_select %p70, %s71, %s72
    %p76 = pneg %p70
    %p77 = scmp.eq.s32.totalorder %s9, 1
    %p78 = por %p76, %p77
    %p79 = scmp.ne.s32.totalorder %s71, %s74
    %p80 = scmp.eq.s32.totalorder %s9, 0
    %p81 = por %p79, %p80
    %p82 = scmp.ne.s32.totalorder %s71, %s74
    %p83 = scmp.eq.s32.totalorder %s14, 1
    %p84 = por %p82, %p83
    %p85 = scmp.ne.s32.totalorder %s74, %s75
    %p86 = scmp.eq.s32.totalorder %s14, 0
    %p87 = por %p85, %p86
    %p88 = scmp.ne.s32.totalorder %s74, %s75
    %p89 = scmp.eq.s32.totalorder %s15, 1
    %p90 = por %p88, %p89
    %p92 = scmp.ne.s32.totalorder %s75, %s91
    %p93 = scmp.eq.s32.totalorder %s15, 0
    %p94 = por %p92, %p93
    %s95 = ssub.s32 %s9, %s16
    %p96 = scmp.eq.s32.totalorder %s95, 0
    %s98 = sadd.s32 %s97, 1
    %s99 = scalar_select %p96, %s97, %s98
    %p102 = pneg %p96
    %p103 = scmp.eq.s32.totalorder %s9, 1
    %p104 = por %p102, %p103
    %p105 = scmp.ne.s32.totalorder %s97, %s100
    %p106 = scmp.eq.s32.totalorder %s9, 0
    %p107 = por %p105, %p106
    %p108 = scmp.ne.s32.totalorder %s97, %s100
    %p109 = scmp.eq.s32.totalorder %s14, 1
    %p110 = por %p108, %p109
    %p111 = scmp.ne.s32.totalorder %s100, %s101
    %p112 = scmp.eq.s32.totalorder %s14, 0
    %p113 = por %p111, %p112
    %p114 = scmp.ne.s32.totalorder %s100, %s101
    %p115 = scmp.eq.s32.totalorder %s15, 1
    %p116 = por %p114, %p115
    %p118 = scmp.ne.s32.totalorder %s101, %s117
    %p119 = scmp.eq.s32.totalorder %s15, 0
    %p120 = por %p118, %p119
    %p121 = scmp.le.s32.totalorder 1, %s9
    %p122 = scmp.lt.s32.totalorder %s9, 3
    %p123 = pnand %p121, %p122
    %p124 = pneg %p123
    // Predicated region
    $region9: #{transformer_block.9} parent=5 // pred_check
      _
    $region10: #{transformer_block.9} parent=5 // pred_check_branch
      %126 = sbr.rel (%p123) target = $region12
    $region11: #{transformer_block.9} parent=5 // pred_region
      %s127 = ssub.s32 %s9, 1
    $region12: #{transformer_block.9} parent=5 // pred_fallthru
      _
    %p128 = scmp.lt.s32.totalorder %s9, 2
    // Predicated region
    $region13: #{transformer_block.9} parent=5 // pred_check
      %p129 = pneg %p128
    $region14: #{transformer_block.9} parent=5 // pred_check_branch
      %131 = sbr.rel (%p129) target = $region16
    $region15: #{transformer_block.9} parent=5 // pred_region
      // Predicated region
      $region17: #{transformer_block.9} parent=15 // pred_check
        %p132 = pneg %p29
      $region18: #{transformer_block.9} parent=15 // pred_check_branch
        %134 = sbr.rel (%p132) target = $region20
      $region19: #{transformer_block.9} parent=15 // pred_region
        %p135 = scmp.lt.s32.totalorder %s9, 1
        %s136 = scalar_select %p135, %s9, 1
        %s137 = smul.addr %s136, 8
        %s138 = smul.addr %s137, 8
        %s139 = scalar_lea.vmem %s0, %s138
      $region20: #{transformer_block.9} parent=15 // pred_fallthru
        _
      // Predicated region
      $region21: #{transformer_block.9} parent=15 // pred_check
        %p140 = pneg %p55
      $region22: #{transformer_block.9} parent=15 // pred_check_branch
        %142 = sbr.rel (%p140) target = $region24
      $region23: #{transformer_block.9} parent=15 // pred_region
        %p143 = scmp.lt.s32.totalorder %s9, 1
        %s144 = scalar_select %p143, %s9, 1
        %s145 = smul.addr %s144, 128
        %s146 = smul.addr %s145, 8
        %s147 = scalar_lea.vmem %s1, %s146
      $region24: #{transformer_block.9} parent=15 // pred_fallthru
        _
      // Predicated region
      $region25: #{transformer_block.9} parent=15 // pred_check
        %p148 = pneg %p81
      $region26: #{transformer_block.9} parent=15 // pred_check_branch
        %150 = sbr.rel (%p148) target = $region28
      $region27: #{transformer_block.9} parent=15 // pred_region
        %p151 = scmp.lt.s32.totalorder %s9, 1
        %s152 = scalar_select %p151, %s9, 1
        %s153 = smul.addr %s152, 128
        %s154 = smul.addr %s153, 8
        %s155 = scalar_lea.vmem %s2, %s154
      $region28: #{transformer_block.9} parent=15 // pred_fallthru
        _
    $region16: #{transformer_block.9} parent=5 // pred_fallthru
      _
    %p156 = scmp.le.s32.totalorder 1, %s9
    %p157 = scmp.lt.s32.totalorder %s9, 3
    %p158 = pnand %p156, %p157
    %p159 = pneg %p158
    // Predicated region
    $region29: #{transformer_block.9} parent=5 // pred_check
      _
    $region30: #{transformer_block.9} parent=5 // pred_check_branch
      %161 = sbr.rel (%p158) target = $region32
    $region31: #{transformer_block.9} parent=5 // pred_region
      %s162 = ssub.s32 %s9, 1
      %p163 = scmp.lt.s32.totalorder %s14, 1
      %s164 = scalar_select %p163, %s14, 1
      %s165 = smul.addr %s164, 8
      %s166 = smul.addr %s165, 8
      %s167 = scalar_lea.vmem %s0, %s166
      %p168 = pneg %p35
      %p169 = pneg %p32
      %p170 = scmp.lt.s32.totalorder %s14, 1
      %s171 = scalar_select %p170, %s14, 1
      %s172 = smul.addr %s171, 128
      %s173 = smul.addr %s172, 8
      %s174 = scalar_lea.vmem %s1, %s173
      %p175 = pneg %p61
      %p176 = pneg %p58
      %p177 = scmp.lt.s32.totalorder %s14, 1
      %s178 = scalar_select %p177, %s14, 1
      %s179 = smul.addr %s178, 128
      %s180 = smul.addr %s179, 8
      %s181 = scalar_lea.vmem %s2, %s180
      %p182 = pneg %p87
      %p183 = pneg %p84
      %p184 = pneg %p113
      %p185 = pneg %p110
      %p186 = scmp.lt.s32.totalorder %s14, 1
      %s187 = scalar_select %p186, %s14, 1
      %s188 = smul.addr %s187, 8
      %s189 = smul.addr %s188, 8
      %s190 = scalar_lea.vmem %s3, %s189
      %p191 = scmp.lt.s32.totalorder %s14, 1
      %s192 = scalar_select %p191, %s14, 1
      %s193 = smul.addr %s192, 8
      %s194 = smul.addr %s193, 8
      %s195 = scalar_lea.vmem %s0, %s194
      %p196 = scmp.lt.s32.totalorder %s14, 1
      %s197 = scalar_select %p196, %s14, 1
      %s198 = smul.addr %s197, 128
      %s199 = smul.addr %s198, 8
      %s200 = scalar_lea.vmem %s1, %s199
      %p201 = scmp.lt.s32.totalorder %s14, 1
      %s202 = scalar_select %p201, %s14, 1
      %s203 = smul.addr %s202, 128
      %s204 = smul.addr %s203, 8
      %s205 = scalar_lea.vmem %s2, %s204
      %p206 = scmp.lt.s32.totalorder %s14, 1
      %s207 = scalar_select %p206, %s14, 1
      %s208 = smul.addr %s207, 8
      %s209 = smul.addr %s208, 8
      %s210 = scalar_lea.vmem %s3, %s209
      %v211 = vld [vmem:[%s195] sm:$0xff]
      %v212 = vld [vmem:[%s195 + $0x8] sm:$0xff]
      %v213 = vld [vmem:[%s195 + $0x10] sm:$0xff]
      %v214 = vld [vmem:[%s195 + $0x18] sm:$0xff]
      %v215 = vld [vmem:[%s195 + $0x20] sm:$0xff]
      %v216 = vld [vmem:[%s195 + $0x28] sm:$0xff]
      %v217 = vld [vmem:[%s195 + $0x30] sm:$0xff]
      %v218 = vld [vmem:[%s195 + $0x38] sm:$0xff]
      %v219 = vld [vmem:[%s200] sm:$0xff]
      %v220 = vld [vmem:[%s200 + $0x8] sm:$0xff]
      %v221 = vld [vmem:[%s200 + $0x10] sm:$0xff]
      %v222 = vld [vmem:[%s200 + $0x18] sm:$0xff]
      %v223 = vld [vmem:[%s200 + $0x20] sm:$0xff]
      %v224 = vld [vmem:[%s200 + $0x28] sm:$0xff]
      %v225 = vld [vmem:[%s200 + $0x30] sm:$0xff]
      %v226 = vld [vmem:[%s200 + $0x38] sm:$0xff]
      %v227 = vld [vmem:[%s200 + $0x40] sm:$0xff]
      %v228 = vld [vmem:[%s200 + $0x48] sm:$0xff]
      %v229 = vld [vmem:[%s200 + $0x50] sm:$0xff]
      %v230 = vld [vmem:[%s200 + $0x58] sm:$0xff]
      %v231 = vld [vmem:[%s200 + $0x60] sm:$0xff]
      %v232 = vld [vmem:[%s200 + $0x68] sm:$0xff]
      %v233 = vld [vmem:[%s200 + $0x70] sm:$0xff]
      %v234 = vld [vmem:[%s200 + $0x78] sm:$0xff]
      %v235 = vld [vmem:[%s200 + $0x80] sm:$0xff]
      %v236 = vld [vmem:[%s200 + $0x88] sm:$0xff]
      %v237 = vld [vmem:[%s200 + $0x90] sm:$0xff]
      %v238 = vld [vmem:[%s200 + $0x98] sm:$0xff]
      %v239 = vld [vmem:[%s200 + $0xa0] sm:$0xff]
      %v240 = vld [vmem:[%s200 + $0xa8] sm:$0xff]
      %v241 = vld [vmem:[%s200 + $0xb0] sm:$0xff]
      %v242 = vld [vmem:[%s200 + $0xb8] sm:$0xff]
      %v243 = vld [vmem:[%s200 + $0xc0] sm:$0xff]
      %v244 = vld [vmem:[%s200 + $0xc8] sm:$0xff]
      %v245 = vld [vmem:[%s200 + $0xd0] sm:$0xff]
      %v246 = vld [vmem:[%s200 + $0xd8] sm:$0xff]
      %v247 = vld [vmem:[%s200 + $0xe0] sm:$0xff]
      %v248 = vld [vmem:[%s200 + $0xe8] sm:$0xff]
      %v249 = vld [vmem:[%s200 + $0xf0] sm:$0xff]
      %v250 = vld [vmem:[%s200 + $0xf8] sm:$0xff]
      %v251 = vld [vmem:[%s200 + $0x100] sm:$0xff]
      %v252 = vld [vmem:[%s200 + $0x108] sm:$0xff]
      %v253 = vld [vmem:[%s200 + $0x110] sm:$0xff]
      %v254 = vld [vmem:[%s200 + $0x118] sm:$0xff]
      %v255 = vld [vmem:[%s200 + $0x120] sm:$0xff]
      %v256 = vld [vmem:[%s200 + $0x128] sm:$0xff]
      %v257 = vld [vmem:[%s200 + $0x130] sm:$0xff]
      %v258 = vld [vmem:[%s200 + $0x138] sm:$0xff]
      %v259 = vld [vmem:[%s200 + $0x140] sm:$0xff]
      %v260 = vld [vmem:[%s200 + $0x148] sm:$0xff]
      %v261 = vld [vmem:[%s200 + $0x150] sm:$0xff]
      %v262 = vld [vmem:[%s200 + $0x158] sm:$0xff]
      %v263 = vld [vmem:[%s200 + $0x160] sm:$0xff]
      %v264 = vld [vmem:[%s200 + $0x168] sm:$0xff]
      %v265 = vld [vmem:[%s200 + $0x170] sm:$0xff]
      %v266 = vld [vmem:[%s200 + $0x178] sm:$0xff]
      %v267 = vld [vmem:[%s200 + $0x180] sm:$0xff]
      %v268 = vld [vmem:[%s200 + $0x188] sm:$0xff]
      %v269 = vld [vmem:[%s200 + $0x190] sm:$0xff]
      %v270 = vld [vmem:[%s200 + $0x198] sm:$0xff]
      %v271 = vld [vmem:[%s200 + $0x1a0] sm:$0xff]
      %v272 = vld [vmem:[%s200 + $0x1a8] sm:$0xff]
      %v273 = vld [vmem:[%s200 + $0x1b0] sm:$0xff]
      %v274 = vld [vmem:[%s200 + $0x1b8] sm:$0xff]
      %v275 = vld [vmem:[%s200 + $0x1c0] sm:$0xff]
      %v276 = vld [vmem:[%s200 + $0x1c8] sm:$0xff]
      %v277 = vld [vmem:[%s200 + $0x1d0] sm:$0xff]
      %v278 = vld [vmem:[%s200 + $0x1d8] sm:$0xff]
      %v279 = vld [vmem:[%s200 + $0x1e0] sm:$0xff]
      %v280 = vld [vmem:[%s200 + $0x1e8] sm:$0xff]
      %v281 = vld [vmem:[%s200 + $0x1f0] sm:$0xff]
      %v282 = vld [vmem:[%s200 + $0x1f8] sm:$0xff]
      %v283 = vld [vmem:[%s200 + $0x200] sm:$0xff]
      %v284 = vld [vmem:[%s200 + $0x208] sm:$0xff]
      %v285 = vld [vmem:[%s200 + $0x210] sm:$0xff]
      %v286 = vld [vmem:[%s200 + $0x218] sm:$0xff]
      %v287 = vld [vmem:[%s200 + $0x220] sm:$0xff]
      %v288 = vld [vmem:[%s200 + $0x228] sm:$0xff]
      %v289 = vld [vmem:[%s200 + $0x230] sm:$0xff]
      %v290 = vld [vmem:[%s200 + $0x238] sm:$0xff]
      %v291 = vld [vmem:[%s200 + $0x240] sm:$0xff]
      %v292 = vld [vmem:[%s200 + $0x248] sm:$0xff]
      %v293 = vld [vmem:[%s200 + $0x250] sm:$0xff]
      %v294 = vld [vmem:[%s200 + $0x258] sm:$0xff]
      %v295 = vld [vmem:[%s200 + $0x260] sm:$0xff]
      %v296 = vld [vmem:[%s200 + $0x268] sm:$0xff]
      %v297 = vld [vmem:[%s200 + $0x270] sm:$0xff]
      %v298 = vld [vmem:[%s200 + $0x278] sm:$0xff]
      %v299 = vld [vmem:[%s200 + $0x280] sm:$0xff]
      %v300 = vld [vmem:[%s200 + $0x288] sm:$0xff]
      %v301 = vld [vmem:[%s200 + $0x290] sm:$0xff]
      %v302 = vld [vmem:[%s200 + $0x298] sm:$0xff]
      %v303 = vld [vmem:[%s200 + $0x2a0] sm:$0xff]
      %v304 = vld [vmem:[%s200 + $0x2a8] sm:$0xff]
      %v305 = vld [vmem:[%s200 + $0x2b0] sm:$0xff]
      %v306 = vld [vmem:[%s200 + $0x2b8] sm:$0xff]
      %v307 = vld [vmem:[%s200 + $0x2c0] sm:$0xff]
      %v308 = vld [vmem:[%s200 + $0x2c8] sm:$0xff]
      %v309 = vld [vmem:[%s200 + $0x2d0] sm:$0xff]
      %v310 = vld [vmem:[%s200 + $0x2d8] sm:$0xff]
      %v311 = vld [vmem:[%s200 + $0x2e0] sm:$0xff]
      %v312 = vld [vmem:[%s200 + $0x2e8] sm:$0xff]
      %v313 = vld [vmem:[%s200 + $0x2f0] sm:$0xff]
      %v314 = vld [vmem:[%s200 + $0x2f8] sm:$0xff]
      %v315 = vld [vmem:[%s200 + $0x300] sm:$0xff]
      %v316 = vld [vmem:[%s200 + $0x308] sm:$0xff]
      %v317 = vld [vmem:[%s200 + $0x310] sm:$0xff]
      %v318 = vld [vmem:[%s200 + $0x318] sm:$0xff]
      %v319 = vld [vmem:[%s200 + $0x320] sm:$0xff]
      %v320 = vld [vmem:[%s200 + $0x328] sm:$0xff]
      %v321 = vld [vmem:[%s200 + $0x330] sm:$0xff]
      %v322 = vld [vmem:[%s200 + $0x338] sm:$0xff]
      %v323 = vld [vmem:[%s200 + $0x340] sm:$0xff]
      %v324 = vld [vmem:[%s200 + $0x348] sm:$0xff]
      %v325 = vld [vmem:[%s200 + $0x350] sm:$0xff]
      %v326 = vld [vmem:[%s200 + $0x358] sm:$0xff]
      %v327 = vld [vmem:[%s200 + $0x360] sm:$0xff]
      %v328 = vld [vmem:[%s200 + $0x368] sm:$0xff]
      %v329 = vld [vmem:[%s200 + $0x370] sm:$0xff]
      %v330 = vld [vmem:[%s200 + $0x378] sm:$0xff]
      %v331 = vld [vmem:[%s200 + $0x380] sm:$0xff]
      %v332 = vld [vmem:[%s200 + $0x388] sm:$0xff]
      %v333 = vld [vmem:[%s200 + $0x390] sm:$0xff]
      %v334 = vld [vmem:[%s200 + $0x398] sm:$0xff]
      %v335 = vld [vmem:[%s200 + $0x3a0] sm:$0xff]
      %v336 = vld [vmem:[%s200 + $0x3a8] sm:$0xff]
      %v337 = vld [vmem:[%s200 + $0x3b0] sm:$0xff]
      %v338 = vld [vmem:[%s200 + $0x3b8] sm:$0xff]
      %v339 = vld [vmem:[%s200 + $0x3c0] sm:$0xff]
      %v340 = vld [vmem:[%s200 + $0x3c8] sm:$0xff]
      %v341 = vld [vmem:[%s200 + $0x3d0] sm:$0xff]
      %v342 = vld [vmem:[%s200 + $0x3d8] sm:$0xff]
      %v343 = vld [vmem:[%s200 + $0x3e0] sm:$0xff]
      %v344 = vld [vmem:[%s200 + $0x3e8] sm:$0xff]
      %v345 = vld [vmem:[%s200 + $0x3f0] sm:$0xff]
      %v346 = vld [vmem:[%s200 + $0x3f8] sm:$0xff]
      %v347 = vld [vmem:[%s205] sm:$0xff]
      %v348 = vld [vmem:[%s205 + $0x8] sm:$0xff]
      %v349 = vld [vmem:[%s205 + $0x10] sm:$0xff]
      %v350 = vld [vmem:[%s205 + $0x18] sm:$0xff]
      %v351 = vld [vmem:[%s205 + $0x20] sm:$0xff]
      %v352 = vld [vmem:[%s205 + $0x28] sm:$0xff]
      %v353 = vld [vmem:[%s205 + $0x30] sm:$0xff]
      %v354 = vld [vmem:[%s205 + $0x38] sm:$0xff]
      %v355 = vld [vmem:[%s205 + $0x40] sm:$0xff]
      %v356 = vld [vmem:[%s205 + $0x48] sm:$0xff]
      %v357 = vld [vmem:[%s205 + $0x50] sm:$0xff]
      %v358 = vld [vmem:[%s205 + $0x58] sm:$0xff]
      %v359 = vld [vmem:[%s205 + $0x60] sm:$0xff]
      %v360 = vld [vmem:[%s205 + $0x68] sm:$0xff]
      %v361 = vld [vmem:[%s205 + $0x70] sm:$0xff]
      %v362 = vld [vmem:[%s205 + $0x78] sm:$0xff]
      %v363 = vld [vmem:[%s205 + $0x80] sm:$0xff]
      %v364 = vld [vmem:[%s205 + $0x88] sm:$0xff]
      %v365 = vld [vmem:[%s205 + $0x90] sm:$0xff]
      %v366 = vld [vmem:[%s205 + $0x98] sm:$0xff]
      %v367 = vld [vmem:[%s205 + $0xa0] sm:$0xff]
      %v368 = vld [vmem:[%s205 + $0xa8] sm:$0xff]
      %v369 = vld [vmem:[%s205 + $0xb0] sm:$0xff]
      %v370 = vld [vmem:[%s205 + $0xb8] sm:$0xff]
      %v371 = vld [vmem:[%s205 + $0xc0] sm:$0xff]
      %v372 = vld [vmem:[%s205 + $0xc8] sm:$0xff]
      %v373 = vld [vmem:[%s205 + $0xd0] sm:$0xff]
      %v374 = vld [vmem:[%s205 + $0xd8] sm:$0xff]
      %v375 = vld [vmem:[%s205 + $0xe0] sm:$0xff]
      %v376 = vld [vmem:[%s205 + $0xe8] sm:$0xff]
      %v377 = vld [vmem:[%s205 + $0xf0] sm:$0xff]
      %v378 = vld [vmem:[%s205 + $0xf8] sm:$0xff]
      %v379 = vld [vmem:[%s205 + $0x100] sm:$0xff]
      %v380 = vld [vmem:[%s205 + $0x108] sm:$0xff]
      %v381 = vld [vmem:[%s205 + $0x110] sm:$0xff]
      %v382 = vld [vmem:[%s205 + $0x118] sm:$0xff]
      %v383 = vld [vmem:[%s205 + $0x120] sm:$0xff]
      %v384 = vld [vmem:[%s205 + $0x128] sm:$0xff]
      %v385 = vld [vmem:[%s205 + $0x130] sm:$0xff]
      %v386 = vld [vmem:[%s205 + $0x138] sm:$0xff]
      %v387 = vld [vmem:[%s205 + $0x140] sm:$0xff]
      %v388 = vld [vmem:[%s205 + $0x148] sm:$0xff]
      %v389 = vld [vmem:[%s205 + $0x150] sm:$0xff]
      %v390 = vld [vmem:[%s205 + $0x158] sm:$0xff]
      %v391 = vld [vmem:[%s205 + $0x160] sm:$0xff]
      %v392 = vld [vmem:[%s205 + $0x168] sm:$0xff]
      %v393 = vld [vmem:[%s205 + $0x170] sm:$0xff]
      %v394 = vld [vmem:[%s205 + $0x178] sm:$0xff]
      %v395 = vld [vmem:[%s205 + $0x180] sm:$0xff]
      %v396 = vld [vmem:[%s205 + $0x188] sm:$0xff]
      %v397 = vld [vmem:[%s205 + $0x190] sm:$0xff]
      %v398 = vld [vmem:[%s205 + $0x198] sm:$0xff]
      %v399 = vld [vmem:[%s205 + $0x1a0] sm:$0xff]
      %v400 = vld [vmem:[%s205 + $0x1a8] sm:$0xff]
      %v401 = vld [vmem:[%s205 + $0x1b0] sm:$0xff]
      %v402 = vld [vmem:[%s205 + $0x1b8] sm:$0xff]
      %v403 = vld [vmem:[%s205 + $0x1c0] sm:$0xff]
      %v404 = vld [vmem:[%s205 + $0x1c8] sm:$0xff]
      %v405 = vld [vmem:[%s205 + $0x1d0] sm:$0xff]
      %v406 = vld [vmem:[%s205 + $0x1d8] sm:$0xff]
      %v407 = vld [vmem:[%s205 + $0x1e0] sm:$0xff]
      %v408 = vld [vmem:[%s205 + $0x1e8] sm:$0xff]
      %v409 = vld [vmem:[%s205 + $0x1f0] sm:$0xff]
      %v410 = vld [vmem:[%s205 + $0x1f8] sm:$0xff]
      %v411 = vld [vmem:[%s205 + $0x200] sm:$0xff]
      %v412 = vld [vmem:[%s205 + $0x208] sm:$0xff]
      %v413 = vld [vmem:[%s205 + $0x210] sm:$0xff]
      %v414 = vld [vmem:[%s205 + $0x218] sm:$0xff]
      %v415 = vld [vmem:[%s205 + $0x220] sm:$0xff]
      %v416 = vld [vmem:[%s205 + $0x228] sm:$0xff]
      %v417 = vld [vmem:[%s205 + $0x230] sm:$0xff]
      %v418 = vld [vmem:[%s205 + $0x238] sm:$0xff]
      %v419 = vld [vmem:[%s205 + $0x240] sm:$0xff]
      %v420 = vld [vmem:[%s205 + $0x248] sm:$0xff]
      %v421 = vld [vmem:[%s205 + $0x250] sm:$0xff]
      %v422 = vld [vmem:[%s205 + $0x258] sm:$0xff]
      %v423 = vld [vmem:[%s205 + $0x260] sm:$0xff]
      %v424 = vld [vmem:[%s205 + $0x268] sm:$0xff]
      %v425 = vld [vmem:[%s205 + $0x270] sm:$0xff]
      %v426 = vld [vmem:[%s205 + $0x278] sm:$0xff]
      %v427 = vld [vmem:[%s205 + $0x280] sm:$0xff]
      %v428 = vld [vmem:[%s205 + $0x288] sm:$0xff]
      %v429 = vld [vmem:[%s205 + $0x290] sm:$0xff]
      %v430 = vld [vmem:[%s205 + $0x298] sm:$0xff]
      %v431 = vld [vmem:[%s205 + $0x2a0] sm:$0xff]
      %v432 = vld [vmem:[%s205 + $0x2a8] sm:$0xff]
      %v433 = vld [vmem:[%s205 + $0x2b0] sm:$0xff]
      %v434 = vld [vmem:[%s205 + $0x2b8] sm:$0xff]
      %v435 = vld [vmem:[%s205 + $0x2c0] sm:$0xff]
      %v436 = vld [vmem:[%s205 + $0x2c8] sm:$0xff]
      %v437 = vld [vmem:[%s205 + $0x2d0] sm:$0xff]
      %v438 = vld [vmem:[%s205 + $0x2d8] sm:$0xff]
      %v439 = vld [vmem:[%s205 + $0x2e0] sm:$0xff]
      %v440 = vld [vmem:[%s205 + $0x2e8] sm:$0xff]
      %v441 = vld [vmem:[%s205 + $0x2f0] sm:$0xff]
      %v442 = vld [vmem:[%s205 + $0x2f8] sm:$0xff]
      %v443 = vld [vmem:[%s205 + $0x300] sm:$0xff]
      %v444 = vld [vmem:[%s205 + $0x308] sm:$0xff]
      %v445 = vld [vmem:[%s205 + $0x310] sm:$0xff]
      %v446 = vld [vmem:[%s205 + $0x318] sm:$0xff]
      %v447 = vld [vmem:[%s205 + $0x320] sm:$0xff]
      %v448 = vld [vmem:[%s205 + $0x328] sm:$0xff]
      %v449 = vld [vmem:[%s205 + $0x330] sm:$0xff]
      %v450 = vld [vmem:[%s205 + $0x338] sm:$0xff]
      %v451 = vld [vmem:[%s205 + $0x340] sm:$0xff]
      %v452 = vld [vmem:[%s205 + $0x348] sm:$0xff]
      %v453 = vld [vmem:[%s205 + $0x350] sm:$0xff]
      %v454 = vld [vmem:[%s205 + $0x358] sm:$0xff]
      %v455 = vld [vmem:[%s205 + $0x360] sm:$0xff]
      %v456 = vld [vmem:[%s205 + $0x368] sm:$0xff]
      %v457 = vld [vmem:[%s205 + $0x370] sm:$0xff]
      %v458 = vld [vmem:[%s205 + $0x378] sm:$0xff]
      %v459 = vld [vmem:[%s205 + $0x380] sm:$0xff]
      %v460 = vld [vmem:[%s205 + $0x388] sm:$0xff]
      %v461 = vld [vmem:[%s205 + $0x390] sm:$0xff]
      %v462 = vld [vmem:[%s205 + $0x398] sm:$0xff]
      %v463 = vld [vmem:[%s205 + $0x3a0] sm:$0xff]
      %v464 = vld [vmem:[%s205 + $0x3a8] sm:$0xff]
      %v465 = vld [vmem:[%s205 + $0x3b0] sm:$0xff]
      %v466 = vld [vmem:[%s205 + $0x3b8] sm:$0xff]
      %v467 = vld [vmem:[%s205 + $0x3c0] sm:$0xff]
      %v468 = vld [vmem:[%s205 + $0x3c8] sm:$0xff]
      %v469 = vld [vmem:[%s205 + $0x3d0] sm:$0xff]
      %v470 = vld [vmem:[%s205 + $0x3d8] sm:$0xff]
      %v471 = vld [vmem:[%s205 + $0x3e0] sm:$0xff]
      %v472 = vld [vmem:[%s205 + $0x3e8] sm:$0xff]
      %v473 = vld [vmem:[%s205 + $0x3f0] sm:$0xff]
      %v474 = vld [vmem:[%s205 + $0x3f8] sm:$0xff]
      %475 = vmatprep.subr.mxu0 0.0
      %476 = vmatpush1.xpose.msra.mxu0 %v219
      %477 = vmatprep.subr.mxu0 0.0
      %478 = vmatpush1.xpose.msra.mxu0 %v220
      %479 = vmatprep.subr.mxu0 0.0
      %480 = vmatpush1.xpose.msra.mxu0 %v221
      %481 = vmatprep.subr.mxu0 0.0
      %482 = vmatpush1.xpose.msra.mxu0 %v222
      %483 = vmatprep.subr.mxu0 0.0
      %484 = vmatpush1.xpose.msra.mxu0 %v223
      %485 = vmatprep.subr.mxu0 0.0
      %486 = vmatpush1.xpose.msra.mxu0 %v224
      %487 = vmatprep.subr.mxu0 0.0
      %488 = vmatpush1.xpose.msra.mxu0 %v225
      %489 = vmatprep.subr.mxu0 0.0
      %490 = vmatpush1.xpose.msra.mxu0 %v226
      %491 = vmatprep.subr.mxu0 0.0
      %492 = vmatpush1.xpose.msra.mxu0 %v227
      %493 = vmatprep.subr.mxu0 0.0
      %494 = vmatpush1.xpose.msra.mxu0 %v228
      %495 = vmatprep.subr.mxu0 0.0
      %496 = vmatpush1.xpose.msra.mxu0 %v229
      %497 = vmatprep.subr.mxu0 0.0
      %498 = vmatpush1.xpose.msra.mxu0 %v230
      %499 = vmatprep.subr.mxu0 0.0
      %500 = vmatpush1.xpose.msra.mxu0 %v231
      %501 = vmatprep.subr.mxu0 0.0
      %502 = vmatpush1.xpose.msra.mxu0 %v232
      %503 = vmatprep.subr.mxu0 0.0
      %504 = vmatpush1.xpose.msra.mxu0 %v233
      %505 = vmatprep.subr.mxu0 0.0
      %506 = vmatpush1.xpose.msra.mxu0 %v234
      %507 = vmatprep.subr.mxu0 0.0
      %508 = vmatpush1.xpose.msra.mxu0 0.0
      %509 = vmatprep.subr.mxu0 0.0
      %510 = vmatpush1.xpose.msra.mxu0 0.0
      %511 = vmatprep.subr.mxu0 0.0
      %512 = vmatpush1.xpose.msra.mxu0 0.0
      %513 = vmatprep.subr.mxu0 0.0
      %514 = vmatpush1.xpose.msra.mxu0 0.0
      %515 = vmatprep.subr.mxu0 0.0
      %516 = vmatpush1.xpose.msra.mxu0 0.0
      %517 = vmatprep.subr.mxu0 0.0
      %518 = vmatpush1.xpose.msra.mxu0 0.0
      %519 = vmatprep.subr.mxu0 0.0
      %520 = vmatpush1.xpose.msra.mxu0 0.0
      %521 = vmatprep.subr.mxu0 0.0
      %522 = vmatpush1.xpose.msra.mxu0 0.0
      %523 = vmatprep.subr.mxu0 0.0
      %524 = vmatpush1.xpose.msra.mxu0 0.0
      %525 = vmatprep.subr.mxu0 0.0
      %526 = vmatpush1.xpose.msra.mxu0 0.0
      %527 = vmatprep.subr.mxu0 0.0
      %528 = vmatpush1.xpose.msra.mxu0 0.0
      %529 = vmatprep.subr.mxu0 0.0
      %530 = vmatpush1.xpose.msra.mxu0 0.0
      %531 = vmatprep.subr.mxu0 0.0
      %532 = vmatpush1.xpose.msra.mxu0 0.0
      %533 = vmatprep.subr.mxu0 0.0
      %534 = vmatpush1.xpose.msra.mxu0 0.0
      %535 = vmatprep.subr.mxu0 0.0
      %536 = vmatpush1.xpose.msra.mxu0 0.0
      %537 = vmatprep.subr.mxu0 0.0
      %538 = vmatpush1.xpose.msra.mxu0 0.0
      %539 = vmatprep.mubr.f32.mxu0 0.0
      %540 = vmatmul.mubr.f32.gmra.mrb[0].mxu0 %v211
      %v541 = vpop.f32.mrb[0].mxu0
      %v542 = vadd.f32 0.0, %v541
      %v543 = vpop.f32.mrb[0].mxu0
      %544 = vdwg.mxu0
      %545 = vmatprep.subr.mxu0 0.0
      %546 = vmatpush1.xpose.msra.mxu0 %v235
      %547 = vmatprep.subr.mxu0 0.0
      %548 = vmatpush1.xpose.msra.mxu0 %v236
      %549 = vmatprep.subr.mxu0 0.0
      %550 = vmatpush1.xpose.msra.mxu0 %v237
      %551 = vmatprep.subr.mxu0 0.0
      %552 = vmatpush1.xpose.msra.mxu0 %v238
      %553 = vmatprep.subr.mxu0 0.0
      %554 = vmatpush1.xpose.msra.mxu0 %v239
      %555 = vmatprep.subr.mxu0 0.0
      %556 = vmatpush1.xpose.msra.mxu0 %v240
      %557 = vmatprep.subr.mxu0 0.0
      %558 = vmatpush1.xpose.msra.mxu0 %v241
      %559 = vmatprep.subr.mxu0 0.0
      %560 = vmatpush1.xpose.msra.mxu0 %v242
      %561 = vmatprep.subr.mxu0 0.0
      %562 = vmatpush1.xpose.msra.mxu0 %v243
      %563 = vmatprep.subr.mxu0 0.0
      %564 = vmatpush1.xpose.msra.mxu0 %v244
      %565 = vmatprep.subr.mxu0 0.0
      %566 = vmatpush1.xpose.msra.mxu0 %v245
      %567 = vmatprep.subr.mxu0 0.0
      %568 = vmatpush1.xpose.msra.mxu0 %v246
      %569 = vmatprep.subr.mxu0 0.0
      %570 = vmatpush1.xpose.msra.mxu0 %v247
      %571 = vmatprep.subr.mxu0 0.0
      %572 = vmatpush1.xpose.msra.mxu0 %v248
      %573 = vmatprep.subr.mxu0 0.0
      %574 = vmatpush1.xpose.msra.mxu0 %v249
      %575 = vmatprep.subr.mxu0 0.0
      %576 = vmatpush1.xpose.msra.mxu0 %v250
      %577 = vmatprep.subr.mxu0 0.0
      %578 = vmatpush1.xpose.msra.mxu0 0.0
      %579 = vmatprep.subr.mxu0 0.0
      %580 = vmatpush1.xpose.msra.mxu0 0.0
      %581 = vmatprep.subr.mxu0 0.0
      %582 = vmatpush1.xpose.msra.mxu0 0.0
      %583 = vmatprep.subr.mxu0 0.0
      %584 = vmatpush1.xpose.msra.mxu0 0.0
      %585 = vmatprep.subr.mxu0 0.0
      %586 = vmatpush1.xpose.msra.mxu0 0.0
      %587 = vmatprep.subr.mxu0 0.0
      %588 = vmatpush1.xpose.msra.mxu0 0.0
      %589 = vmatprep.subr.mxu0 0.0
      %590 = vmatpush1.xpose.msra.mxu0 0.0
      %591 = vmatprep.subr.mxu0 0.0
      %592 = vmatpush1.xpose.msra.mxu0 0.0
      %593 = vmatprep.subr.mxu0 0.0
      %594 = vmatpush1.xpose.msra.mxu0 0.0
      %595 = vmatprep.subr.mxu0 0.0
      %596 = vmatpush1.xpose.msra.mxu0 0.0
      %597 = vmatprep.subr.mxu0 0.0
      %598 = vmatpush1.xpose.msra.mxu0 0.0
      %599 = vmatprep.subr.mxu0 0.0
      %600 = vmatpush1.xpose.msra.mxu0 0.0
      %601 = vmatprep.subr.mxu0 0.0
      %602 = vmatpush1.xpose.msra.mxu0 0.0
      %603 = vmatprep.subr.mxu0 0.0
      %604 = vmatpush1.xpose.msra.mxu0 0.0
      %605 = vmatprep.subr.mxu0 0.0
      %606 = vmatpush1.xpose.msra.mxu0 0.0
      %607 = vmatprep.subr.mxu0 0.0
      %608 = vmatpush1.xpose.msra.mxu0 0.0
      %609 = vmatprep.mubr.f32.mxu0 0.0
      %610 = vmatmul.mubr.f32.gmra.mrb[0].mxu0 %v212
      %v611 = vpop.f32.mrb[0].mxu0
      %v612 = vadd.f32 0.0, %v611
      %v613 = vpop.f32.mrb[0].mxu0
      %614 = vdwg.mxu0
      %615 = vmatprep.subr.mxu0 0.0
      %616 = vmatpush1.xpose.msra.mxu0 %v251
      %617 = vmatprep.subr.mxu0 0.0
      %618 = vmatpush1.xpose.msra.mxu0 %v252
      %619 = vmatprep.subr.mxu0 0.0
      %620 = vmatpush1.xpose.msra.mxu0 %v253
      %621 = vmatprep.subr.mxu0 0.0
      %622 = vmatpush1.xpose.msra.mxu0 %v254
      %623 = vmatprep.subr.mxu0 0.0
      %624 = vmatpush1.xpose.msra.mxu0 %v255
      %625 = vmatprep.subr.mxu0 0.0
      %626 = vmatpush1.xpose.msra.mxu0 %v256
      %627 = vmatprep.subr.mxu0 0.0
      %628 = vmatpush1.xpose.msra.mxu0 %v257
      %629 = vmatprep.subr.mxu0 0.0
      %630 = vmatpush1.xpose.msra.mxu0 %v258
      %631 = vmatprep.subr.mxu0 0.0
      %632 = vmatpush1.xpose.msra.mxu0 %v259
      %633 = vmatprep.subr.mxu0 0.0
      %634 = vmatpush1.xpose.msra.mxu0 %v260
      %635 = vmatprep.subr.mxu0 0.0
      %636 = vmatpush1.xpose.msra.mxu0 %v261
      %637 = vmatprep.subr.mxu0 0.0
      %638 = vmatpush1.xpose.msra.mxu0 %v262
      %639 = vmatprep.subr.mxu0 0.0
      %640 = vmatpush1.xpose.msra.mxu0 %v263
      %641 = vmatprep.subr.mxu0 0.0
      %642 = vmatpush1.xpose.msra.mxu0 %v264
      %643 = vmatprep.subr.mxu0 0.0
      %644 = vmatpush1.xpose.msra.mxu0 %v265
      %645 = vmatprep.subr.mxu0 0.0
      %646 = vmatpush1.xpose.msra.mxu0 %v266
      %647 = vmatprep.subr.mxu0 0.0
      %648 = vmatpush1.xpose.msra.mxu0 0.0
      %649 = vmatprep.subr.mxu0 0.0
      %650 = vmatpush1.xpose.msra.mxu0 0.0
      %651 = vmatprep.subr.mxu0 0.0
      %652 = vmatpush1.xpose.msra.mxu0 0.0
      %653 = vmatprep.subr.mxu0 0.0
      %654 = vmatpush1.xpose.msra.mxu0 0.0
      %655 = vmatprep.subr.mxu0 0.0
      %656 = vmatpush1.xpose.msra.mxu0 0.0
      %657 = vmatprep.subr.mxu0 0.0
      %658 = vmatpush1.xpose.msra.mxu0 0.0
      %659 = vmatprep.subr.mxu0 0.0
      %660 = vmatpush1.xpose.msra.mxu0 0.0
      %661 = vmatprep.subr.mxu0 0.0
      %662 = vmatpush1.xpose.msra.mxu0 0.0
      %663 = vmatprep.subr.mxu0 0.0
      %664 = vmatpush1.xpose.msra.mxu0 0.0
      %665 = vmatprep.subr.mxu0 0.0
      %666 = vmatpush1.xpose.msra.mxu0 0.0
      %667 = vmatprep.subr.mxu0 0.0
      %668 = vmatpush1.xpose.msra.mxu0 0.0
      %669 = vmatprep.subr.mxu0 0.0
      %670 = vmatpush1.xpose.msra.mxu0 0.0
      %671 = vmatprep.subr.mxu0 0.0
      %672 = vmatpush1.xpose.msra.mxu0 0.0
      %673 = vmatprep.subr.mxu0 0.0
      %674 = vmatpush1.xpose.msra.mxu0 0.0
      %675 = vmatprep.subr.mxu0 0.0
      %676 = vmatpush1.xpose.msra.mxu0 0.0
      %677 = vmatprep.subr.mxu0 0.0
      %678 = vmatpush1.xpose.msra.mxu0 0.0
      %679 = vmatprep.mubr.f32.mxu0 0.0
      %680 = vmatmul.mubr.f32.gmra.mrb[0].mxu0 %v213
      %v681 = vpop.f32.mrb[0].mxu0
      %v682 = vadd.f32 0.0, %v681
      %v683 = vpop.f32.mrb[0].mxu0
      %684 = vdwg.mxu0
      %685 = vmatprep.subr.mxu0 0.0
      %686 = vmatpush1.xpose.msra.mxu0 %v267
      %687 = vmatprep.subr.mxu0 0.0
      %688 = vmatpush1.xpose.msra.mxu0 %v268
      %689 = vmatprep.subr.mxu0 0.0
      %690 = vmatpush1.xpose.msra.mxu0 %v269
      %691 = vmatprep.subr.mxu0 0.0
      %692 = vmatpush1.xpose.msra.mxu0 %v270
      %693 = vmatprep.subr.mxu0 0.0
      %694 = vmatpush1.xpose.msra.mxu0 %v271
      %695 = vmatprep.subr.mxu0 0.0
      %696 = vmatpush1.xpose.msra.mxu0 %v272
      %697 = vmatprep.subr.mxu0 0.0
      %698 = vmatpush1.xpose.msra.mxu0 %v273
      %699 = vmatprep.subr.mxu0 0.0
      %700 = vmatpush1.xpose.msra.mxu0 %v274
      %701 = vmatprep.subr.mxu0 0.0
      %702 = vmatpush1.xpose.msra.mxu0 %v275
      %703 = vmatprep.subr.mxu0 0.0
      %704 = vmatpush1.xpose.msra.mxu0 %v276
      %705 = vmatprep.subr.mxu0 0.0
      %706 = vmatpush1.xpose.msra.mxu0 %v277
      %707 = vmatprep.subr.mxu0 0.0
      %708 = vmatpush1.xpose.msra.mxu0 %v278
      %709 = vmatprep.subr.mxu0 0.0
      %710 = vmatpush1.xpose.msra.mxu0 %v279
      %711 = vmatprep.subr.mxu0 0.0
      %712 = vmatpush1.xpose.msra.mxu0 %v280
      %713 = vmatprep.subr.mxu0 0.0
      %714 = vmatpush1.xpose.msra.mxu0 %v281
      %715 = vmatprep.subr.mxu0 0.0
      %716 = vmatpush1.xpose.msra.mxu0 %v282
      %717 = vmatprep.subr.mxu0 0.0
      %718 = vmatpush1.xpose.msra.mxu0 0.0
      %719 = vmatprep.subr.mxu0 0.0
      %720 = vmatpush1.xpose.msra.mxu0 0.0
      %721 = vmatprep.subr.mxu0 0.0
      %722 = vmatpush1.xpose.msra.mxu0 0.0
      %723 = vmatprep.subr.mxu0 0.0
      %724 = vmatpush1.xpose.msra.mxu0 0.0
      %725 = vmatprep.subr.mxu0 0.0
      %726 = vmatpush1.xpose.msra.mxu0 0.0
      %727 = vmatprep.subr.mxu0 0.0
      %728 = vmatpush1.xpose.msra.mxu0 0.0
      %729 = vmatprep.subr.mxu0 0.0
      %730 = vmatpush1.xpose.msra.mxu0 0.0
      %731 = vmatprep.subr.mxu0 0.0
      %732 = vmatpush1.xpose.msra.mxu0 0.0
      %733 = vmatprep.subr.mxu0 0.0
      %734 = vmatpush1.xpose.msra.mxu0 0.0
      %735 = vmatprep.subr.mxu0 0.0
      %736 = vmatpush1.xpose.msra.mxu0 0.0
      %737 = vmatprep.subr.mxu0 0.0
      %738 = vmatpush1.xpose.msra.mxu0 0.0
      %739 = vmatprep.subr.mxu0 0.0
      %740 = vmatpush1.xpose.msra.mxu0 0.0
      %741 = vmatprep.subr.mxu0 0.0
      %742 = vmatpush1.xpose.msra.mxu0 0.0
      %743 = vmatprep.subr.mxu0 0.0
      %744 = vmatpush1.xpose.msra.mxu0 0.0
      %745 = vmatprep.subr.mxu0 0.0
      %746 = vmatpush1.xpose.msra.mxu0 0.0
      %747 = vmatprep.subr.mxu0 0.0
      %748 = vmatpush1.xpose.msra.mxu0 0.0
      %749 = vmatprep.mubr.f32.mxu0 0.0
      %750 = vmatmul.mubr.f32.gmra.mrb[0].mxu0 %v214
      %v751 = vpop.f32.mrb[0].mxu0
      %v752 = vadd.f32 0.0, %v751
      %v753 = vpop.f32.mrb[0].mxu0
      %754 = vdwg.mxu0
      %755 = vmatprep.subr.mxu0 0.0
      %756 = vmatpush1.xpose.msra.mxu0 %v283
      %757 = vmatprep.subr.mxu0 0.0
      %758 = vmatpush1.xpose.msra.mxu0 %v284
      %759 = vmatprep.subr.mxu0 0.0
      %760 = vmatpush1.xpose.msra.mxu0 %v285
      %761 = vmatprep.subr.mxu0 0.0
      %762 = vmatpush1.xpose.msra.mxu0 %v286
      %763 = vmatprep.subr.mxu0 0.0
      %764 = vmatpush1.xpose.msra.mxu0 %v287
      %765 = vmatprep.subr.mxu0 0.0
      %766 = vmatpush1.xpose.msra.mxu0 %v288
      %767 = vmatprep.subr.mxu0 0.0
      %768 = vmatpush1.xpose.msra.mxu0 %v289
      %769 = vmatprep.subr.mxu0 0.0
      %770 = vmatpush1.xpose.msra.mxu0 %v290
      %771 = vmatprep.subr.mxu0 0.0
      %772 = vmatpush1.xpose.msra.mxu0 %v291
      %773 = vmatprep.subr.mxu0 0.0
      %774 = vmatpush1.xpose.msra.mxu0 %v292
      %775 = vmatprep.subr.mxu0 0.0
      %776 = vmatpush1.xpose.msra.mxu0 %v293
      %777 = vmatprep.subr.mxu0 0.0
      %778 = vmatpush1.xpose.msra.mxu0 %v294
      %779 = vmatprep.subr.mxu0 0.0
      %780 = vmatpush1.xpose.msra.mxu0 %v295
      %781 = vmatprep.subr.mxu0 0.0
      %782 = vmatpush1.xpose.msra.mxu0 %v296
      %783 = vmatprep.subr.mxu0 0.0
      %784 = vmatpush1.xpose.msra.mxu0 %v297
      %785 = vmatprep.subr.mxu0 0.0
      %786 = vmatpush1.xpose.msra.mxu0 %v298
      %787 = vmatprep.subr.mxu0 0.0
      %788 = vmatpush1.xpose.msra.mxu0 0.0
      %789 = vmatprep.subr.mxu0 0.0
      %790 = vmatpush1.xpose.msra.mxu0 0.0
      %791 = vmatprep.subr.mxu0 0.0
      %792 = vmatpush1.xpose.msra.mxu0 0.0
      %793 = vmatprep.subr.mxu0 0.0
      %794 = vmatpush1.xpose.msra.mxu0 0.0
      %795 = vmatprep.subr.mxu0 0.0
      %796 = vmatpush1.xpose.msra.mxu0 0.0
      %797 = vmatprep.subr.mxu0 0.0
      %798 = vmatpush1.xpose.msra.mxu0 0.0
      %799 = vmatprep.subr.mxu0 0.0
      %800 = vmatpush1.xpose.msra.mxu0 0.0
      %801 = vmatprep.subr.mxu0 0.0
      %802 = vmatpush1.xpose.msra.mxu0 0.0
      %803 = vmatprep.subr.mxu0 0.0
      %804 = vmatpush1.xpose.msra.mxu0 0.0
      %805 = vmatprep.subr.mxu0 0.0
      %806 = vmatpush1.xpose.msra.mxu0 0.0
      %807 = vmatprep.subr.mxu0 0.0
      %808 = vmatpush1.xpose.msra.mxu0 0.0
      %809 = vmatprep.subr.mxu0 0.0
      %810 = vmatpush1.xpose.msra.mxu0 0.0
      %811 = vmatprep.subr.mxu0 0.0
      %812 = vmatpush1.xpose.msra.mxu0 0.0
      %813 = vmatprep.subr.mxu0 0.0
      %814 = vmatpush1.xpose.msra.mxu0 0.0
      %815 = vmatprep.subr.mxu0 0.0
      %816 = vmatpush1.xpose.msra.mxu0 0.0
      %817 = vmatprep.subr.mxu0 0.0
      %818 = vmatpush1.xpose.msra.mxu0 0.0
      %819 = vmatprep.mubr.f32.mxu0 0.0
      %820 = vmatmul.mubr.f32.gmra.mrb[0].mxu0 %v215
      %v821 = vpop.f32.mrb[0].mxu0
      %v822 = vadd.f32 0.0, %v821
      %v823 = vpop.f32.mrb[0].mxu0
      %824 = vdwg.mxu0
      %825 = vmatprep.subr.mxu0 0.0
      %826 = vmatpush1.xpose.msra.mxu0 %v299
      %827 = vmatprep.subr.mxu0 0.0
      %828 = vmatpush1.xpose.msra.mxu0 %v300
      %829 = vmatprep.subr.mxu0 0.0
      %830 = vmatpush1.xpose.msra.mxu0 %v301
      %831 = vmatprep.subr.mxu0 0.0
      %832 = vmatpush1.xpose.msra.mxu0 %v302
      %833 = vmatprep.subr.mxu0 0.0
      %834 = vmatpush1.xpose.msra.mxu0 %v303
      %835 = vmatprep.subr.mxu0 0.0
      %836 = vmatpush1.xpose.msra.mxu0 %v304
      %837 = vmatprep.subr.mxu0 0.0
      %838 = vmatpush1.xpose.msra.mxu0 %v305
      %839 = vmatprep.subr.mxu0 0.0
      %840 = vmatpush1.xpose.msra.mxu0 %v306
      %841 = vmatprep.subr.mxu0 0.0
      %842 = vmatpush1.xpose.msra.mxu0 %v307
      %843 = vmatprep.subr.mxu0 0.0
      %844 = vmatpush1.xpose.msra.mxu0 %v308
      %845 = vmatprep.subr.mxu0 0.0
      %846 = vmatpush1.xpose.msra.mxu0 %v309
      %847 = vmatprep.subr.mxu0 0.0
      %848 = vmatpush1.xpose.msra.mxu0 %v310
      %849 = vmatprep.subr.mxu0 0.0
      %850 = vmatpush1.xpose.msra.mxu0 %v311
      %851 = vmatprep.subr.mxu0 0.0
      %852 = vmatpush1.xpose.msra.mxu0 %v312
      %853 = vmatprep.subr.mxu0 0.0
      %854 = vmatpush1.xpose.msra.mxu0 %v313
      %855 = vmatprep.subr.mxu0 0.0
      %856 = vmatpush1.xpose.msra.mxu0 %v314
      %857 = vmatprep.subr.mxu0 0.0
      %858 = vmatpush1.xpose.msra.mxu0 0.0
      %859 = vmatprep.subr.mxu0 0.0
      %860 = vmatpush1.xpose.msra.mxu0 0.0
      %861 = vmatprep.subr.mxu0 0.0
      %862 = vmatpush1.xpose.msra.mxu0 0.0
      %863 = vmatprep.subr.mxu0 0.0
      %864 = vmatpush1.xpose.msra.mxu0 0.0
      %865 = vmatprep.subr.mxu0 0.0
      %866 = vmatpush1.xpose.msra.mxu0 0.0
      %867 = vmatprep.subr.mxu0 0.0
      %868 = vmatpush1.xpose.msra.mxu0 0.0
      %869 = vmatprep.subr.mxu0 0.0
      %870 = vmatpush1.xpose.msra.mxu0 0.0
      %871 = vmatprep.subr.mxu0 0.0
      %872 = vmatpush1.xpose.msra.mxu0 0.0
      %873 = vmatprep.subr.mxu0 0.0
      %874 = vmatpush1.xpose.msra.mxu0 0.0
      %875 = vmatprep.subr.mxu0 0.0
      %876 = vmatpush1.xpose.msra.mxu0 0.0
      %877 = vmatprep.subr.mxu0 0.0
      %878 = vmatpush1.xpose.msra.mxu0 0.0
      %879 = vmatprep.subr.mxu0 0.0
      %880 = vmatpush1.xpose.msra.mxu0 0.0
      %881 = vmatprep.subr.mxu0 0.0
      %882 = vmatpush1.xpose.msra.mxu0 0.0
      %883 = vmatprep.subr.mxu0 0.0
      %884 = vmatpush1.xpose.msra.mxu0 0.0
      %885 = vmatprep.subr.mxu0 0.0
      %886 = vmatpush1.xpose.msra.mxu0 0.0
      %887 = vmatprep.subr.mxu0 0.0
      %888 = vmatpush1.xpose.msra.mxu0 0.0
      %889 = vmatprep.mubr.f32.mxu0 0.0
      %890 = vmatmul.mubr.f32.gmra.mrb[0].mxu0 %v216
      %v891 = vpop.f32.mrb[0].mxu0
      %v892 = vadd.f32 0.0, %v891
      %v893 = vpop.f32.mrb[0].mxu0
      %894 = vdwg.mxu0
      %895 = vmatprep.subr.mxu0 0.0
      %896 = vmatpush1.xpose.msra.mxu0 %v315
      %897 = vmatprep.subr.mxu0 0.0
      %898 = vmatpush1.xpose.msra.mxu0 %v316
      %899 = vmatprep.subr.mxu0 0.0
      %900 = vmatpush1.xpose.msra.mxu0 %v317
      %901 = vmatprep.subr.mxu0 0.0
      %902 = vmatpush1.xpose.msra.mxu0 %v318
      %903 = vmatprep.subr.mxu0 0.0
      %904 = vmatpush1.xpose.msra.mxu0 %v319
      %905 = vmatprep.subr.mxu0 0.0
      %906 = vmatpush1.xpose.msra.mxu0 %v320
      %907 = vmatprep.subr.mxu0 0.0
      %908 = vmatpush1.xpose.msra.mxu0 %v321
      %909 = vmatprep.subr.mxu0 0.0
      %910 = vmatpush1.xpose.msra.mxu0 %v322
      %911 = vmatprep.subr.mxu0 0.0
      %912 = vmatpush1.xpose.msra.mxu0 %v323
      %913 = vmatprep.subr.mxu0 0.0
      %914 = vmatpush1.xpose.msra.mxu0 %v324
      %915 = vmatprep.subr.mxu0 0.0
      %916 = vmatpush1.xpose.msra.mxu0 %v325
      %917 = vmatprep.subr.mxu0 0.0
      %918 = vmatpush1.xpose.msra.mxu0 %v326
      %919 = vmatprep.subr.mxu0 0.0
      %920 = vmatpush1.xpose.msra.mxu0 %v327
      %921 = vmatprep.subr.mxu0 0.0
      %922 = vmatpush1.xpose.msra.mxu0 %v328
      %923 = vmatprep.subr.mxu0 0.0
      %924 = vmatpush1.xpose.msra.mxu0 %v329
      %925 = vmatprep.subr.mxu0 0.0
      %926 = vmatpush1.xpose.msra.mxu0 %v330
      %927 = vmatprep.subr.mxu0 0.0
      %928 = vmatpush1.xpose.msra.mxu0 0.0
      %929 = vmatprep.subr.mxu0 0.0
      %930 = vmatpush1.xpose.msra.mxu0 0.0
      %931 = vmatprep.subr.mxu0 0.0
      %932 = vmatpush1.xpose.msra.mxu0 0.0
      %933 = vmatprep.subr.mxu0 0.0
      %934 = vmatpush1.xpose.msra.mxu0 0.0
      %935 = vmatprep.subr.mxu0 0.0
      %936 = vmatpush1.xpose.msra.mxu0 0.0
      %937 = vmatprep.subr.mxu0 0.0
      %938 = vmatpush1.xpose.msra.mxu0 0.0
      %939 = vmatprep.subr.mxu0 0.0
      %940 = vmatpush1.xpose.msra.mxu0 0.0
      %941 = vmatprep.subr.mxu0 0.0
      %942 = vmatpush1.xpose.msra.mxu0 0.0
      %943 = vmatprep.subr.mxu0 0.0
      %944 = vmatpush1.xpose.msra.mxu0 0.0
      %945 = vmatprep.subr.mxu0 0.0
      %946 = vmatpush1.xpose.msra.mxu0 0.0
      %947 = vmatprep.subr.mxu0 0.0
      %948 = vmatpush1.xpose.msra.mxu0 0.0
      %949 = vmatprep.subr.mxu0 0.0
      %950 = vmatpush1.xpose.msra.mxu0 0.0
      %951 = vmatprep.subr.mxu0 0.0
      %952 = vmatpush1.xpose.msra.mxu0 0.0
      %953 = vmatprep.subr.mxu0 0.0
      %954 = vmatpush1.xpose.msra.mxu0 0.0
      %955 = vmatprep.subr.mxu0 0.0
      %956 = vmatpush1.xpose.msra.mxu0 0.0
      %957 = vmatprep.subr.mxu0 0.0
      %958 = vmatpush1.xpose.msra.mxu0 0.0
      %959 = vmatprep.mubr.f32.mxu0 0.0
      %960 = vmatmul.mubr.f32.gmra.mrb[0].mxu0 %v217
      %v961 = vpop.f32.mrb[0].mxu0
      %v962 = vadd.f32 0.0, %v961
      %v963 = vpop.f32.mrb[0].mxu0
      %964 = vdwg.mxu0
      %965 = vmatprep.subr.mxu0 0.0
      %966 = vmatpush1.xpose.msra.mxu0 %v331
      %967 = vmatprep.subr.mxu0 0.0
      %968 = vmatpush1.xpose.msra.mxu0 %v332
      %969 = vmatprep.subr.mxu0 0.0
      %970 = vmatpush1.xpose.msra.mxu0 %v333
      %971 = vmatprep.subr.mxu0 0.0
      %972 = vmatpush1.xpose.msra.mxu0 %v334
      %973 = vmatprep.subr.mxu0 0.0
      %974 = vmatpush1.xpose.msra.mxu0 %v335
      %975 = vmatprep.subr.mxu0 0.0
      %976 = vmatpush1.xpose.msra.mxu0 %v336
      %977 = vmatprep.subr.mxu0 0.0
      %978 = vmatpush1.xpose.msra.mxu0 %v337
      %979 = vmatprep.subr.mxu0 0.0
      %980 = vmatpush1.xpose.msra.mxu0 %v338
      %981 = vmatprep.subr.mxu0 0.0
      %982 = vmatpush1.xpose.msra.mxu0 %v339
      %983 = vmatprep.subr.mxu0 0.0
      %984 = vmatpush1.xpose.msra.mxu0 %v340
      %985 = vmatprep.subr.mxu0 0.0
      %986 = vmatpush1.xpose.msra.mxu0 %v341
      %987 = vmatprep.subr.mxu0 0.0
      %988 = vmatpush1.xpose.msra.mxu0 %v342
      %989 = vmatprep.subr.mxu0 0.0
      %990 = vmatpush1.xpose.msra.mxu0 %v343
      %991 = vmatprep.subr.mxu0 0.0
      %992 = vmatpush1.xpose.msra.mxu0 %v344
      %993 = vmatprep.subr.mxu0 0.0
      %994 = vmatpush1.xpose.msra.mxu0 %v345
      %995 = vmatprep.subr.mxu0 0.0
      %996 = vmatpush1.xpose.msra.mxu0 %v346
      %997 = vmatprep.subr.mxu0 0.0
      %998 = vmatpush1.xpose.msra.mxu0 0.0
      %999 = vmatprep.subr.mxu0 0.0
      %1000 = vmatpush1.xpose.msra.mxu0 0.0
      %1001 = vmatprep.subr.mxu0 0.0
      %1002 = vmatpush1.xpose.msra.mxu0 0.0
      %1003 = vmatprep.subr.mxu0 0.0
      %1004 = vmatpush1.xpose.msra.mxu0 0.0
      %1005 = vmatprep.subr.mxu0 0.0
      %1006 = vmatpush1.xpose.msra.mxu0 0.0
      %1007 = vmatprep.subr.mxu0 0.0
      %1008 = vmatpush1.xpose.msra.mxu0 0.0
      %1009 = vmatprep.subr.mxu0 0.0
      %1010 = vmatpush1.xpose.msra.mxu0 0.0
      %1011 = vmatprep.subr.mxu0 0.0
      %1012 = vmatpush1.xpose.msra.mxu0 0.0
      %1013 = vmatprep.subr.mxu0 0.0
      %1014 = vmatpush1.xpose.msra.mxu0 0.0
      %1015 = vmatprep.subr.mxu0 0.0
      %1016 = vmatpush1.xpose.msra.mxu0 0.0
      %1017 = vmatprep.subr.mxu0 0.0
      %1018 = vmatpush1.xpose.msra.mxu0 0.0
      %1019 = vmatprep.subr.mxu0 0.0
      %1020 = vmatpush1.xpose.msra.mxu0 0.0
      %1021 = vmatprep.subr.mxu0 0.0
      %1022 = vmatpush1.xpose.msra.mxu0 0.0
      %1023 = vmatprep.subr.mxu0 0.0
      %1024 = vmatpush1.xpose.msra.mxu0 0.0
      %1025 = vmatprep.subr.mxu0 0.0
      %1026 = vmatpush1.xpose.msra.mxu0 0.0
      %1027 = vmatprep.subr.mxu0 0.0
      %1028 = vmatpush1.xpose.msra.mxu0 0.0
      %1029 = vmatprep.mubr.f32.mxu0 0.0
      %1030 = vmatmul.mubr.f32.gmra.mrb[0].mxu0 %v218
      %v1031 = vpop.f32.mrb[0].mxu0
      %v1032 = vadd.f32 0.0, %v1031
      %v1033 = vpop.f32.mrb[0].mxu0
      %1034 = vdwg.mxu0
      %v1035 = vmul.f32 %v542, 0.35355338
      %v1036 = vmul.f32 %v612, 0.35355338
      %v1037 = vmul.f32 %v682, 0.35355338
      %v1038 = vmul.f32 %v752, 0.35355338
      %v1039 = vmul.f32 %v822, 0.35355338
      %v1040 = vmul.f32 %v892, 0.35355338
      %v1041 = vmul.f32 %v962, 0.35355338
      %v1042 = vmul.f32 %v1032, 0.35355338
      %v1043 = vlaneseq
      %v1044 = vand.u32 %v1043, 127
      %vm1045 = vcmp.lt.s32.totalorder %v1044, 1
      %v1046 = vsel %vm1045, %v1035, -1e+30
      %v1047 = vsel %vm1045, %v1036, -1e+30
      %v1048 = vsel %vm1045, %v1037, -1e+30
      %v1049 = vsel %vm1045, %v1038, -1e+30
      %v1050 = vsel %vm1045, %v1039, -1e+30
      %v1051 = vsel %vm1045, %v1040, -1e+30
      %v1052 = vsel %vm1045, %v1041, -1e+30
      %v1053 = vsel %vm1045, %v1042, -1e+30
      %1054 = vmax.xlane.f32.xlu0 %v1046
      %v1055 = vpop.xlane.xlu0 %1054
      %1056 = vmax.xlane.f32.xlu0 %v1047
      %v1057 = vpop.xlane.xlu0 %1056
      %1058 = vmax.xlane.f32.xlu0 %v1048
      %v1059 = vpop.xlane.xlu0 %1058
      %1060 = vmax.xlane.f32.xlu0 %v1049
      %v1061 = vpop.xlane.xlu0 %1060
      %1062 = vmax.xlane.f32.xlu0 %v1050
      %v1063 = vpop.xlane.xlu0 %1062
      %1064 = vmax.xlane.f32.xlu0 %v1051
      %v1065 = vpop.xlane.xlu0 %1064
      %1066 = vmax.xlane.f32.xlu0 %v1052
      %v1067 = vpop.xlane.xlu0 %1066
      %1068 = vmax.xlane.f32.xlu0 %v1053
      %v1069 = vpop.xlane.xlu0 %1068
      %v1070 = vsub.f32 %v1046, %v1055
      %v1071 = vsub.f32 %v1047, %v1057
      %v1072 = vsub.f32 %v1048, %v1059
      %v1073 = vsub.f32 %v1049, %v1061
      %v1074 = vsub.f32 %v1050, %v1063
      %v1075 = vsub.f32 %v1051, %v1065
      %v1076 = vsub.f32 %v1052, %v1067
      %v1077 = vsub.f32 %v1053, %v1069
      %v1078 = vmul.f32 %v1070, 1.442695
      %v1079 = vpow.pop %v1078
      %v1080 = vmul.f32 %v1071, 1.442695
      %v1081 = vpow.pop %v1080
      %v1082 = vmul.f32 %v1072, 1.442695
      %v1083 = vpow.pop %v1082
      %v1084 = vmul.f32 %v1073, 1.442695
      %v1085 = vpow.pop %v1084
      %v1086 = vmul.f32 %v1074, 1.442695
      %v1087 = vpow.pop %v1086
      %v1088 = vmul.f32 %v1075, 1.442695
      %v1089 = vpow.pop %v1088
      %v1090 = vmul.f32 %v1076, 1.442695
      %v1091 = vpow.pop %v1090
      %v1092 = vmul.f32 %v1077, 1.442695
      %v1093 = vpow.pop %v1092
      %1094 = vadd.xlane.f32.xlu0 %v1079
      %v1095 = vpop.xlane.xlu0 %1094
      %1096 = vadd.xlane.f32.xlu0 %v1081
      %v1097 = vpop.xlane.xlu0 %1096
      %1098 = vadd.xlane.f32.xlu0 %v1083
      %v1099 = vpop.xlane.xlu0 %1098
      %1100 = vadd.xlane.f32.xlu0 %v1085
      %v1101 = vpop.xlane.xlu0 %1100
      %1102 = vadd.xlane.f32.xlu0 %v1087
      %v1103 = vpop.xlane.xlu0 %1102
      %1104 = vadd.xlane.f32.xlu0 %v1089
      %v1105 = vpop.xlane.xlu0 %1104
      %1106 = vadd.xlane.f32.xlu0 %v1091
      %v1107 = vpop.xlane.xlu0 %1106
      %1108 = vadd.xlane.f32.xlu0 %v1093
      %v1109 = vpop.xlane.xlu0 %1108
      %1110 = vmatprep.subr.mxu0 0.0
      %1111 = vmatpush1.msra.mxu0 %v347
      %1112 = vmatprep.subr.mxu0 0.0
      %1113 = vmatpush1.msra.mxu0 %v348
      %1114 = vmatprep.subr.mxu0 0.0
      %1115 = vmatpush1.msra.mxu0 %v349
      %1116 = vmatprep.subr.mxu0 0.0
      %1117 = vmatpush1.msra.mxu0 %v350
      %1118 = vmatprep.subr.mxu0 0.0
      %1119 = vmatpush1.msra.mxu0 %v351
      %1120 = vmatprep.subr.mxu0 0.0
      %1121 = vmatpush1.msra.mxu0 %v352
      %1122 = vmatprep.subr.mxu0 0.0
      %1123 = vmatpush1.msra.mxu0 %v353
      %1124 = vmatprep.subr.mxu0 0.0
      %1125 = vmatpush1.msra.mxu0 %v354
      %1126 = vmatprep.subr.mxu0 0.0
      %1127 = vmatpush1.msra.mxu0 %v355
      %1128 = vmatprep.subr.mxu0 0.0
      %1129 = vmatpush1.msra.mxu0 %v356
      %1130 = vmatprep.subr.mxu0 0.0
      %1131 = vmatpush1.msra.mxu0 %v357
      %1132 = vmatprep.subr.mxu0 0.0
      %1133 = vmatpush1.msra.mxu0 %v358
      %1134 = vmatprep.subr.mxu0 0.0
      %1135 = vmatpush1.msra.mxu0 %v359
      %1136 = vmatprep.subr.mxu0 0.0
      %1137 = vmatpush1.msra.mxu0 %v360
      %1138 = vmatprep.subr.mxu0 0.0
      %1139 = vmatpush1.msra.mxu0 %v361
      %1140 = vmatprep.subr.mxu0 0.0
      %1141 = vmatpush1.msra.mxu0 %v362
      %1142 = vmatprep.subr.mxu0 0.0
      %1143 = vmatpush1.msra.mxu0 0.0
      %1144 = vmatprep.subr.mxu0 0.0
      %1145 = vmatpush1.msra.mxu0 0.0
      %1146 = vmatprep.subr.mxu0 0.0
      %1147 = vmatpush1.msra.mxu0 0.0
      %1148 = vmatprep.subr.mxu0 0.0
      %1149 = vmatpush1.msra.mxu0 0.0
      %1150 = vmatprep.subr.mxu0 0.0
      %1151 = vmatpush1.msra.mxu0 0.0
      %1152 = vmatprep.subr.mxu0 0.0
      %1153 = vmatpush1.msra.mxu0 0.0
      %1154 = vmatprep.subr.mxu0 0.0
      %1155 = vmatpush1.msra.mxu0 0.0
      %1156 = vmatprep.subr.mxu0 0.0
      %1157 = vmatpush1.msra.mxu0 0.0
      %1158 = vmatprep.subr.mxu0 0.0
      %1159 = vmatpush1.msra.mxu0 0.0
      %1160 = vmatprep.subr.mxu0 0.0
      %1161 = vmatpush1.msra.mxu0 0.0
      %1162 = vmatprep.subr.mxu0 0.0
      %1163 = vmatpush1.msra.mxu0 0.0
      %1164 = vmatprep.subr.mxu0 0.0
      %1165 = vmatpush1.msra.mxu0 0.0
      %1166 = vmatprep.subr.mxu0 0.0
      %1167 = vmatpush1.msra.mxu0 0.0
      %1168 = vmatprep.subr.mxu0 0.0
      %1169 = vmatpush1.msra.mxu0 0.0
      %1170 = vmatprep.subr.mxu0 0.0
      %1171 = vmatpush1.msra.mxu0 0.0
      %1172 = vmatprep.subr.mxu0 0.0
      %1173 = vmatpush1.msra.mxu0 0.0
      %1174 = vmatprep.mubr.f32.mxu0 0.0
      %1175 = vmatmul.mubr.f32.gmra.mrb[0].mxu0 %v1079
      %v1176 = vpop.f32.mrb[0].mxu0
      %v1177 = vadd.f32 0.0, %v1176
      %v1178 = vpop.f32.mrb[0].mxu0
      %1179 = vdwg.mxu0
      %1180 = vmatprep.subr.mxu0 0.0
      %1181 = vmatpush1.msra.mxu0 %v363
      %1182 = vmatprep.subr.mxu0 0.0
      %1183 = vmatpush1.msra.mxu0 %v364
      %1184 = vmatprep.subr.mxu0 0.0
      %1185 = vmatpush1.msra.mxu0 %v365
      %1186 = vmatprep.subr.mxu0 0.0
      %1187 = vmatpush1.msra.mxu0 %v366
      %1188 = vmatprep.subr.mxu0 0.0
      %1189 = vmatpush1.msra.mxu0 %v367
      %1190 = vmatprep.subr.mxu0 0.0
      %1191 = vmatpush1.msra.mxu0 %v368
      %1192 = vmatprep.subr.mxu0 0.0
      %1193 = vmatpush1.msra.mxu0 %v369
      %1194 = vmatprep.subr.mxu0 0.0
      %1195 = vmatpush1.msra.mxu0 %v370
      %1196 = vmatprep.subr.mxu0 0.0
      %1197 = vmatpush1.msra.mxu0 %v371
      %1198 = vmatprep.subr.mxu0 0.0
      %1199 = vmatpush1.msra.mxu0 %v372
      %1200 = vmatprep.subr.mxu0 0.0
      %1201 = vmatpush1.msra.mxu0 %v373
      %1202 = vmatprep.subr.mxu0 0.0
      %1203 = vmatpush1.msra.mxu0 %v374
      %1204 = vmatprep.subr.mxu0 0.0
      %1205 = vmatpush1.msra.mxu0 %v375
      %1206 = vmatprep.subr.mxu0 0.0
      %1207 = vmatpush1.msra.mxu0 %v376
      %1208 = vmatprep.subr.mxu0 0.0
      %1209 = vmatpush1.msra.mxu0 %v377
      %1210 = vmatprep.subr.mxu0 0.0
      %1211 = vmatpush1.msra.mxu0 %v378
      %1212 = vmatprep.subr.mxu0 0.0
      %1213 = vmatpush1.msra.mxu0 0.0
      %1214 = vmatprep.subr.mxu0 0.0
      %1215 = vmatpush1.msra.mxu0 0.0
      %1216 = vmatprep.subr.mxu0 0.0
      %1217 = vmatpush1.msra.mxu0 0.0
      %1218 = vmatprep.subr.mxu0 0.0
      %1219 = vmatpush1.msra.mxu0 0.0
      %1220 = vmatprep.subr.mxu0 0.0
      %1221 = vmatpush1.msra.mxu0 0.0
      %1222 = vmatprep.subr.mxu0 0.0
      %1223 = vmatpush1.msra.mxu0 0.0
      %1224 = vmatprep.subr.mxu0 0.0
      %1225 = vmatpush1.msra.mxu0 0.0
      %1226 = vmatprep.subr.mxu0 0.0
      %1227 = vmatpush1.msra.mxu0 0.0
      %1228 = vmatprep.subr.mxu0 0.0
      %1229 = vmatpush1.msra.mxu0 0.0
      %1230 = vmatprep.subr.mxu0 0.0
      %1231 = vmatpush1.msra.mxu0 0.0
      %1232 = vmatprep.subr.mxu0 0.0
      %1233 = vmatpush1.msra.mxu0 0.0
      %1234 = vmatprep.subr.mxu0 0.0
      %1235 = vmatpush1.msra.mxu0 0.0
      %1236 = vmatprep.subr.mxu0 0.0
      %1237 = vmatpush1.msra.mxu0 0.0
      %1238 = vmatprep.subr.mxu0 0.0
      %1239 = vmatpush1.msra.mxu0 0.0
      %1240 = vmatprep.subr.mxu0 0.0
      %1241 = vmatpush1.msra.mxu0 0.0
      %1242 = vmatprep.subr.mxu0 0.0
      %1243 = vmatpush1.msra.mxu0 0.0
      %1244 = vmatprep.mubr.f32.mxu0 0.0
      %1245 = vmatmul.mubr.f32.gmra.mrb[0].mxu0 %v1081
      %v1246 = vpop.f32.mrb[0].mxu0
      %v1247 = vadd.f32 0.0, %v1246
      %v1248 = vpop.f32.mrb[0].mxu0
      %1249 = vdwg.mxu0
      %1250 = vmatprep.subr.mxu0 0.0
      %1251 = vmatpush1.msra.mxu0 %v379
      %1252 = vmatprep.subr.mxu0 0.0
      %1253 = vmatpush1.msra.mxu0 %v380
      %1254 = vmatprep.subr.mxu0 0.0
      %1255 = vmatpush1.msra.mxu0 %v381
      %1256 = vmatprep.subr.mxu0 0.0
      %1257 = vmatpush1.msra.mxu0 %v382
      %1258 = vmatprep.subr.mxu0 0.0
      %1259 = vmatpush1.msra.mxu0 %v383
      %1260 = vmatprep.subr.mxu0 0.0
      %1261 = vmatpush1.msra.mxu0 %v384
      %1262 = vmatprep.subr.mxu0 0.0
      %1263 = vmatpush1.msra.mxu0 %v385
      %1264 = vmatprep.subr.mxu0 0.0
      %1265 = vmatpush1.msra.mxu0 %v386
      %1266 = vmatprep.subr.mxu0 0.0
      %1267 = vmatpush1.msra.mxu0 %v387
      %1268 = vmatprep.subr.mxu0 0.0
      %1269 = vmatpush1.msra.mxu0 %v388
      %1270 = vmatprep.subr.mxu0 0.0
      %1271 = vmatpush1.msra.mxu0 %v389
      %1272 = vmatprep.subr.mxu0 0.0
      %1273 = vmatpush1.msra.mxu0 %v390
      %1274 = vmatprep.subr.mxu0 0.0
      %1275 = vmatpush1.msra.mxu0 %v391
      %1276 = vmatprep.subr.mxu0 0.0
      %1277 = vmatpush1.msra.mxu0 %v392
      %1278 = vmatprep.subr.mxu0 0.0
      %1279 = vmatpush1.msra.mxu0 %v393
      %1280 = vmatprep.subr.mxu0 0.0
      %1281 = vmatpush1.msra.mxu0 %v394
      %1282 = vmatprep.subr.mxu0 0.0
      %1283 = vmatpush1.msra.mxu0 0.0
      %1284 = vmatprep.subr.mxu0 0.0
      %1285 = vmatpush1.msra.mxu0 0.0
      %1286 = vmatprep.subr.mxu0 0.0
      %1287 = vmatpush1.msra.mxu0 0.0
      %1288 = vmatprep.subr.mxu0 0.0
      %1289 = vmatpush1.msra.mxu0 0.0
      %1290 = vmatprep.subr.mxu0 0.0
      %1291 = vmatpush1.msra.mxu0 0.0
      %1292 = vmatprep.subr.mxu0 0.0
      %1293 = vmatpush1.msra.mxu0 0.0
      %1294 = vmatprep.subr.mxu0 0.0
      %1295 = vmatpush1.msra.mxu0 0.0
      %1296 = vmatprep.subr.mxu0 0.0
      %1297 = vmatpush1.msra.mxu0 0.0
      %1298 = vmatprep.subr.mxu0 0.0
      %1299 = vmatpush1.msra.mxu0 0.0
      %1300 = vmatprep.subr.mxu0 0.0
      %1301 = vmatpush1.msra.mxu0 0.0
      %1302 = vmatprep.subr.mxu0 0.0
      %1303 = vmatpush1.msra.mxu0 0.0
      %1304 = vmatprep.subr.mxu0 0.0
      %1305 = vmatpush1.msra.mxu0 0.0
      %1306 = vmatprep.subr.mxu0 0.0
      %1307 = vmatpush1.msra.mxu0 0.0
      %1308 = vmatprep.subr.mxu0 0.0
      %1309 = vmatpush1.msra.mxu0 0.0
      %1310 = vmatprep.subr.mxu0 0.0
      %1311 = vmatpush1.msra.mxu0 0.0
      %1312 = vmatprep.subr.mxu0 0.0
      %1313 = vmatpush1.msra.mxu0 0.0
      %1314 = vmatprep.mubr.f32.mxu0 0.0
      %1315 = vmatmul.mubr.f32.gmra.mrb[0].mxu0 %v1083
      %v1316 = vpop.f32.mrb[0].mxu0
      %v1317 = vadd.f32 0.0, %v1316
      %v1318 = vpop.f32.mrb[0].mxu0
      %1319 = vdwg.mxu0
      %1320 = vmatprep.subr.mxu0 0.0
      %1321 = vmatpush1.msra.mxu0 %v395
      %1322 = vmatprep.subr.mxu0 0.0
      %1323 = vmatpush1.msra.mxu0 %v396
      %1324 = vmatprep.subr.mxu0 0.0
      %1325 = vmatpush1.msra.mxu0 %v397
      %1326 = vmatprep.subr.mxu0 0.0
      %1327 = vmatpush1.msra.mxu0 %v398
      %1328 = vmatprep.subr.mxu0 0.0
      %1329 = vmatpush1.msra.mxu0 %v399
      %1330 = vmatprep.subr.mxu0 0.0
      %1331 = vmatpush1.msra.mxu0 %v400
      %1332 = vmatprep.subr.mxu0 0.0
      %1333 = vmatpush1.msra.mxu0 %v401
      %1334 = vmatprep.subr.mxu0 0.0
      %1335 = vmatpush1.msra.mxu0 %v402
      %1336 = vmatprep.subr.mxu0 0.0
      %1337 = vmatpush1.msra.mxu0 %v403
      %1338 = vmatprep.subr.mxu0 0.0
      %1339 = vmatpush1.msra.mxu0 %v404
      %1340 = vmatprep.subr.mxu0 0.0
      %1341 = vmatpush1.msra.mxu0 %v405
      %1342 = vmatprep.subr.mxu0 0.0
      %1343 = vmatpush1.msra.mxu0 %v406
      %1344 = vmatprep.subr.mxu0 0.0
      %1345 = vmatpush1.msra.mxu0 %v407
      %1346 = vmatprep.subr.mxu0 0.0
      %1347 = vmatpush1.msra.mxu0 %v408
      %1348 = vmatprep.subr.mxu0 0.0
      %1349 = vmatpush1.msra.mxu0 %v409
      %1350 = vmatprep.subr.mxu0 0.0
      %1351 = vmatpush1.msra.mxu0 %v410
      %1352 = vmatprep.subr.mxu0 0.0
      %1353 = vmatpush1.msra.mxu0 0.0
      %1354 = vmatprep.subr.mxu0 0.0
      %1355 = vmatpush1.msra.mxu0 0.0
      %1356 = vmatprep.subr.mxu0 0.0
      %1357 = vmatpush1.msra.mxu0 0.0
      %1358 = vmatprep.subr.mxu0 0.0
      %1359 = vmatpush1.msra.mxu0 0.0
      %1360 = vmatprep.subr.mxu0 0.0
      %1361 = vmatpush1.msra.mxu0 0.0
      %1362 = vmatprep.subr.mxu0 0.0
      %1363 = vmatpush1.msra.mxu0 0.0
      %1364 = vmatprep.subr.mxu0 0.0
      %1365 = vmatpush1.msra.mxu0 0.0
      %1366 = vmatprep.subr.mxu0 0.0
      %1367 = vmatpush1.msra.mxu0 0.0
      %1368 = vmatprep.subr.mxu0 0.0
      %1369 = vmatpush1.msra.mxu0 0.0
      %1370 = vmatprep.subr.mxu0 0.0
      %1371 = vmatpush1.msra.mxu0 0.0
      %1372 = vmatprep.subr.mxu0 0.0
      %1373 = vmatpush1.msra.mxu0 0.0
      %1374 = vmatprep.subr.mxu0 0.0
      %1375 = vmatpush1.msra.mxu0 0.0
      %1376 = vmatprep.subr.mxu0 0.0
      %1377 = vmatpush1.msra.mxu0 0.0
      %1378 = vmatprep.subr.mxu0 0.0
      %1379 = vmatpush1.msra.mxu0 0.0
      %1380 = vmatprep.subr.mxu0 0.0
      %1381 = vmatpush1.msra.mxu0 0.0
      %1382 = vmatprep.subr.mxu0 0.0
      %1383 = vmatpush1.msra.mxu0 0.0
      %1384 = vmatprep.mubr.f32.mxu0 0.0
      %1385 = vmatmul.mubr.f32.gmra.mrb[0].mxu0 %v1085
      %v1386 = vpop.f32.mrb[0].mxu0
      %v1387 = vadd.f32 0.0, %v1386
      %v1388 = vpop.f32.mrb[0].mxu0
      %1389 = vdwg.mxu0
      %1390 = vmatprep.subr.mxu0 0.0
      %1391 = vmatpush1.msra.mxu0 %v411
      %1392 = vmatprep.subr.mxu0 0.0
      %1393 = vmatpush1.msra.mxu0 %v412
      %1394 = vmatprep.subr.mxu0 0.0
      %1395 = vmatpush1.msra.mxu0 %v413
      %1396 = vmatprep.subr.mxu0 0.0
      %1397 = vmatpush1.msra.mxu0 %v414
      %1398 = vmatprep.subr.mxu0 0.0
      %1399 = vmatpush1.msra.mxu0 %v415
      %1400 = vmatprep.subr.mxu0 0.0
      %1401 = vmatpush1.msra.mxu0 %v416
      %1402 = vmatprep.subr.mxu0 0.0
      %1403 = vmatpush1.msra.mxu0 %v417
      %1404 = vmatprep.subr.mxu0 0.0
      %1405 = vmatpush1.msra.mxu0 %v418
      %1406 = vmatprep.subr.mxu0 0.0
      %1407 = vmatpush1.msra.mxu0 %v419
      %1408 = vmatprep.subr.mxu0 0.0
      %1409 = vmatpush1.msra.mxu0 %v420
      %1410 = vmatprep.subr.mxu0 0.0
      %1411 = vmatpush1.msra.mxu0 %v421
      %1412 = vmatprep.subr.mxu0 0.0
      %1413 = vmatpush1.msra.mxu0 %v422
      %1414 = vmatprep.subr.mxu0 0.0
      %1415 = vmatpush1.msra.mxu0 %v423
      %1416 = vmatprep.subr.mxu0 0.0
      %1417 = vmatpush1.msra.mxu0 %v424
      %1418 = vmatprep.subr.mxu0 0.0
      %1419 = vmatpush1.msra.mxu0 %v425
      %1420 = vmatprep.subr.mxu0 0.0
      %1421 = vmatpush1.msra.mxu0 %v426
      %1422 = vmatprep.subr.mxu0 0.0
      %1423 = vmatpush1.msra.mxu0 0.0
      %1424 = vmatprep.subr.mxu0 0.0
      %1425 = vmatpush1.msra.mxu0 0.0
      %1426 = vmatprep.subr.mxu0 0.0
      %1427 = vmatpush1.msra.mxu0 0.0
      %1428 = vmatprep.subr.mxu0 0.0
      %1429 = vmatpush1.msra.mxu0 0.0
      %1430 = vmatprep.subr.mxu0 0.0
      %1431 = vmatpush1.msra.mxu0 0.0
      %1432 = vmatprep.subr.mxu0 0.0
      %1433 = vmatpush1.msra.mxu0 0.0
      %1434 = vmatprep.subr.mxu0 0.0
      %1435 = vmatpush1.msra.mxu0 0.0
      %1436 = vmatprep.subr.mxu0 0.0
      %1437 = vmatpush1.msra.mxu0 0.0
      %1438 = vmatprep.subr.mxu0 0.0
      %1439 = vmatpush1.msra.mxu0 0.0
      %1440 = vmatprep.subr.mxu0 0.0
      %1441 = vmatpush1.msra.mxu0 0.0
      %1442 = vmatprep.subr.mxu0 0.0
      %1443 = vmatpush1.msra.mxu0 0.0
      %1444 = vmatprep.subr.mxu0 0.0
      %1445 = vmatpush1.msra.mxu0 0.0
      %1446 = vmatprep.subr.mxu0 0.0
      %1447 = vmatpush1.msra.mxu0 0.0
      %1448 = vmatprep.subr.mxu0 0.0
      %1449 = vmatpush1.msra.mxu0 0.0
      %1450 = vmatprep.subr.mxu0 0.0
      %1451 = vmatpush1.msra.mxu0 0.0
      %1452 = vmatprep.subr.mxu0 0.0
      %1453 = vmatpush1.msra.mxu0 0.0
      %1454 = vmatprep.mubr.f32.mxu0 0.0
      %1455 = vmatmul.mubr.f32.gmra.mrb[0].mxu0 %v1087
      %v1456 = vpop.f32.mrb[0].mxu0
      %v1457 = vadd.f32 0.0, %v1456
      %v1458 = vpop.f32.mrb[0].mxu0
      %1459 = vdwg.mxu0
      %1460 = vmatprep.subr.mxu0 0.0
      %1461 = vmatpush1.msra.mxu0 %v427
      %1462 = vmatprep.subr.mxu0 0.0
      %1463 = vmatpush1.msra.mxu0 %v428
      %1464 = vmatprep.subr.mxu0 0.0
      %1465 = vmatpush1.msra.mxu0 %v429
      %1466 = vmatprep.subr.mxu0 0.0
      %1467 = vmatpush1.msra.mxu0 %v430
      %1468 = vmatprep.subr.mxu0 0.0
      %1469 = vmatpush1.msra.mxu0 %v431
      %1470 = vmatprep.subr.mxu0 0.0
      %1471 = vmatpush1.msra.mxu0 %v432
      %1472 = vmatprep.subr.mxu0 0.0
      %1473 = vmatpush1.msra.mxu0 %v433
      %1474 = vmatprep.subr.mxu0 0.0
      %1475 = vmatpush1.msra.mxu0 %v434
      %1476 = vmatprep.subr.mxu0 0.0
      %1477 = vmatpush1.msra.mxu0 %v435
      %1478 = vmatprep.subr.mxu0 0.0
      %1479 = vmatpush1.msra.mxu0 %v436
      %1480 = vmatprep.subr.mxu0 0.0
      %1481 = vmatpush1.msra.mxu0 %v437
      %1482 = vmatprep.subr.mxu0 0.0
      %1483 = vmatpush1.msra.mxu0 %v438
      %1484 = vmatprep.subr.mxu0 0.0
      %1485 = vmatpush1.msra.mxu0 %v439
      %1486 = vmatprep.subr.mxu0 0.0
      %1487 = vmatpush1.msra.mxu0 %v440
      %1488 = vmatprep.subr.mxu0 0.0
      %1489 = vmatpush1.msra.mxu0 %v441
      %1490 = vmatprep.subr.mxu0 0.0
      %1491 = vmatpush1.msra.mxu0 %v442
      %1492 = vmatprep.subr.mxu0 0.0
      %1493 = vmatpush1.msra.mxu0 0.0
      %1494 = vmatprep.subr.mxu0 0.0
      %1495 = vmatpush1.msra.mxu0 0.0
      %1496 = vmatprep.subr.mxu0 0.0
      %1497 = vmatpush1.msra.mxu0 0.0
      %1498 = vmatprep.subr.mxu0 0.0
      %1499 = vmatpush1.msra.mxu0 0.0
      %1500 = vmatprep.subr.mxu0 0.0
      %1501 = vmatpush1.msra.mxu0 0.0
      %1502 = vmatprep.subr.mxu0 0.0
      %1503 = vmatpush1.msra.mxu0 0.0
      %1504 = vmatprep.subr.mxu0 0.0
      %1505 = vmatpush1.msra.mxu0 0.0
      %1506 = vmatprep.subr.mxu0 0.0
      %1507 = vmatpush1.msra.mxu0 0.0
      %1508 = vmatprep.subr.mxu0 0.0
      %1509 = vmatpush1.msra.mxu0 0.0
      %1510 = vmatprep.subr.mxu0 0.0
      %1511 = vmatpush1.msra.mxu0 0.0
      %1512 = vmatprep.subr.mxu0 0.0
      %1513 = vmatpush1.msra.mxu0 0.0
      %1514 = vmatprep.subr.mxu0 0.0
      %1515 = vmatpush1.msra.mxu0 0.0
      %1516 = vmatprep.subr.mxu0 0.0
      %1517 = vmatpush1.msra.mxu0 0.0
      %1518 = vmatprep.subr.mxu0 0.0
      %1519 = vmatpush1.msra.mxu0 0.0
      %1520 = vmatprep.subr.mxu0 0.0
      %1521 = vmatpush1.msra.mxu0 0.0
      %1522 = vmatprep.subr.mxu0 0.0
      %1523 = vmatpush1.msra.mxu0 0.0
      %1524 = vmatprep.mubr.f32.mxu0 0.0
      %1525 = vmatmul.mubr.f32.gmra.mrb[0].mxu0 %v1089
      %v1526 = vpop.f32.mrb[0].mxu0
      %v1527 = vadd.f32 0.0, %v1526
      %v1528 = vpop.f32.mrb[0].mxu0
      %1529 = vdwg.mxu0
      %1530 = vmatprep.subr.mxu0 0.0
      %1531 = vmatpush1.msra.mxu0 %v443
      %1532 = vmatprep.subr.mxu0 0.0
      %1533 = vmatpush1.msra.mxu0 %v444
      %1534 = vmatprep.subr.mxu0 0.0
      %1535 = vmatpush1.msra.mxu0 %v445
      %1536 = vmatprep.subr.mxu0 0.0
      %1537 = vmatpush1.msra.mxu0 %v446
      %1538 = vmatprep.subr.mxu0 0.0
      %1539 = vmatpush1.msra.mxu0 %v447
      %1540 = vmatprep.subr.mxu0 0.0
      %1541 = vmatpush1.msra.mxu0 %v448
      %1542 = vmatprep.subr.mxu0 0.0
      %1543 = vmatpush1.msra.mxu0 %v449
      %1544 = vmatprep.subr.mxu0 0.0
      %1545 = vmatpush1.msra.mxu0 %v450
      %1546 = vmatprep.subr.mxu0 0.0
      %1547 = vmatpush1.msra.mxu0 %v451
      %1548 = vmatprep.subr.mxu0 0.0
      %1549 = vmatpush1.msra.mxu0 %v452
      %1550 = vmatprep.subr.mxu0 0.0
      %1551 = vmatpush1.msra.mxu0 %v453
      %1552 = vmatprep.subr.mxu0 0.0
      %1553 = vmatpush1.msra.mxu0 %v454
      %1554 = vmatprep.subr.mxu0 0.0
      %1555 = vmatpush1.msra.mxu0 %v455
      %1556 = vmatprep.subr.mxu0 0.0
      %1557 = vmatpush1.msra.mxu0 %v456
      %1558 = vmatprep.subr.mxu0 0.0
      %1559 = vmatpush1.msra.mxu0 %v457
      %1560 = vmatprep.subr.mxu0 0.0
      %1561 = vmatpush1.msra.mxu0 %v458
      %1562 = vmatprep.subr.mxu0 0.0
      %1563 = vmatpush1.msra.mxu0 0.0
      %1564 = vmatprep.subr.mxu0 0.0
      %1565 = vmatpush1.msra.mxu0 0.0
      %1566 = vmatprep.subr.mxu0 0.0
      %1567 = vmatpush1.msra.mxu0 0.0
      %1568 = vmatprep.subr.mxu0 0.0
      %1569 = vmatpush1.msra.mxu0 0.0
      %1570 = vmatprep.subr.mxu0 0.0
      %1571 = vmatpush1.msra.mxu0 0.0
      %1572 = vmatprep.subr.mxu0 0.0
      %1573 = vmatpush1.msra.mxu0 0.0
      %1574 = vmatprep.subr.mxu0 0.0
      %1575 = vmatpush1.msra.mxu0 0.0
      %1576 = vmatprep.subr.mxu0 0.0
      %1577 = vmatpush1.msra.mxu0 0.0
      %1578 = vmatprep.subr.mxu0 0.0
      %1579 = vmatpush1.msra.mxu0 0.0
      %1580 = vmatprep.subr.mxu0 0.0
      %1581 = vmatpush1.msra.mxu0 0.0
      %1582 = vmatprep.subr.mxu0 0.0
      %1583 = vmatpush1.msra.mxu0 0.0
      %1584 = vmatprep.subr.mxu0 0.0
      %1585 = vmatpush1.msra.mxu0 0.0
      %1586 = vmatprep.subr.mxu0 0.0
      %1587 = vmatpush1.msra.mxu0 0.0
      %1588 = vmatprep.subr.mxu0 0.0
      %1589 = vmatpush1.msra.mxu0 0.0
      %1590 = vmatprep.subr.mxu0 0.0
      %1591 = vmatpush1.msra.mxu0 0.0
      %1592 = vmatprep.subr.mxu0 0.0
      %1593 = vmatpush1.msra.mxu0 0.0
      %1594 = vmatprep.mubr.f32.mxu0 0.0
      %1595 = vmatmul.mubr.f32.gmra.mrb[0].mxu0 %v1091
      %v1596 = vpop.f32.mrb[0].mxu0
      %v1597 = vadd.f32 0.0, %v1596
      %v1598 = vpop.f32.mrb[0].mxu0
      %1599 = vdwg.mxu0
      %1600 = vmatprep.subr.mxu0 0.0
      %1601 = vmatpush1.msra.mxu0 %v459
      %1602 = vmatprep.subr.mxu0 0.0
      %1603 = vmatpush1.msra.mxu0 %v460
      %1604 = vmatprep.subr.mxu0 0.0
      %1605 = vmatpush1.msra.mxu0 %v461
      %1606 = vmatprep.subr.mxu0 0.0
      %1607 = vmatpush1.msra.mxu0 %v462
      %1608 = vmatprep.subr.mxu0 0.0
      %1609 = vmatpush1.msra.mxu0 %v463
      %1610 = vmatprep.subr.mxu0 0.0
      %1611 = vmatpush1.msra.mxu0 %v464
      %1612 = vmatprep.subr.mxu0 0.0
      %1613 = vmatpush1.msra.mxu0 %v465
      %1614 = vmatprep.subr.mxu0 0.0
      %1615 = vmatpush1.msra.mxu0 %v466
      %1616 = vmatprep.subr.mxu0 0.0
      %1617 = vmatpush1.msra.mxu0 %v467
      %1618 = vmatprep.subr.mxu0 0.0
      %1619 = vmatpush1.msra.mxu0 %v468
      %1620 = vmatprep.subr.mxu0 0.0
      %1621 = vmatpush1.msra.mxu0 %v469
      %1622 = vmatprep.subr.mxu0 0.0
      %1623 = vmatpush1.msra.mxu0 %v470
      %1624 = vmatprep.subr.mxu0 0.0
      %1625 = vmatpush1.msra.mxu0 %v471
      %1626 = vmatprep.subr.mxu0 0.0
      %1627 = vmatpush1.msra.mxu0 %v472
      %1628 = vmatprep.subr.mxu0 0.0
      %1629 = vmatpush1.msra.mxu0 %v473
      %1630 = vmatprep.subr.mxu0 0.0
      %1631 = vmatpush1.msra.mxu0 %v474
      %1632 = vmatprep.subr.mxu0 0.0
      %1633 = vmatpush1.msra.mxu0 0.0
      %1634 = vmatprep.subr.mxu0 0.0
      %1635 = vmatpush1.msra.mxu0 0.0
      %1636 = vmatprep.subr.mxu0 0.0
      %1637 = vmatpush1.msra.mxu0 0.0
      %1638 = vmatprep.subr.mxu0 0.0
      %1639 = vmatpush1.msra.mxu0 0.0
      %1640 = vmatprep.subr.mxu0 0.0
      %1641 = vmatpush1.msra.mxu0 0.0
      %1642 = vmatprep.subr.mxu0 0.0
      %1643 = vmatpush1.msra.mxu0 0.0
      %1644 = vmatprep.subr.mxu0 0.0
      %1645 = vmatpush1.msra.mxu0 0.0
      %1646 = vmatprep.subr.mxu0 0.0
      %1647 = vmatpush1.msra.mxu0 0.0
      %1648 = vmatprep.subr.mxu0 0.0
      %1649 = vmatpush1.msra.mxu0 0.0
      %1650 = vmatprep.subr.mxu0 0.0
      %1651 = vmatpush1.msra.mxu0 0.0
      %1652 = vmatprep.subr.mxu0 0.0
      %1653 = vmatpush1.msra.mxu0 0.0
      %1654 = vmatprep.subr.mxu0 0.0
      %1655 = vmatpush1.msra.mxu0 0.0
      %1656 = vmatprep.subr.mxu0 0.0
      %1657 = vmatpush1.msra.mxu0 0.0
      %1658 = vmatprep.subr.mxu0 0.0
      %1659 = vmatpush1.msra.mxu0 0.0
      %1660 = vmatprep.subr.mxu0 0.0
      %1661 = vmatpush1.msra.mxu0 0.0
      %1662 = vmatprep.subr.mxu0 0.0
      %1663 = vmatpush1.msra.mxu0 0.0
      %1664 = vmatprep.mubr.f32.mxu0 0.0
      %1665 = vmatmul.mubr.f32.gmra.mrb[0].mxu0 %v1093
      %v1666 = vpop.f32.mrb[0].mxu0
      %v1667 = vadd.f32 0.0, %v1666
      %v1668 = vpop.f32.mrb[0].mxu0
      %1669 = vdwg.mxu0
      %v1670 = vrcp.pop %v1095
      %v1671 = vrcp.pop %v1097
      %v1672 = vrcp.pop %v1099
      %v1673 = vrcp.pop %v1101
      %v1674 = vrcp.pop %v1103
      %v1675 = vrcp.pop %v1105
      %v1676 = vrcp.pop %v1107
      %v1677 = vrcp.pop %v1109
      %v1678 = vmul.f32 %v1177, %v1670
      %v1679 = vmul.f32 %v1247, %v1671
      %v1680 = vmul.f32 %v1317, %v1672
      %v1681 = vmul.f32 %v1387, %v1673
      %v1682 = vmul.f32 %v1457, %v1674
      %v1683 = vmul.f32 %v1527, %v1675
      %v1684 = vmul.f32 %v1597, %v1676
      %v1685 = vmul.f32 %v1667, %v1677
      %1686 = vst [vmem:[%s210] sm:$0xff] %v1678
      %1687 = vst [vmem:[%s210 + $0x8] sm:$0xff] %v1679
      %1688 = vst [vmem:[%s210 + $0x10] sm:$0xff] %v1680
      %1689 = vst [vmem:[%s210 + $0x18] sm:$0xff] %v1681
      %1690 = vst [vmem:[%s210 + $0x20] sm:$0xff] %v1682
      %1691 = vst [vmem:[%s210 + $0x28] sm:$0xff] %v1683
      %1692 = vst [vmem:[%s210 + $0x30] sm:$0xff] %v1684
      %1693 = vst [vmem:[%s210 + $0x38] sm:$0xff] %v1685
      %p1694 = scmp.lt.s32.totalorder %s14, 1
      %s1695 = scalar_select %p1694, %s14, 1
      %s1696 = smul.addr %s1695, 8
      %s1697 = smul.addr %s1696, 8
      %s1698 = scalar_lea.vmem %s3, %s1697
      // Predicated region
      $region33: #{transformer_block.9} parent=31 // pred_check
        %p1699 = pneg %p110
      $region34: #{transformer_block.9} parent=31 // pred_check_branch
        %1701 = sbr.rel (%p1699) target = $region36
      $region35: #{transformer_block.9} parent=31 // pred_region
        _
      $region36: #{transformer_block.9} parent=31 // pred_fallthru
        _
    $region32: #{transformer_block.9} parent=5 // pred_fallthru
      _
    %p1702 = scmp.le.s32.totalorder 2, %s9
    // Predicated region
    $region37: #{transformer_block.9} parent=5 // pred_check
      %p1703 = pneg %p1702
    $region38: #{transformer_block.9} parent=5 // pred_check_branch
      %1705 = sbr.rel (%p1703) target = $region40
    $region39: #{transformer_block.9} parent=5 // pred_region
      %s1706 = ssub.s32 %s9, 2
      // Predicated region
      $region41: #{transformer_block.9} parent=39 // pred_check
        %p1707 = pneg %p116
      $region42: #{transformer_block.9} parent=39 // pred_check_branch
        %1709 = sbr.rel (%p1707) target = $region44
      $region43: #{transformer_block.9} parent=39 // pred_region
        %p1710 = scmp.lt.s32.totalorder %s15, 1
        %s1711 = scalar_select %p1710, %s15, 1
        %s1712 = smul.addr %s1711, 8
        %s1713 = smul.addr %s1712, 8
        %s1714 = scalar_lea.vmem %s3, %s1713
      $region44: #{transformer_block.9} parent=39 // pred_fallthru
        _
    $region40: #{transformer_block.9} parent=5 // pred_fallthru
      _
  $region6: #{transformer_block.9} parent=0 // loop_footer
    %s13 = sadd.s32 1, %s9
  $region7: #{transformer_block.9} parent=0 // loop_footer_branch
    %8 = sbr.rel target = $region3
  $region8: #{transformer_block.9} parent=0 // loop_exit
    _

// kernel: transformer_block.12
$region0: #{transformer_block.12}
  #allocation0 [shape = 'u32[]', space=smem, size = 0x4, offset = 0x4, fixed_abs, tag = 'smem constant byte address 0x4 - core index']
  #allocation1 [shape = 'u32[144,128]{1,0:T(1,128)}', space=vmem, size = 0x12000, scoped, tag = 'internal scratch']
  %s0 = inlined_call_operand.vmem [shape: f32[2,4,4,4,128], index: 0, kind: input, shape index: {}]
  %s1 = inlined_call_operand.vmem [shape: f32[27,1,1,128], index: 1, kind: input, shape index: {}]
  %s2 = inlined_call_operand.vmem [shape: f32[1,1,1,128], index: 2, kind: input, shape index: {}]
  %s3 = inlined_call_operand.vmem [shape: f32[1,1,1,128], index: 3, kind: input, shape index: {}]
  %s4 = inlined_call_operand.vmem [shape: f32[2,2,2,2,128], index: 4, kind: output, shape index: {}]
  %s5 = sld [smem:[#allocation0]]
  $region49: #{transformer_block.12} parent=0
    _
  %s7 = ssub.s32 1, %s5
  %s8 = scalar_select 0, %s7, %s5
  loop: start=0, step=1, limit=4
  $region2: #{transformer_block.12} parent=0 // loop_pre_header
    _
  $region3: #{transformer_block.12} parent=0 // loop_header
    %s10 = sphi 0, %s14
    %p11 = scmp.ge.s32.totalorder %s10, 4
    %s20 = sphi 0, %s22
    %s23 = sphi 0, %s20
    %s24 = sphi 0, %s23
    %s40 = sphi 0, %s24
    %s44 = sphi 0, %s44
    %s46 = sphi 0, %s44
    %s47 = sphi 0, %s46
    %s61 = sphi 0, %s47
    %s65 = sphi 0, %s65
    %s67 = sphi 0, %s65
    %s68 = sphi 0, %s67
    %s82 = sphi 0, %s68
    %s86 = sphi 0, %s86
    %s88 = sphi 0, %s86
    %s89 = sphi 0, %s88
    %s103 = sphi 0, %s89
    %s109 = sphi 0, %s111
    %s112 = sphi 0, %s109
    %s113 = sphi 0, %s112
    %s129 = sphi 0, %s113
  $region4: #{transformer_block.12} parent=0 // loop_header_branch
    %13 = sbr.rel (%p11) target = $region8
  $region5: #{transformer_block.12} parent=0 // loop_body
    %s15 = ssub.s32 %s10, 1
    %s16 = ssub.s32 %s10, 2
    %s17 = sadd.s32 %s10, 1
    %s18 = ssub.s32 %s10, %s17
    %p19 = scmp.eq.s32.totalorder %s18, 0
    %s21 = sadd.s32 %s20, 1
    %s22 = scalar_select %p19, %s20, %s21
    %p25 = pneg %p19
    %p26 = scmp.eq.s32.totalorder %s10, 1
    %p27 = por %p25, %p26
    %p28 = scmp.ne.s32.totalorder %s20, %s23
    %p29 = scmp.eq.s32.totalorder %s10, 0
    %p30 = por %p28, %p29
    %p31 = scmp.ne.s32.totalorder %s20, %s23
    %p32 = scmp.eq.s32.totalorder %s15, 1
    %p33 = por %p31, %p32
    %p34 = scmp.ne.s32.totalorder %s23, %s24
    %p35 = scmp.eq.s32.totalorder %s15, 0
    %p36 = por %p34, %p35
    %p37 = scmp.ne.s32.totalorder %s23, %s24
    %p38 = scmp.eq.s32.totalorder %s16, 1
    %p39 = por %p37, %p38
    %p41 = scmp.ne.s32.totalorder %s24, %s40
    %p42 = scmp.eq.s32.totalorder %s16, 0
    %p43 = por %p41, %p42
    %s45 = sadd.s32 %s44, 1
    %p48 = scmp.eq.s32.totalorder %s10, 1
    %p49 = scmp.ne.s32.totalorder %s44, %s46
    %p50 = scmp.eq.s32.totalorder %s10, 0
    %p51 = por %p49, %p50
    %p52 = scmp.ne.s32.totalorder %s44, %s46
    %p53 = scmp.eq.s32.totalorder %s15, 1
    %p54 = por %p52, %p53
    %p55 = scmp.ne.s32.totalorder %s46, %s47
    %p56 = scmp.eq.s32.totalorder %s15, 0
    %p57 = por %p55, %p56
    %p58 = scmp.ne.s32.totalorder %s46, %s47
    %p59 = scmp.eq.s32.totalorder %s16, 1
    %p60 = por %p58, %p59
    %p62 = scmp.ne.s32.totalorder %s47, %s61
    %p63 = scmp.eq.s32.totalorder %s16, 0
    %p64 = por %p62, %p63
    %s66 = sadd.s32 %s65, 1
    %p69 = scmp.eq.s32.totalorder %s10, 1
    %p70 = scmp.ne.s32.totalorder %s65, %s67
    %p71 = scmp.eq.s32.totalorder %s10, 0
    %p72 = por %p70, %p71
    %p73 = scmp.ne.s32.totalorder %s65, %s67
    %p74 = scmp.eq.s32.totalorder %s15, 1
    %p75 = por %p73, %p74
    %p76 = scmp.ne.s32.totalorder %s67, %s68
    %p77 = scmp.eq.s32.totalorder %s15, 0
    %p78 = por %p76, %p77
    %p79 = scmp.ne.s32.totalorder %s67, %s68
    %p80 = scmp.eq.s32.totalorder %s16, 1
    %p81 = por %p79, %p80
    %p83 = scmp.ne.s32.totalorder %s68, %s82
    %p84 = scmp.eq.s32.totalorder %s16, 0
    %p85 = por %p83, %p84
    %s87 = sadd.s32 %s86, 1
    %p90 = scmp.eq.s32.totalorder %s10, 1
    %p91 = scmp.ne.s32.totalorder %s86, %s88
    %p92 = scmp.eq.s32.totalorder %s10, 0
    %p93 = por %p91, %p92
    %p94 = scmp.ne.s32.totalorder %s86, %s88
    %p95 = scmp.eq.s32.totalorder %s15, 1
    %p96 = por %p94, %p95
    %p97 = scmp.ne.s32.totalorder %s88, %s89
    %p98 = scmp.eq.s32.totalorder %s15, 0
    %p99 = por %p97, %p98
    %p100 = scmp.ne.s32.totalorder %s88, %s89
    %p101 = scmp.eq.s32.totalorder %s16, 1
    %p102 = por %p100, %p101
    %p104 = scmp.ne.s32.totalorder %s89, %s103
    %p105 = scmp.eq.s32.totalorder %s16, 0
    %p106 = por %p104, %p105
    %s107 = ssub.s32 %s10, %s17
    %p108 = scmp.eq.s32.totalorder %s107, 0
    %s110 = sadd.s32 %s109, 1
    %s111 = scalar_select %p108, %s109, %s110
    %p114 = pneg %p108
    %p115 = scmp.eq.s32.totalorder %s10, 1
    %p116 = por %p114, %p115
    %p117 = scmp.ne.s32.totalorder %s109, %s112
    %p118 = scmp.eq.s32.totalorder %s10, 0
    %p119 = por %p117, %p118
    %p120 = scmp.ne.s32.totalorder %s109, %s112
    %p121 = scmp.eq.s32.totalorder %s15, 1
    %p122 = por %p120, %p121
    %p123 = scmp.ne.s32.totalorder %s112, %s113
    %p124 = scmp.eq.s32.totalorder %s15, 0
    %p125 = por %p123, %p124
    %p126 = scmp.ne.s32.totalorder %s112, %s113
    %p127 = scmp.eq.s32.totalorder %s16, 1
    %p128 = por %p126, %p127
    %p130 = scmp.ne.s32.totalorder %s113, %s129
    %p131 = scmp.eq.s32.totalorder %s16, 0
    %p132 = por %p130, %p131
    %p133 = scmp.le.s32.totalorder 1, %s10
    %p134 = scmp.lt.s32.totalorder %s10, 3
    %p135 = pnand %p133, %p134
    %p136 = pneg %p135
    // Predicated region
    $region9: #{transformer_block.12} parent=5 // pred_check
      _
    $region10: #{transformer_block.12} parent=5 // pred_check_branch
      %138 = sbr.rel (%p135) target = $region12
    $region11: #{transformer_block.12} parent=5 // pred_region
      %s139 = ssub.s32 %s10, 1
      // Predicated region
      $region13: #{transformer_block.12} parent=11 // pred_check
        %p140 = pneg %p57
      $region14: #{transformer_block.12} parent=11 // pred_check_branch
        %142 = sbr.rel (%p140) target = $region16
      $region15: #{transformer_block.12} parent=11 // pred_region
        _
      $region16: #{transformer_block.12} parent=11 // pred_fallthru
        _
      // Predicated region
      $region17: #{transformer_block.12} parent=11 // pred_check
        %p143 = pneg %p78
      $region18: #{transformer_block.12} parent=11 // pred_check_branch
        %145 = sbr.rel (%p143) target = $region20
      $region19: #{transformer_block.12} parent=11 // pred_region
        _
      $region20: #{transformer_block.12} parent=11 // pred_fallthru
        _
      // Predicated region
      $region21: #{transformer_block.12} parent=11 // pred_check
        %p146 = pneg %p99
      $region22: #{transformer_block.12} parent=11 // pred_check_branch
        %148 = sbr.rel (%p146) target = $region24
      $region23: #{transformer_block.12} parent=11 // pred_region
        _
      $region24: #{transformer_block.12} parent=11 // pred_fallthru
        _
    $region12: #{transformer_block.12} parent=5 // pred_fallthru
      _
    %p149 = scmp.lt.s32.totalorder %s10, 2
    // Predicated region
    $region25: #{transformer_block.12} parent=5 // pred_check
      %p150 = pneg %p149
    $region26: #{transformer_block.12} parent=5 // pred_check_branch
      %152 = sbr.rel (%p150) target = $region28
    $region27: #{transformer_block.12} parent=5 // pred_region
      // Predicated region
      $region29: #{transformer_block.12} parent=27 // pred_check
        %p153 = pneg %p30
      $region30: #{transformer_block.12} parent=27 // pred_check_branch
        %155 = sbr.rel (%p153) target = $region32
      $region31: #{transformer_block.12} parent=27 // pred_region
        %p156 = scmp.lt.s32.totalorder %s10, 1
        %s157 = scalar_select %p156, %s10, 1
        %s158 = smul.addr %s157, 16
        %s159 = smul.addr %s158, 4
        %s160 = scalar_lea.vmem %s0, %s159
      $region32: #{transformer_block.12} parent=27 // pred_fallthru
        _
    $region28: #{transformer_block.12} parent=5 // pred_fallthru
      _
    %p161 = scmp.le.s32.totalorder 1, %s10
    %p162 = scmp.lt.s32.totalorder %s10, 3
    %p163 = pnand %p161, %p162
    %p164 = pneg %p163
    // Predicated region
    $region33: #{transformer_block.12} parent=5 // pred_check
      _
    $region34: #{transformer_block.12} parent=5 // pred_check_branch
      %166 = sbr.rel (%p163) target = $region36
    $region35: #{transformer_block.12} parent=5 // pred_region
      %s167 = ssub.s32 %s10, 1
      %p168 = scmp.lt.s32.totalorder %s15, 1
      %s169 = scalar_select %p168, %s15, 1
      %s170 = smul.addr %s169, 16
      %s171 = smul.addr %s170, 4
      %s172 = scalar_lea.vmem %s0, %s171
      %p173 = pneg %p36
      %p174 = pneg %p33
      %p175 = pneg %p57
      %p176 = pneg %p54
      %p177 = pneg %p78
      %p178 = pneg %p75
      %p179 = pneg %p99
      %p180 = pneg %p96
      %p181 = pneg %p125
      %p182 = pneg %p122
      %p183 = scmp.lt.s32.totalorder %s15, 1
      %s184 = scalar_select %p183, %s15, 1
      %s185 = smul.addr %s184, 4
      %s186 = smul.addr %s185, 2
      %s187 = scalar_lea.vmem %s4, %s186
      %p188 = scmp.lt.s32.totalorder %s15, 1
      %s189 = scalar_select %p188, %s15, 1
      %s190 = smul.addr %s189, 16
      %s191 = smul.addr %s190, 4
      %s192 = scalar_lea.vmem %s0, %s191
      %p193 = scmp.lt.s32.totalorder %s15, 1
      %s194 = scalar_select %p193, %s15, 1
      %s195 = smul.addr %s194, 4
      %s196 = smul.addr %s195, 2
      %s197 = scalar_lea.vmem %s4, %s196
      %v198 = vld [vmem:[%s192] sm:$0xf]
      %v199 = vld [vmem:[%s192 + $0x4] sm:$0xf]
      %v200 = vld [vmem:[%s192 + $0x8] sm:$0xf]
      %v201 = vld [vmem:[%s192 + $0xc] sm:$0xf]
      %v202 = vld [vmem:[%s192 + $0x10] sm:$0xf]
      %v203 = vld [vmem:[%s192 + $0x14] sm:$0xf]
      %v204 = vld [vmem:[%s192 + $0x18] sm:$0xf]
      %v205 = vld [vmem:[%s192 + $0x1c] sm:$0xf]
      %v206 = vld [vmem:[%s192 + $0x20] sm:$0xf]
      %v207 = vld [vmem:[%s192 + $0x24] sm:$0xf]
      %v208 = vld [vmem:[%s192 + $0x28] sm:$0xf]
      %v209 = vld [vmem:[%s192 + $0x2c] sm:$0xf]
      %v210 = vld [vmem:[%s192 + $0x30] sm:$0xf]
      %v211 = vld [vmem:[%s192 + $0x34] sm:$0xf]
      %v212 = vld [vmem:[%s192 + $0x38] sm:$0xf]
      %v213 = vld [vmem:[%s192 + $0x3c] sm:$0xf]
      %v214 = vld [vmem:[%s1] sm:$0x1]
      %v216 = vlaneseq
      %v217 = vshrl.u32 %v216, 7
      %v218 = vsub.s32 0, %v217
      %v219 = vrot.slane %v214, %v218
      %v221 = vmul.f32 %v198, %v219
      %v222 = vmul.f32 %v199, %v219
      %v223 = vmul.f32 %v202, %v219
      %v224 = vmul.f32 %v203, %v219
      %v225 = vadd.f32 %v221, 0.0
      %v226 = vadd.f32 %v222, 0.0
      %v227 = vadd.f32 %v223, 0.0
      %v228 = vadd.f32 %v224, 0.0
      %s229 = scalar_lea.vmem %s1, 1
      %v230 = vld [vmem:[%s229] sm:$0x1]
      %v232 = vlaneseq
      %v233 = vshrl.u32 %v232, 7
      %v234 = vsub.s32 0, %v233
      %v235 = vrot.slane %v230, %v234
      %v237 = vmul.f32 %v198, %v235
      %v238 = vmul.f32 %v199, %v235
      %v239 = vmul.f32 %v202, %v235
      %v240 = vmul.f32 %v203, %v235
      %v245 = vrot.slane %v237, 1
      %v246 = vrot.slane %v238, 1
      %v247 = vrot.slane %v239, 1
      %v248 = vrot.slane %v240, 1
      %v253 = vadd.f32 %v225, %v245
      %v254 = vadd.f32 %v226, %v246
      %v255 = vadd.f32 %v227, %v247
      %v256 = vadd.f32 %v228, %v248
      %s257 = scalar_lea.vmem %s1, 2
      %v258 = vld [vmem:[%s257] sm:$0x1]
      %v260 = vlaneseq
      %v261 = vshrl.u32 %v260, 7
      %v262 = vsub.s32 0, %v261
      %v263 = vrot.slane %v258, %v262
      %v265 = vmul.f32 %v198, %v263
      %v266 = vmul.f32 %v199, %v263
      %v267 = vmul.f32 %v202, %v263
      %v268 = vmul.f32 %v203, %v263
      %v273 = vrot.slane %v265, 2
      %v274 = vrot.slane %v266, 2
      %v275 = vrot.slane %v267, 2
      %v276 = vrot.slane %v268, 2
      %v281 = vadd.f32 %v253, %v273
      %v282 = vadd.f32 %v254, %v274
      %v283 = vadd.f32 %v255, %v275
      %v284 = vadd.f32 %v256, %v276
      %s285 = scalar_lea.vmem %s1, 3
      %v286 = vld [vmem:[%s285] sm:$0x1]
      %v288 = vlaneseq
      %v289 = vshrl.u32 %v288, 7
      %v290 = vsub.s32 0, %v289
      %v291 = vrot.slane %v286, %v290
      %v293 = vmul.f32 %v199, %v291
      %v294 = vmul.f32 %v200, %v291
      %v295 = vmul.f32 %v203, %v291
      %v296 = vmul.f32 %v204, %v291
      %v297 = vadd.f32 %v281, %v293
      %v298 = vadd.f32 %v282, %v294
      %v299 = vadd.f32 %v283, %v295
      %v300 = vadd.f32 %v284, %v296
      %s301 = scalar_lea.vmem %s1, 4
      %v302 = vld [vmem:[%s301] sm:$0x1]
      %v304 = vlaneseq
      %v305 = vshrl.u32 %v304, 7
      %v306 = vsub.s32 0, %v305
      %v307 = vrot.slane %v302, %v306
      %v309 = vmul.f32 %v199, %v307
      %v310 = vmul.f32 %v200, %v307
      %v311 = vmul.f32 %v203, %v307
      %v312 = vmul.f32 %v204, %v307
      %v317 = vrot.slane %v309, 1
      %v318 = vrot.slane %v310, 1
      %v319 = vrot.slane %v311, 1
      %v320 = vrot.slane %v312, 1
      %v325 = vadd.f32 %v297, %v317
      %v326 = vadd.f32 %v298, %v318
      %v327 = vadd.f32 %v299, %v319
      %v328 = vadd.f32 %v300, %v320
      %s329 = scalar_lea.vmem %s1, 5
      %v330 = vld [vmem:[%s329] sm:$0x1]
      %v332 = vlaneseq
      %v333 = vshrl.u32 %v332, 7
      %v334 = vsub.s32 0, %v333
      %v335 = vrot.slane %v330, %v334
      %v337 = vmul.f32 %v199, %v335
      %v338 = vmul.f32 %v200, %v335
      %v339 = vmul.f32 %v203, %v335
      %v340 = vmul.f32 %v204, %v335
      %v345 = vrot.slane %v337, 2
      %v346 = vrot.slane %v338, 2
      %v347 = vrot.slane %v339, 2
      %v348 = vrot.slane %v340, 2
      %v353 = vadd.f32 %v325, %v345
      %v354 = vadd.f32 %v326, %v346
      %v355 = vadd.f32 %v327, %v347
      %v356 = vadd.f32 %v328, %v348
      %s357 = scalar_lea.vmem %s1, 6
      %v358 = vld [vmem:[%s357] sm:$0x1]
      %v360 = vlaneseq
      %v361 = vshrl.u32 %v360, 7
      %v362 = vsub.s32 0, %v361
      %v363 = vrot.slane %v358, %v362
      %v365 = vmul.f32 %v200, %v363
      %v366 = vmul.f32 %v201, %v363
      %v367 = vmul.f32 %v204, %v363
      %v368 = vmul.f32 %v205, %v363
      %v369 = vadd.f32 %v353, %v365
      %v370 = vadd.f32 %v354, %v366
      %v371 = vadd.f32 %v355, %v367
      %v372 = vadd.f32 %v356, %v368
      %s373 = scalar_lea.vmem %s1, 7
      %v374 = vld [vmem:[%s373] sm:$0x1]
      %v376 = vlaneseq
      %v377 = vshrl.u32 %v376, 7
      %v378 = vsub.s32 0, %v377
      %v379 = vrot.slane %v374, %v378
      %v381 = vmul.f32 %v200, %v379
      %v382 = vmul.f32 %v201, %v379
      %v383 = vmul.f32 %v204, %v379
      %v384 = vmul.f32 %v205, %v379
      %v389 = vrot.slane %v381, 1
      %v390 = vrot.slane %v382, 1
      %v391 = vrot.slane %v383, 1
      %v392 = vrot.slane %v384, 1
      %v397 = vadd.f32 %v369, %v389
      %v398 = vadd.f32 %v370, %v390
      %v399 = vadd.f32 %v371, %v391
      %v400 = vadd.f32 %v372, %v392
      %s401 = scalar_lea.vmem %s1, 8
      %v402 = vld [vmem:[%s401] sm:$0x1]
      %v404 = vlaneseq
      %v405 = vshrl.u32 %v404, 7
      %v406 = vsub.s32 0, %v405
      %v407 = vrot.slane %v402, %v406
      %v409 = vmul.f32 %v200, %v407
      %v410 = vmul.f32 %v201, %v407
      %v411 = vmul.f32 %v204, %v407
      %v412 = vmul.f32 %v205, %v407
      %v417 = vrot.slane %v409, 2
      %v418 = vrot.slane %v410, 2
      %v419 = vrot.slane %v411, 2
      %v420 = vrot.slane %v412, 2
      %v425 = vadd.f32 %v397, %v417
      %v426 = vadd.f32 %v398, %v418
      %v427 = vadd.f32 %v399, %v419
      %v428 = vadd.f32 %v400, %v420
      %s429 = scalar_lea.vmem %s1, 9
      %v430 = vld [vmem:[%s429] sm:$0x1]
      %v432 = vlaneseq
      %v433 = vshrl.u32 %v432, 7
      %v434 = vsub.s32 0, %v433
      %v435 = vrot.slane %v430, %v434
      %v437 = vmul.f32 %v202, %v435
      %v438 = vmul.f32 %v203, %v435
      %v439 = vmul.f32 %v206, %v435
      %v440 = vmul.f32 %v207, %v435
      %v441 = vadd.f32 %v425, %v437
      %v442 = vadd.f32 %v426, %v438
      %v443 = vadd.f32 %v427, %v439
      %v444 = vadd.f32 %v428, %v440
      %s445 = scalar_lea.vmem %s1, 10
      %v446 = vld [vmem:[%s445] sm:$0x1]
      %v448 = vlaneseq
      %v449 = vshrl.u32 %v448, 7
      %v450 = vsub.s32 0, %v449
      %v451 = vrot.slane %v446, %v450
      %v453 = vmul.f32 %v202, %v451
      %v454 = vmul.f32 %v203, %v451
      %v455 = vmul.f32 %v206, %v451
      %v456 = vmul.f32 %v207, %v451
      %v461 = vrot.slane %v453, 1
      %v462 = vrot.slane %v454, 1
      %v463 = vrot.slane %v455, 1
      %v464 = vrot.slane %v456, 1
      %v469 = vadd.f32 %v441, %v461
      %v470 = vadd.f32 %v442, %v462
      %v471 = vadd.f32 %v443, %v463
      %v472 = vadd.f32 %v444, %v464
      %s473 = scalar_lea.vmem %s1, 11
      %v474 = vld [vmem:[%s473] sm:$0x1]
      %v476 = vlaneseq
      %v477 = vshrl.u32 %v476, 7
      %v478 = vsub.s32 0, %v477
      %v479 = vrot.slane %v474, %v478
      %v481 = vmul.f32 %v202, %v479
      %v482 = vmul.f32 %v203, %v479
      %v483 = vmul.f32 %v206, %v479
      %v484 = vmul.f32 %v207, %v479
      %v489 = vrot.slane %v481, 2
      %v490 = vrot.slane %v482, 2
      %v491 = vrot.slane %v483, 2
      %v492 = vrot.slane %v484, 2
      %v497 = vadd.f32 %v469, %v489
      %v498 = vadd.f32 %v470, %v490
      %v499 = vadd.f32 %v471, %v491
      %v500 = vadd.f32 %v472, %v492
      %s501 = scalar_lea.vmem %s1, 12
      %v502 = vld [vmem:[%s501] sm:$0x1]
      %v504 = vlaneseq
      %v505 = vshrl.u32 %v504, 7
      %v506 = vsub.s32 0, %v505
      %v507 = vrot.slane %v502, %v506
      %v509 = vmul.f32 %v203, %v507
      %v510 = vmul.f32 %v204, %v507
      %v511 = vmul.f32 %v207, %v507
      %v512 = vmul.f32 %v208, %v507
      %v513 = vadd.f32 %v497, %v509
      %v514 = vadd.f32 %v498, %v510
      %v515 = vadd.f32 %v499, %v511
      %v516 = vadd.f32 %v500, %v512
      %s517 = scalar_lea.vmem %s1, 13
      %v518 = vld [vmem:[%s517] sm:$0x1]
      %v520 = vlaneseq
      %v521 = vshrl.u32 %v520, 7
      %v522 = vsub.s32 0, %v521
      %v523 = vrot.slane %v518, %v522
      %v525 = vmul.f32 %v203, %v523
      %v526 = vmul.f32 %v204, %v523
      %v527 = vmul.f32 %v207, %v523
      %v528 = vmul.f32 %v208, %v523
      %v533 = vrot.slane %v525, 1
      %v534 = vrot.slane %v526, 1
      %v535 = vrot.slane %v527, 1
      %v536 = vrot.slane %v528, 1
      %v541 = vadd.f32 %v513, %v533
      %v542 = vadd.f32 %v514, %v534
      %v543 = vadd.f32 %v515, %v535
      %v544 = vadd.f32 %v516, %v536
      %s545 = scalar_lea.vmem %s1, 14
      %v546 = vld [vmem:[%s545] sm:$0x1]
      %v548 = vlaneseq
      %v549 = vshrl.u32 %v548, 7
      %v550 = vsub.s32 0, %v549
      %v551 = vrot.slane %v546, %v550
      %v553 = vmul.f32 %v203, %v551
      %v554 = vmul.f32 %v204, %v551
      %v555 = vmul.f32 %v207, %v551
      %v556 = vmul.f32 %v208, %v551
      %v561 = vrot.slane %v553, 2
      %v562 = vrot.slane %v554, 2
      %v563 = vrot.slane %v555, 2
      %v564 = vrot.slane %v556, 2
      %v569 = vadd.f32 %v541, %v561
      %v570 = vadd.f32 %v542, %v562
      %v571 = vadd.f32 %v543, %v563
      %v572 = vadd.f32 %v544, %v564
      %s573 = scalar_lea.vmem %s1, 15
      %v574 = vld [vmem:[%s573] sm:$0x1]
      %v576 = vlaneseq
      %v577 = vshrl.u32 %v576, 7
      %v578 = vsub.s32 0, %v577
      %v579 = vrot.slane %v574, %v578
      %v581 = vmul.f32 %v204, %v579
      %v582 = vmul.f32 %v205, %v579
      %v583 = vmul.f32 %v208, %v579
      %v584 = vmul.f32 %v209, %v579
      %v585 = vadd.f32 %v569, %v581
      %v586 = vadd.f32 %v570, %v582
      %v587 = vadd.f32 %v571, %v583
      %v588 = vadd.f32 %v572, %v584
      %s589 = scalar_lea.vmem %s1, 16
      %v590 = vld [vmem:[%s589] sm:$0x1]
      %v592 = vlaneseq
      %v593 = vshrl.u32 %v592, 7
      %v594 = vsub.s32 0, %v593
      %v595 = vrot.slane %v590, %v594
      %v597 = vmul.f32 %v204, %v595
      %v598 = vmul.f32 %v205, %v595
      %v599 = vmul.f32 %v208, %v595
      %v600 = vmul.f32 %v209, %v595
      %v605 = vrot.slane %v597, 1
      %v606 = vrot.slane %v598, 1
      %v607 = vrot.slane %v599, 1
      %v608 = vrot.slane %v600, 1
      %v613 = vadd.f32 %v585, %v605
      %v614 = vadd.f32 %v586, %v606
      %v615 = vadd.f32 %v587, %v607
      %v616 = vadd.f32 %v588, %v608
      %s617 = scalar_lea.vmem %s1, 17
      %v618 = vld [vmem:[%s617] sm:$0x1]
      %v620 = vlaneseq
      %v621 = vshrl.u32 %v620, 7
      %v622 = vsub.s32 0, %v621
      %v623 = vrot.slane %v618, %v622
      %v625 = vmul.f32 %v204, %v623
      %v626 = vmul.f32 %v205, %v623
      %v627 = vmul.f32 %v208, %v623
      %v628 = vmul.f32 %v209, %v623
      %v633 = vrot.slane %v625, 2
      %v634 = vrot.slane %v626, 2
      %v635 = vrot.slane %v627, 2
      %v636 = vrot.slane %v628, 2
      %v641 = vadd.f32 %v613, %v633
      %v642 = vadd.f32 %v614, %v634
      %v643 = vadd.f32 %v615, %v635
      %v644 = vadd.f32 %v616, %v636
      %s645 = scalar_lea.vmem %s1, 18
      %v646 = vld [vmem:[%s645] sm:$0x1]
      %v648 = vlaneseq
      %v649 = vshrl.u32 %v648, 7
      %v650 = vsub.s32 0, %v649
      %v651 = vrot.slane %v646, %v650
      %v653 = vmul.f32 %v206, %v651
      %v654 = vmul.f32 %v207, %v651
      %v655 = vmul.f32 %v210, %v651
      %v656 = vmul.f32 %v211, %v651
      %v657 = vadd.f32 %v641, %v653
      %v658 = vadd.f32 %v642, %v654
      %v659 = vadd.f32 %v643, %v655
      %v660 = vadd.f32 %v644, %v656
      %s661 = scalar_lea.vmem %s1, 19
      %v662 = vld [vmem:[%s661] sm:$0x1]
      %v664 = vlaneseq
      %v665 = vshrl.u32 %v664, 7
      %v666 = vsub.s32 0, %v665
      %v667 = vrot.slane %v662, %v666
      %v669 = vmul.f32 %v206, %v667
      %v670 = vmul.f32 %v207, %v667
      %v671 = vmul.f32 %v210, %v667
      %v672 = vmul.f32 %v211, %v667
      %v677 = vrot.slane %v669, 1
      %v678 = vrot.slane %v670, 1
      %v679 = vrot.slane %v671, 1
      %v680 = vrot.slane %v672, 1
      %v685 = vadd.f32 %v657, %v677
      %v686 = vadd.f32 %v658, %v678
      %v687 = vadd.f32 %v659, %v679
      %v688 = vadd.f32 %v660, %v680
      %s689 = scalar_lea.vmem %s1, 20
      %v690 = vld [vmem:[%s689] sm:$0x1]
      %v692 = vlaneseq
      %v693 = vshrl.u32 %v692, 7
      %v694 = vsub.s32 0, %v693
      %v695 = vrot.slane %v690, %v694
      %v697 = vmul.f32 %v206, %v695
      %v698 = vmul.f32 %v207, %v695
      %v699 = vmul.f32 %v210, %v695
      %v700 = vmul.f32 %v211, %v695
      %v705 = vrot.slane %v697, 2
      %v706 = vrot.slane %v698, 2
      %v707 = vrot.slane %v699, 2
      %v708 = vrot.slane %v700, 2
      %v713 = vadd.f32 %v685, %v705
      %v714 = vadd.f32 %v686, %v706
      %v715 = vadd.f32 %v687, %v707
      %v716 = vadd.f32 %v688, %v708
      %s717 = scalar_lea.vmem %s1, 21
      %v718 = vld [vmem:[%s717] sm:$0x1]
      %v720 = vlaneseq
      %v721 = vshrl.u32 %v720, 7
      %v722 = vsub.s32 0, %v721
      %v723 = vrot.slane %v718, %v722
      %v725 = vmul.f32 %v207, %v723
      %v726 = vmul.f32 %v208, %v723
      %v727 = vmul.f32 %v211, %v723
      %v728 = vmul.f32 %v212, %v723
      %v729 = vadd.f32 %v713, %v725
      %v730 = vadd.f32 %v714, %v726
      %v731 = vadd.f32 %v715, %v727
      %v732 = vadd.f32 %v716, %v728
      %s733 = scalar_lea.vmem %s1, 22
      %v734 = vld [vmem:[%s733] sm:$0x1]
      %v736 = vlaneseq
      %v737 = vshrl.u32 %v736, 7
      %v738 = vsub.s32 0, %v737
      %v739 = vrot.slane %v734, %v738
      %v741 = vmul.f32 %v207, %v739
      %v742 = vmul.f32 %v208, %v739
      %v743 = vmul.f32 %v211, %v739
      %v744 = vmul.f32 %v212, %v739
      %v749 = vrot.slane %v741, 1
      %v750 = vrot.slane %v742, 1
      %v751 = vrot.slane %v743, 1
      %v752 = vrot.slane %v744, 1
      %v757 = vadd.f32 %v729, %v749
      %v758 = vadd.f32 %v730, %v750
      %v759 = vadd.f32 %v731, %v751
      %v760 = vadd.f32 %v732, %v752
      %s761 = scalar_lea.vmem %s1, 23
      %v762 = vld [vmem:[%s761] sm:$0x1]
      %v764 = vlaneseq
      %v765 = vshrl.u32 %v764, 7
      %v766 = vsub.s32 0, %v765
      %v767 = vrot.slane %v762, %v766
      %v769 = vmul.f32 %v207, %v767
      %v770 = vmul.f32 %v208, %v767
      %v771 = vmul.f32 %v211, %v767
      %v772 = vmul.f32 %v212, %v767
      %v777 = vrot.slane %v769, 2
      %v778 = vrot.slane %v770, 2
      %v779 = vrot.slane %v771, 2
      %v780 = vrot.slane %v772, 2
      %v785 = vadd.f32 %v757, %v777
      %v786 = vadd.f32 %v758, %v778
      %v787 = vadd.f32 %v759, %v779
      %v788 = vadd.f32 %v760, %v780
      %s789 = scalar_lea.vmem %s1, 24
      %v790 = vld [vmem:[%s789] sm:$0x1]
      %v792 = vlaneseq
      %v793 = vshrl.u32 %v792, 7
      %v794 = vsub.s32 0, %v793
      %v795 = vrot.slane %v790, %v794
      %v797 = vmul.f32 %v208, %v795
      %v798 = vmul.f32 %v209, %v795
      %v799 = vmul.f32 %v212, %v795
      %v800 = vmul.f32 %v213, %v795
      %v801 = vadd.f32 %v785, %v797
      %v802 = vadd.f32 %v786, %v798
      %v803 = vadd.f32 %v787, %v799
      %v804 = vadd.f32 %v788, %v800
      %s805 = scalar_lea.vmem %s1, 25
      %v806 = vld [vmem:[%s805] sm:$0x1]
      %v808 = vlaneseq
      %v809 = vshrl.u32 %v808, 7
      %v810 = vsub.s32 0, %v809
      %v811 = vrot.slane %v806, %v810
      %v813 = vmul.f32 %v208, %v811
      %v814 = vmul.f32 %v209, %v811
      %v815 = vmul.f32 %v212, %v811
      %v816 = vmul.f32 %v213, %v811
      %v821 = vrot.slane %v813, 1
      %v822 = vrot.slane %v814, 1
      %v823 = vrot.slane %v815, 1
      %v824 = vrot.slane %v816, 1
      %v829 = vadd.f32 %v801, %v821
      %v830 = vadd.f32 %v802, %v822
      %v831 = vadd.f32 %v803, %v823
      %v832 = vadd.f32 %v804, %v824
      %s833 = scalar_lea.vmem %s1, 26
      %v834 = vld [vmem:[%s833] sm:$0x1]
      %v836 = vlaneseq
      %v837 = vshrl.u32 %v836, 7
      %v838 = vsub.s32 0, %v837
      %v839 = vrot.slane %v834, %v838
      %v841 = vmul.f32 %v208, %v839
      %v842 = vmul.f32 %v209, %v839
      %v843 = vmul.f32 %v212, %v839
      %v844 = vmul.f32 %v213, %v839
      %v849 = vrot.slane %v841, 2
      %v850 = vrot.slane %v842, 2
      %v851 = vrot.slane %v843, 2
      %v852 = vrot.slane %v844, 2
      %v857 = vadd.f32 %v829, %v849
      %v858 = vadd.f32 %v830, %v850
      %v859 = vadd.f32 %v831, %v851
      %v860 = vadd.f32 %v832, %v852
      %v861 = vld [vmem:[%s2] sm:$0x1]
      %v863 = vlaneseq
      %v864 = vshrl.u32 %v863, 7
      %v865 = vsub.s32 0, %v864
      %v866 = vrot.slane %v861, %v865
      %v868 = vmul.f32 %v857, %v866
      %v869 = vmul.f32 %v858, %v866
      %v870 = vmul.f32 %v859, %v866
      %v871 = vmul.f32 %v860, %v866
      %v872 = vld [vmem:[%s3] sm:$0x1]
      %v874 = vlaneseq
      %v875 = vshrl.u32 %v874, 7
      %v876 = vsub.s32 0, %v875
      %v877 = vrot.slane %v872, %v876
      %v879 = vadd.f32 %v868, %v877
      %v880 = vadd.f32 %v869, %v877
      %v881 = vadd.f32 %v870, %v877
      %v882 = vadd.f32 %v871, %v877
      %v883 = vmul.f32 %v879, 0.5
      %v884 = vmul.f32 %v880, 0.5
      %v885 = vmul.f32 %v881, 0.5
      %v886 = vmul.f32 %v882, 0.5
      %v887 = vmul.f32 %v879, 0.044715
      %v888 = vmul.f32 %v880, 0.044715
      %v889 = vmul.f32 %v881, 0.044715
      %v890 = vmul.f32 %v882, 0.044715
      %v891 = vmul.f32 %v887, %v879
      %v892 = vmul.f32 %v888, %v880
      %v893 = vmul.f32 %v889, %v881
      %v894 = vmul.f32 %v890, %v882
      %v895 = vmul.f32 %v891, %v879
      %v896 = vmul.f32 %v892, %v880
      %v897 = vmul.f32 %v893, %v881
      %v898 = vmul.f32 %v894, %v882
      %v899 = vadd.f32 %v879, %v895
      %v900 = vadd.f32 %v880, %v896
      %v901 = vadd.f32 %v881, %v897
      %v902 = vadd.f32 %v882, %v898
      %v903 = vmul.f32 %v899, 0.7978846
      %v904 = vmul.f32 %v900, 0.7978846
      %v905 = vmul.f32 %v901, 0.7978846
      %v906 = vmul.f32 %v902, 0.7978846
      %v907 = vtanh.pop %v903
      %v908 = vtanh.pop %v904
      %v909 = vtanh.pop %v905
      %v910 = vtanh.pop %v906
      %v911 = vadd.f32 %v907, 1.0
      %v912 = vadd.f32 %v908, 1.0
      %v913 = vadd.f32 %v909, 1.0
      %v914 = vadd.f32 %v910, 1.0
      %v915 = vmul.f32 %v883, %v911
      %v916 = vmul.f32 %v884, %v912
      %v917 = vmul.f32 %v885, %v913
      %v918 = vmul.f32 %v886, %v914
      %919 = vst [vmem:[%s197] sm:$0x3] %v915
      %920 = vst [vmem:[%s197 + $0x2] sm:$0x3] %v916
      %921 = vst [vmem:[%s197 + $0x4] sm:$0x3] %v917
      %922 = vst [vmem:[%s197 + $0x6] sm:$0x3] %v918
      %p923 = scmp.lt.s32.totalorder %s15, 1
      %s924 = scalar_select %p923, %s15, 1
      %s925 = smul.addr %s924, 4
      %s926 = smul.addr %s925, 2
      %s927 = scalar_lea.vmem %s4, %s926
      // Predicated region
      $region37: #{transformer_block.12} parent=35 // pred_check
        %p928 = pneg %p122
      $region38: #{transformer_block.12} parent=35 // pred_check_branch
        %930 = sbr.rel (%p928) target = $region40
      $region39: #{transformer_block.12} parent=35 // pred_region
        _
      $region40: #{transformer_block.12} parent=35 // pred_fallthru
        _
    $region36: #{transformer_block.12} parent=5 // pred_fallthru
      _
    %p931 = scmp.le.s32.totalorder 2, %s10
    // Predicated region
    $region41: #{transformer_block.12} parent=5 // pred_check
      %p932 = pneg %p931
    $region42: #{transformer_block.12} parent=5 // pred_check_branch
      %934 = sbr.rel (%p932) target = $region44
    $region43: #{transformer_block.12} parent=5 // pred_region
      %s935 = ssub.s32 %s10, 2
      // Predicated region
      $region45: #{transformer_block.12} parent=43 // pred_check
        %p936 = pneg %p128
      $region46: #{transformer_block.12} parent=43 // pred_check_branch
        %938 = sbr.rel (%p936) target = $region48
      $region47: #{transformer_block.12} parent=43 // pred_region
        %p939 = scmp.lt.s32.totalorder %s16, 1
        %s940 = scalar_select %p939, %s16, 1
        %s941 = smul.addr %s940, 4
        %s942 = smul.addr %s941, 2
        %s943 = scalar_lea.vmem %s4, %s942
      $region48: #{transformer_block.12} parent=43 // pred_fallthru
        _
    $region44: #{transformer_block.12} parent=5 // pred_fallthru
      _
  $region6: #{transformer_block.12} parent=0 // loop_footer
    %s14 = sadd.s32 1, %s10
  $region7: #{transformer_block.12} parent=0 // loop_footer_branch
    %9 = sbr.rel target = $region3
  $region8: #{transformer_block.12} parent=0 // loop_exit
    _

</llo_original>
